<compile_context>
chip_gen: v7x
topology: tpu7x:2x2x1
jax: 0.10.0
libtpu: 0.0.40
codegen_flags: <defaults>
</compile_context>

<pallas_src>
import jax
import jax.numpy as jnp
from jax.experimental import pallas as pl
from jax.experimental.pallas import tpu as pltpu


TM_MAX = 512                    # M tile (rows of output pixels)
TN_MAX = 256                    # N tile (output channels) -- 256-wide MXU on v6e/v7x
TK = 128                        # K tile (flattened patch)
VMEM_LIMIT = 32 * 1024 * 1024   # conservative scoped-VMEM budget (fits v5e..v7x)


def _round_up(x, m):
    return ((x + m - 1) // m) * m


# ----------------------------- Pallas kernels ------------------------------ #

def _mm_bias_relu_kernel(a_ref, w_ref, b_ref, o_ref, acc_ref):
    """One (tm, tn) output tile; K is the last (innermost) grid axis."""
    @pl.when(pl.program_id(2) == 0)
    def _init():
        acc_ref[...] = jnp.zeros_like(acc_ref)

    acc_ref[...] += jnp.dot(a_ref[...], w_ref[...],
                            preferred_element_type=jnp.float32)

    @pl.when(pl.program_id(2) == pl.num_programs(2) - 1)
    def _finalize():
        o_ref[...] = jnp.maximum(acc_ref[...] + b_ref[...], 0.0).astype(o_ref.dtype)


def _mm_bias_relu_pool_kernel(a_ref, w_ref, b_ref, o_ref, acc_ref):
    """Final stage: conv tile + fused global average pool over the spatial axis."""
    @pl.when(pl.program_id(2) == 0)
    def _init():
        acc_ref[...] = jnp.zeros_like(acc_ref)

    a = a_ref[...][0]                                              # (HW, TK)
    acc_ref[...] += jnp.dot(a, w_ref[...], preferred_element_type=jnp.float32)

    @pl.when(pl.program_id(2) == pl.num_programs(2) - 1)
    def _finalize():
        act = jnp.maximum(acc_ref[...] + b_ref[...], 0.0)          # (HW, tn)
        pooled = jnp.mean(act, axis=0, keepdims=True)              # (1, tn)
        o_ref[...] = pooled[None].astype(o_ref.dtype)              # (1, 1, tn)


# ----------------------------- kernel wrappers ------------------------------ #

def matmul_bias_relu(a, w2d, bias, out_dtype=jnp.bfloat16):
    """out = relu(a @ w2d + bias): tiled MXU matmul, f32 K-accumulation."""
    M, K = a.shape
    K2, N = w2d.shape
    assert K == K2 and K % TK == 0 and N % 128 == 0
    tn = TN_MAX if N % TN_MAX == 0 else 128

    if M <= TM_MAX:
        tm, m_pad = M, 0
    else:
        tm = TM_MAX
        m_pad = _round_up(M, tm) - M
        if m_pad:
            a = jnp.pad(a, ((0, m_pad), (0, 0)))
    mp = M + m_pad

    out = pl.pallas_call(
        _mm_bias_relu_kernel,
        out_shape=jax.ShapeDtypeStruct((mp, N), out_dtype),
        grid_spec=pltpu.PrefetchScalarGridSpec(
            num_scalar_prefetch=0,
            grid=(mp // tm, N // tn, K // TK),
            in_specs=[
                pl.BlockSpec((tm, TK), lambda i, j, k: (i, k)),
                pl.BlockSpec((TK, tn), lambda i, j, k: (k, j)),
                pl.BlockSpec((1, tn), lambda i, j, k: (0, j)),
            ],
            out_specs=pl.BlockSpec((tm, tn), lambda i, j, k: (i, j)),
            scratch_shapes=[pltpu.VMEM((tm, tn), jnp.float32)],
        ),
        compiler_params=pltpu.CompilerParams(
            dimension_semantics=("parallel", "parallel", "arbitrary"),
            vmem_limit_bytes=VMEM_LIMIT,
        ),
    )(a, w2d, bias.reshape(1, N))
    return out[:M] if m_pad else out


def matmul_bias_relu_pool(a3d, w2d, bias):
    """relu(a @ w + b) with a fused mean over the spatial (HW) axis.

    a3d: (B, HW, K) bf16.  Returns (B, N) f32 == AdaptiveAvgPool2d((1,1)).
    """
    B, HW, K = a3d.shape
    K2, N = w2d.shape
    assert K == K2 and K % TK == 0 and N % 128 == 0
    tn = TN_MAX if N % TN_MAX == 0 else 128

    out = pl.pallas_call(
        _mm_bias_relu_pool_kernel,
        out_shape=jax.ShapeDtypeStruct((B, 1, N), jnp.float32),
        grid_spec=pltpu.PrefetchScalarGridSpec(
            num_scalar_prefetch=0,
            grid=(B, N // tn, K // TK),
            in_specs=[
                pl.BlockSpec((1, HW, TK), lambda b, j, k: (b, 0, k)),
                pl.BlockSpec((TK, tn), lambda b, j, k: (k, j)),
                pl.BlockSpec((1, tn), lambda b, j, k: (0, j)),
            ],
            out_specs=pl.BlockSpec((1, 1, tn), lambda b, j, k: (b, 0, j)),
            scratch_shapes=[pltpu.VMEM((HW, tn), jnp.float32)],
        ),
        compiler_params=pltpu.CompilerParams(
            dimension_semantics=("parallel", "parallel", "arbitrary"),
            vmem_limit_bytes=VMEM_LIMIT,
        ),
    )(a3d, w2d, bias.reshape(1, N))
    return out.reshape(B, N)


# ------------------------------- glue (JAX) -------------------------------- #

def _im2col(x_nhwc, kh, kw, stride, pad, k_target):
    """(B,H,W,C) -> (B*Ho*Wo, k_target) bf16 patch matrix (K zero-padded)."""
    x = jnp.pad(x_nhwc, ((0, 0), (pad, pad), (pad, pad), (0, 0)))
    B, Hp, Wp, C = x.shape
    Ho = (Hp - kh) // stride + 1
    Wo = (Wp - kw) // stride + 1
    cols = []
    for i in range(kh):
        for j in range(kw):
            cols.append(x[:, i:i + stride * Ho:stride, j:j + stride * Wo:stride, :])
    patches = jnp.stack(cols, axis=3)                    # (B, Ho, Wo, kh*kw, C)
    a = patches.reshape(B * Ho * Wo, kh * kw * C)
    if k_target > a.shape[1]:
        a = jnp.pad(a, ((0, 0), (0, k_target - a.shape[1])))
    return a.astype(jnp.bfloat16), Ho, Wo


def conv2d_relu(x_nhwc, w2d, bias, k, stride, pad):
    B = x_nhwc.shape[0]
    a, Ho, Wo = _im2col(x_nhwc, k, k, stride, pad, w2d.shape[0])
    out = matmul_bias_relu(a, w2d, bias)                 # (B*Ho*Wo, Cout_pad) bf16
    return out.reshape(B, Ho, Wo, w2d.shape[1])


def conv2d_relu_pool(x_nhwc, w2d, bias, k, stride, pad):
    B = x_nhwc.shape[0]
    a, Ho, Wo = _im2col(x_nhwc, k, k, stride, pad, w2d.shape[0])
    a3d = a.reshape(B, Ho * Wo, w2d.shape[0])
    return matmul_bias_relu_pool(a3d, w2d, bias)         # (B, Cout_pad) f32


# ----------------------------- model definition ---------------------------- #

_STAGE_SPECS = [
    # (Cin, Cout, k, stride, pad)  -- C1..C5 encoder stages
    (3, 16, 3, 2, 1),
    (16, 32, 3, 2, 1),
    (32, 64, 3, 2, 1),
    (64, 128, 3, 2, 1),
    (128, 256, 3, 1, 1),
]


def init_params(key):
    """Real (unpadded) OIHW conv weights + biases, He-style init."""
    params = []
    for idx, (cin, cout, k, _, _) in enumerate(_STAGE_SPECS):
        kw_, kb_ = jax.random.split(jax.random.fold_in(key, idx))
        fan_in = cin * k * k
        w = jax.random.normal(kw_, (cout, cin, k, k), jnp.float32) * (2.0 / fan_in) ** 0.5
        b = jax.random.normal(kb_, (cout,), jnp.float32) * 0.01
        params.append((w, b))
    return params


def prepare_params(params):
    """Pad channels to lane-dense multiples of 128 and pre-reshape weights to
    the (K_pad, Cout_pad) bf16 layout the Pallas matmul consumes.  Padded
    channels carry zero weights/bias, so they stay exactly zero end-to-end."""
    prepared = []
    cin_act = _STAGE_SPECS[0][0]          # channels of the activation entering stage 0
    for (w, b), (cin, cout, k, s, p) in zip(params, _STAGE_SPECS):
        cout_pad = _round_up(cout, 128)
        w_full = jnp.zeros((cout_pad, cin_act, k, k), jnp.float32)
        w_full = w_full.at[:cout, :cin, :, :].set(w)
        # (kh, kw, Cin_pad, Cout_pad) -> (kh*kw*Cin_pad, Cout_pad): matches
        # the im2col tap-major / channel-minor K ordering.
        w2d = jnp.transpose(w_full, (2, 3, 1, 0)).reshape(k * k * cin_act, cout_pad)
        k_pad = _round_up(w2d.shape[0], TK)
        if k_pad > w2d.shape[0]:
            w2d = jnp.pad(w2d, ((0, k_pad - w2d.shape[0]), (0, 0)))
        b_full = jnp.zeros((cout_pad,), jnp.float32).at[:cout].set(b)
        prepared.append((w2d.astype(jnp.bfloat16), b_full, k, s, p))
        cin_act = cout_pad
    return prepared


def combined_model_forward(x_nchw, prepared):
    """NCHW in -> bottleneck (B, C, 1, 1) out, matching combinedModel.forward."""
    x = jnp.transpose(x_nchw, (0, 2, 3, 1)).astype(jnp.bfloat16)   # NHWC, bf16
    # TODO(synk): the last few stages have tiny M at small resolutions; merging
    # them into one pallas_call would shave launch overhead (left separate).
    for w2d, bias, k, s, p in prepared[:-1]:
        x = conv2d_relu(x, w2d, bias, k, s, p)
    w2d, bias, k, s, p = prepared[-1]
    pooled = conv2d_relu_pool(x, w2d, bias, k, s, p)     # fused conv + avg-pool
    B, C = pooled.shape
    return pooled.reshape(B, C, 1, 1)                    # bottleneck, NCHW


# ---------------------------------- main ------------------------------------ #

if __name__ == "__main__":
    key = jax.random.PRNGKey(0)
    k_x, k_p = jax.random.split(key)

    # Small NCHW input consistent with the module's (3, H, W) input convention.
    x = jax.random.normal(k_x, (2, 3, 32, 32), jnp.float32)
    prepared = prepare_params(init_params(k_p))

    fwd = jax.jit(lambda xx: combined_model_forward(xx, prepared))
    out = jax.block_until_ready(fwd(x))

    assert out.shape == (2, 256, 1, 1), out.shape
    assert bool(jnp.all(jnp.isfinite(out)))
    print("KERNEL_OK")
</pallas_src>

<mosaic_0001>
module attributes {stable_mosaic.version = 11 : i64} {
  func.func @_mm_bias_relu_kernel(%arg0: i32, %arg1: i32, %arg2: i32, %arg3: memref<512x128xbf16, #tpu.memory_space<vmem>>, %arg4: memref<128x128xbf16, #tpu.memory_space<vmem>>, %arg5: memref<1x128xf32, #tpu.memory_space<vmem>>, %arg6: memref<512x128xbf16, #tpu.memory_space<vmem>>, %arg7: memref<512x128xf32, #tpu.memory_space<vmem>>) attributes {dimension_semantics = [#tpu.dimension_semantics<parallel>, #tpu.dimension_semantics<parallel>, #tpu.dimension_semantics<arbitrary>], iteration_bounds = array<i64: 1, 1, 1>, scalar_prefetch = 0 : i64, scratch_operands = 1 : i64, tpu.core_type = #tpu.core_type<tc>, window_params = [{transform_indices = @transform_0, window_bounds = array<i64: 512, 128>}, {transform_indices = @transform_1, window_bounds = array<i64: 128, 128>}, {transform_indices = @transform_2, window_bounds = array<i64: 1, 128>}, {transform_indices = @transform_3, window_bounds = array<i64: 512, 128>}]} {
    %c0_i32 = arith.constant 0 : i32
    %0 = arith.cmpi eq, %arg2, %c0_i32 : i32
    %1 = arith.extui %0 : i1 to i32
    %c0_i32_0 = arith.constant 0 : i32
    %2 = arith.cmpi ne, %1, %c0_i32_0 : i32
    scf.if %2 {
      %cst_10 = arith.constant 0.000000e+00 : f32
      %12 = vector.broadcast %cst_10 : f32 to vector<512x128xf32>
      %c0_11 = arith.constant 0 : index
      %c0_12 = arith.constant 0 : index
      %13 = vector.load %arg7[%c0_11, %c0_12] : memref<512x128xf32, #tpu.memory_space<vmem>>, vector<512x128xf32>
      tpu.vector_store %arg7[%c0_11, %c0_12], %12 {strides = array<i32>} : memref<512x128xf32, #tpu.memory_space<vmem>>, vector<512x128xf32>,
    } else {
    }
    %c0 = arith.constant 0 : index
    %c0_1 = arith.constant 0 : index
    %3 = vector.load %arg7[%c0, %c0_1] : memref<512x128xf32, #tpu.memory_space<vmem>>, vector<512x128xf32>
    %c0_2 = arith.constant 0 : index
    %c0_3 = arith.constant 0 : index
    %4 = vector.load %arg3[%c0_2, %c0_3] : memref<512x128xbf16, #tpu.memory_space<vmem>>, vector<512x128xbf16>
    %c0_4 = arith.constant 0 : index
    %c0_5 = arith.constant 0 : index
    %5 = vector.load %arg4[%c0_4, %c0_5] : memref<128x128xbf16, #tpu.memory_space<vmem>>, vector<128x128xbf16>
    %cst = arith.constant dense<0.000000e+00> : vector<512x128xf32>
    %6 = tpu.matmul %4, %5, %cst {dimension_numbers = #tpu.dot_dimension_numbers<[1], [0], [0], [1], [0, 0, 1, 1], [], []>} : vector<512x128xbf16>, vector<128x128xbf16>, vector<512x128xf32> -> vector<512x128xf32>
    %7 = arith.addf %3, %6 : vector<512x128xf32>
    %c0_6 = arith.constant 0 : index
    %c0_7 = arith.constant 0 : index
    %8 = vector.load %arg7[%c0_6, %c0_7] : memref<512x128xf32, #tpu.memory_space<vmem>>, vector<512x128xf32>
    tpu.vector_store %arg7[%c0_6, %c0_7], %7 {strides = array<i32>} : memref<512x128xf32, #tpu.memory_space<vmem>>, vector<512x128xf32>,
    %c0_i32_8 = arith.constant 0 : i32
    %9 = arith.cmpi eq, %arg2, %c0_i32_8 : i32
    %10 = arith.extui %9 : i1 to i32
    %c0_i32_9 = arith.constant 0 : i32
    %11 = arith.cmpi ne, %10, %c0_i32_9 : i32
    scf.if %11 {
      %c0_10 = arith.constant 0 : index
      %c0_11 = arith.constant 0 : index
      %12 = vector.load %arg7[%c0_10, %c0_11] : memref<512x128xf32, #tpu.memory_space<vmem>>, vector<512x128xf32>
      %c0_12 = arith.constant 0 : index
      %c0_13 = arith.constant 0 : index
      %13 = vector.load %arg5[%c0_12, %c0_13] : memref<1x128xf32, #tpu.memory_space<vmem>>, vector<1x128xf32>
      %14 = vector.broadcast %13 : vector<1x128xf32> to vector<512x128xf32>
      %15 = arith.addf %12, %14 : vector<512x128xf32>
      %cst_14 = arith.constant 0.000000e+00 : f32
      %16 = vector.broadcast %cst_14 : f32 to vector<512x128xf32>
      %17 = arith.maximumf %15, %16 : vector<512x128xf32>
      %18 = arith.truncf %17 : vector<512x128xf32> to vector<512x128xbf16>
      %c0_15 = arith.constant 0 : index
      %c0_16 = arith.constant 0 : index
      %19 = vector.load %arg6[%c0_15, %c0_16] : memref<512x128xbf16, #tpu.memory_space<vmem>>, vector<512x128xbf16>
      tpu.vector_store %arg6[%c0_15, %c0_16], %18 {strides = array<i32>} : memref<512x128xbf16, #tpu.memory_space<vmem>>, vector<512x128xbf16>,
    } else {
    }
    return
  }
  func.func @transform_0(%arg0: i32, %arg1: i32, %arg2: i32) -> (i32, i32) {
    %c0_i32 = arith.constant 0 : i32
    return %arg0, %arg2 : i32, i32
  }
  func.func @transform_1(%arg0: i32, %arg1: i32, %arg2: i32) -> (i32, i32) {
    %c0_i32 = arith.constant 0 : i32
    return %arg2, %arg1 : i32, i32
  }
  func.func @transform_2(%arg0: i32, %arg1: i32, %arg2: i32) -> (i32, i32) {
    %c0_i32 = arith.constant 0 : i32
    %c0_i32_0 = arith.constant 0 : i32
    return %c0_i32, %arg1 : i32, i32
  }
  func.func @transform_3(%arg0: i32, %arg1: i32, %arg2: i32) -> (i32, i32) {
    %c0_i32 = arith.constant 0 : i32
    return %arg0, %arg1 : i32, i32
  }
}

module attributes {stable_mosaic.version = 11 : i64} {
  func.func @_mm_bias_relu_kernel(%arg0: i32, %arg1: i32, %arg2: i32, %arg3: memref<128x128xbf16, #tpu.memory_space<vmem>>, %arg4: memref<128x128xbf16, #tpu.memory_space<vmem>>, %arg5: memref<1x128xf32, #tpu.memory_space<vmem>>, %arg6: memref<128x128xbf16, #tpu.memory_space<vmem>>, %arg7: memref<128x128xf32, #tpu.memory_space<vmem>>) attributes {dimension_semantics = [#tpu.dimension_semantics<parallel>, #tpu.dimension_semantics<parallel>, #tpu.dimension_semantics<arbitrary>], iteration_bounds = array<i64: 1, 1, 9>, scalar_prefetch = 0 : i64, scratch_operands = 1 : i64, tpu.core_type = #tpu.core_type<tc>, window_params = [{transform_indices = @transform_0, window_bounds = array<i64: 128, 128>}, {transform_indices = @transform_1, window_bounds = array<i64: 128, 128>}, {transform_indices = @transform_2, window_bounds = array<i64: 1, 128>}, {transform_indices = @transform_3, window_bounds = array<i64: 128, 128>}]} {
    %c0_i32 = arith.constant 0 : i32
    %0 = arith.cmpi eq, %arg2, %c0_i32 : i32
    %1 = arith.extui %0 : i1 to i32
    %c0_i32_0 = arith.constant 0 : i32
    %2 = arith.cmpi ne, %1, %c0_i32_0 : i32
    scf.if %2 {
      %cst_9 = arith.constant 0.000000e+00 : f32
      %12 = vector.broadcast %cst_9 : f32 to vector<128x128xf32>
      %c0_10 = arith.constant 0 : index
      %c0_11 = arith.constant 0 : index
      %13 = vector.load %arg7[%c0_10, %c0_11] : memref<128x128xf32, #tpu.memory_space<vmem>>, vector<128x128xf32>
      tpu.vector_store %arg7[%c0_10, %c0_11], %12 {strides = array<i32>} : memref<128x128xf32, #tpu.memory_space<vmem>>, vector<128x128xf32>,
    } else {
    }
    %c0 = arith.constant 0 : index
    %c0_1 = arith.constant 0 : index
    %3 = vector.load %arg7[%c0, %c0_1] : memref<128x128xf32, #tpu.memory_space<vmem>>, vector<128x128xf32>
    %c0_2 = arith.constant 0 : index
    %c0_3 = arith.constant 0 : index
    %4 = vector.load %arg3[%c0_2, %c0_3] : memref<128x128xbf16, #tpu.memory_space<vmem>>, vector<128x128xbf16>
    %c0_4 = arith.constant 0 : index
    %c0_5 = arith.constant 0 : index
    %5 = vector.load %arg4[%c0_4, %c0_5] : memref<128x128xbf16, #tpu.memory_space<vmem>>, vector<128x128xbf16>
    %cst = arith.constant dense<0.000000e+00> : vector<128x128xf32>
    %6 = tpu.matmul %4, %5, %cst {dimension_numbers = #tpu.dot_dimension_numbers<[1], [0], [0], [1], [0, 0, 1, 1], [], []>} : vector<128x128xbf16>, vector<128x128xbf16>, vector<128x128xf32> -> vector<128x128xf32>
    %7 = arith.addf %3, %6 : vector<128x128xf32>
    %c0_6 = arith.constant 0 : index
    %c0_7 = arith.constant 0 : index
    %8 = vector.load %arg7[%c0_6, %c0_7] : memref<128x128xf32, #tpu.memory_space<vmem>>, vector<128x128xf32>
    tpu.vector_store %arg7[%c0_6, %c0_7], %7 {strides = array<i32>} : memref<128x128xf32, #tpu.memory_space<vmem>>, vector<128x128xf32>,
    %c8_i32 = arith.constant 8 : i32
    %9 = arith.cmpi eq, %arg2, %c8_i32 : i32
    %10 = arith.extui %9 : i1 to i32
    %c0_i32_8 = arith.constant 0 : i32
    %11 = arith.cmpi ne, %10, %c0_i32_8 : i32
    scf.if %11 {
      %c0_9 = arith.constant 0 : index
      %c0_10 = arith.constant 0 : index
      %12 = vector.load %arg7[%c0_9, %c0_10] : memref<128x128xf32, #tpu.memory_space<vmem>>, vector<128x128xf32>
      %c0_11 = arith.constant 0 : index
      %c0_12 = arith.constant 0 : index
      %13 = vector.load %arg5[%c0_11, %c0_12] : memref<1x128xf32, #tpu.memory_space<vmem>>, vector<1x128xf32>
      %14 = vector.broadcast %13 : vector<1x128xf32> to vector<128x128xf32>
      %15 = arith.addf %12, %14 : vector<128x128xf32>
      %cst_13 = arith.constant 0.000000e+00 : f32
      %16 = vector.broadcast %cst_13 : f32 to vector<128x128xf32>
      %17 = arith.maximumf %15, %16 : vector<128x128xf32>
      %18 = arith.truncf %17 : vector<128x128xf32> to vector<128x128xbf16>
      %c0_14 = arith.constant 0 : index
      %c0_15 = arith.constant 0 : index
      %19 = vector.load %arg6[%c0_14, %c0_15] : memref<128x128xbf16, #tpu.memory_space<vmem>>, vector<128x128xbf16>
      tpu.vector_store %arg6[%c0_14, %c0_15], %18 {strides = array<i32>} : memref<128x128xbf16, #tpu.memory_space<vmem>>, vector<128x128xbf16>,
    } else {
    }
    return
  }
  func.func @transform_0(%arg0: i32, %arg1: i32, %arg2: i32) -> (i32, i32) {
    %c0_i32 = arith.constant 0 : i32
    return %arg0, %arg2 : i32, i32
  }
  func.func @transform_1(%arg0: i32, %arg1: i32, %arg2: i32) -> (i32, i32) {
    %c0_i32 = arith.constant 0 : i32
    return %arg2, %arg1 : i32, i32
  }
  func.func @transform_2(%arg0: i32, %arg1: i32, %arg2: i32) -> (i32, i32) {
    %c0_i32 = arith.constant 0 : i32
    %c0_i32_0 = arith.constant 0 : i32
    return %c0_i32, %arg1 : i32, i32
  }
  func.func @transform_3(%arg0: i32, %arg1: i32, %arg2: i32) -> (i32, i32) {
    %c0_i32 = arith.constant 0 : i32
    return %arg0, %arg1 : i32, i32
  }
}

module attributes {stable_mosaic.version = 11 : i64} {
  func.func @_mm_bias_relu_kernel(%arg0: i32, %arg1: i32, %arg2: i32, %arg3: memref<32x128xbf16, #tpu.memory_space<vmem>>, %arg4: memref<128x128xbf16, #tpu.memory_space<vmem>>, %arg5: memref<1x128xf32, #tpu.memory_space<vmem>>, %arg6: memref<32x128xbf16, #tpu.memory_space<vmem>>, %arg7: memref<32x128xf32, #tpu.memory_space<vmem>>) attributes {dimension_semantics = [#tpu.dimension_semantics<parallel>, #tpu.dimension_semantics<parallel>, #tpu.dimension_semantics<arbitrary>], iteration_bounds = array<i64: 1, 1, 9>, scalar_prefetch = 0 : i64, scratch_operands = 1 : i64, tpu.core_type = #tpu.core_type<tc>, window_params = [{transform_indices = @transform_0, window_bounds = array<i64: 32, 128>}, {transform_indices = @transform_1, window_bounds = array<i64: 128, 128>}, {transform_indices = @transform_2, window_bounds = array<i64: 1, 128>}, {transform_indices = @transform_3, window_bounds = array<i64: 32, 128>}]} {
    %c0_i32 = arith.constant 0 : i32
    %0 = arith.cmpi eq, %arg2, %c0_i32 : i32
    %1 = arith.extui %0 : i1 to i32
    %c0_i32_0 = arith.constant 0 : i32
    %2 = arith.cmpi ne, %1, %c0_i32_0 : i32
    scf.if %2 {
      %cst_9 = arith.constant 0.000000e+00 : f32
      %12 = vector.broadcast %cst_9 : f32 to vector<32x128xf32>
      %c0_10 = arith.constant 0 : index
      %c0_11 = arith.constant 0 : index
      %13 = vector.load %arg7[%c0_10, %c0_11] : memref<32x128xf32, #tpu.memory_space<vmem>>, vector<32x128xf32>
      tpu.vector_store %arg7[%c0_10, %c0_11], %12 {strides = array<i32>} : memref<32x128xf32, #tpu.memory_space<vmem>>, vector<32x128xf32>,
    } else {
    }
    %c0 = arith.constant 0 : index
    %c0_1 = arith.constant 0 : index
    %3 = vector.load %arg7[%c0, %c0_1] : memref<32x128xf32, #tpu.memory_space<vmem>>, vector<32x128xf32>
    %c0_2 = arith.constant 0 : index
    %c0_3 = arith.constant 0 : index
    %4 = vector.load %arg3[%c0_2, %c0_3] : memref<32x128xbf16, #tpu.memory_space<vmem>>, vector<32x128xbf16>
    %c0_4 = arith.constant 0 : index
    %c0_5 = arith.constant 0 : index
    %5 = vector.load %arg4[%c0_4, %c0_5] : memref<128x128xbf16, #tpu.memory_space<vmem>>, vector<128x128xbf16>
    %cst = arith.constant dense<0.000000e+00> : vector<32x128xf32>
    %6 = tpu.matmul %4, %5, %cst {dimension_numbers = #tpu.dot_dimension_numbers<[1], [0], [0], [1], [0, 0, 1, 1], [], []>} : vector<32x128xbf16>, vector<128x128xbf16>, vector<32x128xf32> -> vector<32x128xf32>
    %7 = arith.addf %3, %6 : vector<32x128xf32>
    %c0_6 = arith.constant 0 : index
    %c0_7 = arith.constant 0 : index
    %8 = vector.load %arg7[%c0_6, %c0_7] : memref<32x128xf32, #tpu.memory_space<vmem>>, vector<32x128xf32>
    tpu.vector_store %arg7[%c0_6, %c0_7], %7 {strides = array<i32>} : memref<32x128xf32, #tpu.memory_space<vmem>>, vector<32x128xf32>,
    %c8_i32 = arith.constant 8 : i32
    %9 = arith.cmpi eq, %arg2, %c8_i32 : i32
    %10 = arith.extui %9 : i1 to i32
    %c0_i32_8 = arith.constant 0 : i32
    %11 = arith.cmpi ne, %10, %c0_i32_8 : i32
    scf.if %11 {
      %c0_9 = arith.constant 0 : index
      %c0_10 = arith.constant 0 : index
      %12 = vector.load %arg7[%c0_9, %c0_10] : memref<32x128xf32, #tpu.memory_space<vmem>>, vector<32x128xf32>
      %c0_11 = arith.constant 0 : index
      %c0_12 = arith.constant 0 : index
      %13 = vector.load %arg5[%c0_11, %c0_12] : memref<1x128xf32, #tpu.memory_space<vmem>>, vector<1x128xf32>
      %14 = vector.broadcast %13 : vector<1x128xf32> to vector<32x128xf32>
      %15 = arith.addf %12, %14 : vector<32x128xf32>
      %cst_13 = arith.constant 0.000000e+00 : f32
      %16 = vector.broadcast %cst_13 : f32 to vector<32x128xf32>
      %17 = arith.maximumf %15, %16 : vector<32x128xf32>
      %18 = arith.truncf %17 : vector<32x128xf32> to vector<32x128xbf16>
      %c0_14 = arith.constant 0 : index
      %c0_15 = arith.constant 0 : index
      %19 = vector.load %arg6[%c0_14, %c0_15] : memref<32x128xbf16, #tpu.memory_space<vmem>>, vector<32x128xbf16>
      tpu.vector_store %arg6[%c0_14, %c0_15], %18 {strides = array<i32>} : memref<32x128xbf16, #tpu.memory_space<vmem>>, vector<32x128xbf16>,
    } else {
    }
    return
  }
  func.func @transform_0(%arg0: i32, %arg1: i32, %arg2: i32) -> (i32, i32) {
    %c0_i32 = arith.constant 0 : i32
    return %arg0, %arg2 : i32, i32
  }
  func.func @transform_1(%arg0: i32, %arg1: i32, %arg2: i32) -> (i32, i32) {
    %c0_i32 = arith.constant 0 : i32
    return %arg2, %arg1 : i32, i32
  }
  func.func @transform_2(%arg0: i32, %arg1: i32, %arg2: i32) -> (i32, i32) {
    %c0_i32 = arith.constant 0 : i32
    %c0_i32_0 = arith.constant 0 : i32
    return %c0_i32, %arg1 : i32, i32
  }
  func.func @transform_3(%arg0: i32, %arg1: i32, %arg2: i32) -> (i32, i32) {
    %c0_i32 = arith.constant 0 : i32
    return %arg0, %arg1 : i32, i32
  }
}

module attributes {stable_mosaic.version = 11 : i64} {
  func.func @_mm_bias_relu_kernel(%arg0: i32, %arg1: i32, %arg2: i32, %arg3: memref<8x128xbf16, #tpu.memory_space<vmem>>, %arg4: memref<128x128xbf16, #tpu.memory_space<vmem>>, %arg5: memref<1x128xf32, #tpu.memory_space<vmem>>, %arg6: memref<8x128xbf16, #tpu.memory_space<vmem>>, %arg7: memref<8x128xf32, #tpu.memory_space<vmem>>) attributes {dimension_semantics = [#tpu.dimension_semantics<parallel>, #tpu.dimension_semantics<parallel>, #tpu.dimension_semantics<arbitrary>], iteration_bounds = array<i64: 1, 1, 9>, scalar_prefetch = 0 : i64, scratch_operands = 1 : i64, tpu.core_type = #tpu.core_type<tc>, window_params = [{transform_indices = @transform_0, window_bounds = array<i64: 8, 128>}, {transform_indices = @transform_1, window_bounds = array<i64: 128, 128>}, {transform_indices = @transform_2, window_bounds = array<i64: 1, 128>}, {transform_indices = @transform_3, window_bounds = array<i64: 8, 128>}]} {
    %c0_i32 = arith.constant 0 : i32
    %0 = arith.cmpi eq, %arg2, %c0_i32 : i32
    %1 = arith.extui %0 : i1 to i32
    %c0_i32_0 = arith.constant 0 : i32
    %2 = arith.cmpi ne, %1, %c0_i32_0 : i32
    scf.if %2 {
      %cst_9 = arith.constant 0.000000e+00 : f32
      %12 = vector.broadcast %cst_9 : f32 to vector<8x128xf32>
      %c0_10 = arith.constant 0 : index
      %c0_11 = arith.constant 0 : index
      %13 = vector.load %arg7[%c0_10, %c0_11] : memref<8x128xf32, #tpu.memory_space<vmem>>, vector<8x128xf32>
      tpu.vector_store %arg7[%c0_10, %c0_11], %12 {strides = array<i32>} : memref<8x128xf32, #tpu.memory_space<vmem>>, vector<8x128xf32>,
    } else {
    }
    %c0 = arith.constant 0 : index
    %c0_1 = arith.constant 0 : index
    %3 = vector.load %arg7[%c0, %c0_1] : memref<8x128xf32, #tpu.memory_space<vmem>>, vector<8x128xf32>
    %c0_2 = arith.constant 0 : index
    %c0_3 = arith.constant 0 : index
    %4 = vector.load %arg3[%c0_2, %c0_3] : memref<8x128xbf16, #tpu.memory_space<vmem>>, vector<8x128xbf16>
    %c0_4 = arith.constant 0 : index
    %c0_5 = arith.constant 0 : index
    %5 = vector.load %arg4[%c0_4, %c0_5] : memref<128x128xbf16, #tpu.memory_space<vmem>>, vector<128x128xbf16>
    %cst = arith.constant dense<0.000000e+00> : vector<8x128xf32>
    %6 = tpu.matmul %4, %5, %cst {dimension_numbers = #tpu.dot_dimension_numbers<[1], [0], [0], [1], [0, 0, 1, 1], [], []>} : vector<8x128xbf16>, vector<128x128xbf16>, vector<8x128xf32> -> vector<8x128xf32>
    %7 = arith.addf %3, %6 : vector<8x128xf32>
    %c0_6 = arith.constant 0 : index
    %c0_7 = arith.constant 0 : index
    %8 = vector.load %arg7[%c0_6, %c0_7] : memref<8x128xf32, #tpu.memory_space<vmem>>, vector<8x128xf32>
    tpu.vector_store %arg7[%c0_6, %c0_7], %7 {strides = array<i32>} : memref<8x128xf32, #tpu.memory_space<vmem>>, vector<8x128xf32>,
    %c8_i32 = arith.constant 8 : i32
    %9 = arith.cmpi eq, %arg2, %c8_i32 : i32
    %10 = arith.extui %9 : i1 to i32
    %c0_i32_8 = arith.constant 0 : i32
    %11 = arith.cmpi ne, %10, %c0_i32_8 : i32
    scf.if %11 {
      %c0_9 = arith.constant 0 : index
      %c0_10 = arith.constant 0 : index
      %12 = vector.load %arg7[%c0_9, %c0_10] : memref<8x128xf32, #tpu.memory_space<vmem>>, vector<8x128xf32>
      %c0_11 = arith.constant 0 : index
      %c0_12 = arith.constant 0 : index
      %13 = vector.load %arg5[%c0_11, %c0_12] : memref<1x128xf32, #tpu.memory_space<vmem>>, vector<1x128xf32>
      %14 = vector.broadcast %13 : vector<1x128xf32> to vector<8x128xf32>
      %15 = arith.addf %12, %14 : vector<8x128xf32>
      %cst_13 = arith.constant 0.000000e+00 : f32
      %16 = vector.broadcast %cst_13 : f32 to vector<8x128xf32>
      %17 = arith.maximumf %15, %16 : vector<8x128xf32>
      %18 = arith.truncf %17 : vector<8x128xf32> to vector<8x128xbf16>
      %c0_14 = arith.constant 0 : index
      %c0_15 = arith.constant 0 : index
      %19 = vector.load %arg6[%c0_14, %c0_15] : memref<8x128xbf16, #tpu.memory_space<vmem>>, vector<8x128xbf16>
      tpu.vector_store %arg6[%c0_14, %c0_15], %18 {strides = array<i32>} : memref<8x128xbf16, #tpu.memory_space<vmem>>, vector<8x128xbf16>,
    } else {
    }
    return
  }
  func.func @transform_0(%arg0: i32, %arg1: i32, %arg2: i32) -> (i32, i32) {
    %c0_i32 = arith.constant 0 : i32
    return %arg0, %arg2 : i32, i32
  }
  func.func @transform_1(%arg0: i32, %arg1: i32, %arg2: i32) -> (i32, i32) {
    %c0_i32 = arith.constant 0 : i32
    return %arg2, %arg1 : i32, i32
  }
  func.func @transform_2(%arg0: i32, %arg1: i32, %arg2: i32) -> (i32, i32) {
    %c0_i32 = arith.constant 0 : i32
    %c0_i32_0 = arith.constant 0 : i32
    return %c0_i32, %arg1 : i32, i32
  }
  func.func @transform_3(%arg0: i32, %arg1: i32, %arg2: i32) -> (i32, i32) {
    %c0_i32 = arith.constant 0 : i32
    return %arg0, %arg1 : i32, i32
  }
}

module attributes {stable_mosaic.version = 11 : i64} {
  func.func @_mm_bias_relu_pool_kernel(%arg0: i32, %arg1: i32, %arg2: i32, %arg3: memref<1x4x128xbf16, #tpu.memory_space<vmem>>, %arg4: memref<128x256xbf16, #tpu.memory_space<vmem>>, %arg5: memref<1x256xf32, #tpu.memory_space<vmem>>, %arg6: memref<1x1x256xf32, #tpu.memory_space<vmem>>, %arg7: memref<4x256xf32, #tpu.memory_space<vmem>>) attributes {dimension_semantics = [#tpu.dimension_semantics<parallel>, #tpu.dimension_semantics<parallel>, #tpu.dimension_semantics<arbitrary>], iteration_bounds = array<i64: 2, 1, 9>, scalar_prefetch = 0 : i64, scratch_operands = 1 : i64, tpu.core_type = #tpu.core_type<tc>, window_params = [{transform_indices = @transform_0, window_bounds = array<i64: 1, 4, 128>}, {transform_indices = @transform_1, window_bounds = array<i64: 128, 256>}, {transform_indices = @transform_2, window_bounds = array<i64: 1, 256>}, {transform_indices = @transform_3, window_bounds = array<i64: 1, 1, 256>}]} {
    %c0_i32 = arith.constant 0 : i32
    %0 = arith.cmpi eq, %arg2, %c0_i32 : i32
    %1 = arith.extui %0 : i1 to i32
    %c0_i32_0 = arith.constant 0 : i32
    %2 = arith.cmpi ne, %1, %c0_i32_0 : i32
    scf.if %2 {
      %cst_10 = arith.constant 0.000000e+00 : f32
      %13 = vector.broadcast %cst_10 : f32 to vector<4x256xf32>
      %c0_11 = arith.constant 0 : index
      %c0_12 = arith.constant 0 : index
      %14 = vector.load %arg7[%c0_11, %c0_12] : memref<4x256xf32, #tpu.memory_space<vmem>>, vector<4x256xf32>
      tpu.vector_store %arg7[%c0_11, %c0_12], %13 {strides = array<i32>} : memref<4x256xf32, #tpu.memory_space<vmem>>, vector<4x256xf32>,
    } else {
    }
    %c0 = arith.constant 0 : index
    %c0_1 = arith.constant 0 : index
    %c0_2 = arith.constant 0 : index
    %3 = vector.load %arg3[%c0, %c0_1, %c0_2] : memref<1x4x128xbf16, #tpu.memory_space<vmem>>, vector<1x4x128xbf16>
    %4 = vector.shape_cast %3 : vector<1x4x128xbf16> to vector<4x128xbf16>
    %c0_3 = arith.constant 0 : index
    %c0_4 = arith.constant 0 : index
    %5 = vector.load %arg7[%c0_3, %c0_4] : memref<4x256xf32, #tpu.memory_space<vmem>>, vector<4x256xf32>
    %c0_5 = arith.constant 0 : index
    %c0_6 = arith.constant 0 : index
    %6 = vector.load %arg4[%c0_5, %c0_6] : memref<128x256xbf16, #tpu.memory_space<vmem>>, vector<128x256xbf16>
    %cst = arith.constant dense<0.000000e+00> : vector<4x256xf32>
    %7 = tpu.matmul %4, %6, %cst {dimension_numbers = #tpu.dot_dimension_numbers<[1], [0], [0], [1], [0, 0, 1, 1], [], []>} : vector<4x128xbf16>, vector<128x256xbf16>, vector<4x256xf32> -> vector<4x256xf32>
    %8 = arith.addf %5, %7 : vector<4x256xf32>
    %c0_7 = arith.constant 0 : index
    %c0_8 = arith.constant 0 : index
    %9 = vector.load %arg7[%c0_7, %c0_8] : memref<4x256xf32, #tpu.memory_space<vmem>>, vector<4x256xf32>
    tpu.vector_store %arg7[%c0_7, %c0_8], %8 {strides = array<i32>} : memref<4x256xf32, #tpu.memory_space<vmem>>, vector<4x256xf32>,
    %c8_i32 = arith.constant 8 : i32
    %10 = arith.cmpi eq, %arg2, %c8_i32 : i32
    %11 = arith.extui %10 : i1 to i32
    %c0_i32_9 = arith.constant 0 : i32
    %12 = arith.cmpi ne, %11, %c0_i32_9 : i32
    scf.if %12 {
      %c0_10 = arith.constant 0 : index
      %c0_11 = arith.constant 0 : index
      %13 = vector.load %arg7[%c0_10, %c0_11] : memref<4x256xf32, #tpu.memory_space<vmem>>, vector<4x256xf32>
      %c0_12 = arith.constant 0 : index
      %c0_13 = arith.constant 0 : index
      %14 = vector.load %arg5[%c0_12, %c0_13] : memref<1x256xf32, #tpu.memory_space<vmem>>, vector<1x256xf32>
      %15 = vector.broadcast %14 : vector<1x256xf32> to vector<4x256xf32>
      %16 = arith.addf %13, %15 : vector<4x256xf32>
      %cst_14 = arith.constant 0.000000e+00 : f32
      %17 = vector.broadcast %cst_14 : f32 to vector<4x256xf32>
      %18 = arith.maximumf %16, %17 : vector<4x256xf32>
      %cst_15 = arith.constant dense<0.000000e+00> : vector<256xf32>
      %19 = vector.multi_reduction <add>, %18, %cst_15 [0] : vector<4x256xf32> to vector<256xf32>
      %20 = vector.shape_cast %19 : vector<256xf32> to vector<1x256xf32>
      %cst_16 = arith.constant 4.000000e+00 : f32
      %21 = vector.broadcast %cst_16 : f32 to vector<1x256xf32>
      %22 = arith.divf %20, %21 : vector<1x256xf32>
      %23 = vector.shape_cast %22 : vector<1x256xf32> to vector<1x1x256xf32>
      %c0_17 = arith.constant 0 : index
      %c0_18 = arith.constant 0 : index
      %c0_19 = arith.constant 0 : index
      %24 = vector.load %arg6[%c0_17, %c0_18, %c0_19] : memref<1x1x256xf32, #tpu.memory_space<vmem>>, vector<1x1x256xf32>
      tpu.vector_store %arg6[%c0_17, %c0_18, %c0_19], %23 {strides = array<i32>} : memref<1x1x256xf32, #tpu.memory_space<vmem>>, vector<1x1x256xf32>,
    } else {
    }
    return
  }
  func.func @transform_0(%arg0: i32, %arg1: i32, %arg2: i32) -> (i32, i32, i32) {
    %c0_i32 = arith.constant 0 : i32
    %c0_i32_0 = arith.constant 0 : i32
    return %arg0, %c0_i32, %arg2 : i32, i32, i32
  }
  func.func @transform_1(%arg0: i32, %arg1: i32, %arg2: i32) -> (i32, i32) {
    %c0_i32 = arith.constant 0 : i32
    return %arg2, %arg1 : i32, i32
  }
  func.func @transform_2(%arg0: i32, %arg1: i32, %arg2: i32) -> (i32, i32) {
    %c0_i32 = arith.constant 0 : i32
    %c0_i32_0 = arith.constant 0 : i32
    return %c0_i32, %arg1 : i32, i32
  }
  func.func @transform_3(%arg0: i32, %arg1: i32, %arg2: i32) -> (i32, i32, i32) {
    %c0_i32 = arith.constant 0 : i32
    %c0_i32_0 = arith.constant 0 : i32
    return %arg0, %c0_i32, %arg1 : i32, i32, i32
  }
}

</mosaic_0001>

<llo_original>
// kernel: _lambda_.6
$region0: #{_lambda_.6}
  #allocation0 [shape = 'u32[]', space=smem, size = 0x4, offset = 0x4, fixed_abs, tag = 'smem constant byte address 0x4 - core index']
  #allocation1 [shape = 'u32[144,128]{1,0:T(1,128)}', space=vmem, size = 0x12000, scoped, tag = 'internal scratch']
  #allocation2 [shape = 'f32[128,128]{1,0:T(8,128)}', space=vmem, size = 0x10000, scoped, tag = 'scratch operand']
  %s0 = inlined_call_operand.vmem [shape: bf16[128,1152], index: 0, kind: input, shape index: {}]
  %s1 = inlined_call_operand.vmem [shape: bf16[1152,128], index: 1, kind: input, shape index: {}]
  %s2 = inlined_call_operand.vmem [shape: f32[1,128], index: 2, kind: input, shape index: {}]
  %s3 = inlined_call_operand.vmem [shape: bf16[128,128], index: 3, kind: output, shape index: {}]
  %s4 = sld [smem:[#allocation0]]
  $region94: #{_lambda_.6} parent=0
    _
  %s6 = ssub.s32 1, %s4
  %s7 = scalar_select 0, %s6, %s4
  $region1: #{_lambda_.6} parent=0
    #allocation3 [shape = 'u8[65536]{0}', space=vmem, size = 0x10000, scoped, tag = 'input window, operand 0']
    loop: start=0, step=1, limit=11
    $region2: #{_lambda_.6} parent=1 // loop_pre_header
      _
    $region3: #{_lambda_.6} parent=1 // loop_header
      %s9 = sphi 0, %s13
      %p10 = scmp.ge.s32.totalorder %s9, 11
      %s16 = sphi 0, %s35
      %s17 = sphi 0, %s31
      %s18 = sphi 0, %s27
      %s19 = sphi 0, %s16
      %s20 = sphi 0, %s17
      %s21 = sphi 0, %s18
      %s22 = sphi 0, %s19
      %s23 = sphi 0, %s20
      %s24 = sphi 0, %s21
      %s40 = sphi 0, %s42
      %s43 = sphi 0, %s40
      %s44 = sphi 0, %s43
      %s60 = sphi 0, %s44
      %s68 = sphi 0, %s70
      %s71 = sphi 0, %s68
      %s72 = sphi 0, %s71
      %s88 = sphi 0, %s72
      %s94 = sphi 0, %s96
      %s97 = sphi 0, %s94
      %s98 = sphi 0, %s97
      %s114 = sphi 0, %s98
      %s122 = sphi 0, %s124
      %s125 = sphi 0, %s122
      %s126 = sphi 0, %s125
      %s142 = sphi 0, %s126
    $region4: #{_lambda_.6} parent=1 // loop_header_branch
      %12 = sbr.rel (%p10) target = $region8
    $region5: #{_lambda_.6} parent=1 // loop_body
      %s14 = ssub.s32 %s9, 1
      %s15 = ssub.s32 %s9, 2
      %s25 = sadd.s32 1, %s18
      %p26 = scmp.ge.s32.totalorder %s25, 9
      %s27 = scalar_select %p26, 0, %s25
      %s28 = sadd.s32 1, %s17
      %s29 = scalar_select %p26, %s28, %s17
      %p30 = scmp.ge.s32.totalorder %s29, 1
      %s31 = scalar_select %p30, 0, %s29
      %s32 = sadd.s32 1, %s16
      %s33 = scalar_select %p30, %s32, %s16
      %p34 = scmp.ge.s32.totalorder %s33, 1
      %s35 = scalar_select %p34, 0, %s33
      %s36 = ssub.s32 %s16, %s35
      %s37 = ssub.s32 %s18, %s27
      %s38 = sor.u32 %s36, %s37
      %p39 = scmp.eq.s32.totalorder %s38, 0
      %s41 = sadd.s32 %s40, 1
      %s42 = scalar_select %p39, %s40, %s41
      %p45 = pneg %p39
      %p46 = scmp.eq.s32.totalorder %s9, 8
      %p47 = por %p45, %p46
      %p48 = scmp.ne.s32.totalorder %s40, %s43
      %p49 = scmp.eq.s32.totalorder %s9, 0
      %p50 = por %p48, %p49
      %p51 = scmp.ne.s32.totalorder %s40, %s43
      %p52 = scmp.eq.s32.totalorder %s14, 8
      %p53 = por %p51, %p52
      %p54 = scmp.ne.s32.totalorder %s43, %s44
      %p55 = scmp.eq.s32.totalorder %s14, 0
      %p56 = por %p54, %p55
      %p57 = scmp.ne.s32.totalorder %s43, %s44
      %p58 = scmp.eq.s32.totalorder %s15, 8
      %p59 = por %p57, %p58
      %p61 = scmp.ne.s32.totalorder %s44, %s60
      %p62 = scmp.eq.s32.totalorder %s15, 0
      %p63 = por %p61, %p62
      %s64 = ssub.s32 %s18, %s27
      %s65 = ssub.s32 %s17, %s31
      %s66 = sor.u32 %s64, %s65
      %p67 = scmp.eq.s32.totalorder %s66, 0
      %s69 = sadd.s32 %s68, 1
      %s70 = scalar_select %p67, %s68, %s69
      %p73 = pneg %p67
      %p74 = scmp.eq.s32.totalorder %s9, 8
      %p75 = por %p73, %p74
      %p76 = scmp.ne.s32.totalorder %s68, %s71
      %p77 = scmp.eq.s32.totalorder %s9, 0
      %p78 = por %p76, %p77
      %p79 = scmp.ne.s32.totalorder %s68, %s71
      %p80 = scmp.eq.s32.totalorder %s14, 8
      %p81 = por %p79, %p80
      %p82 = scmp.ne.s32.totalorder %s71, %s72
      %p83 = scmp.eq.s32.totalorder %s14, 0
      %p84 = por %p82, %p83
      %p85 = scmp.ne.s32.totalorder %s71, %s72
      %p86 = scmp.eq.s32.totalorder %s15, 8
      %p87 = por %p85, %p86
      %p89 = scmp.ne.s32.totalorder %s72, %s88
      %p90 = scmp.eq.s32.totalorder %s15, 0
      %p91 = por %p89, %p90
      %s92 = ssub.s32 %s17, %s31
      %p93 = scmp.eq.s32.totalorder %s92, 0
      %s95 = sadd.s32 %s94, 1
      %s96 = scalar_select %p93, %s94, %s95
      %p99 = pneg %p93
      %p100 = scmp.eq.s32.totalorder %s9, 8
      %p101 = por %p99, %p100
      %p102 = scmp.ne.s32.totalorder %s94, %s97
      %p103 = scmp.eq.s32.totalorder %s9, 0
      %p104 = por %p102, %p103
      %p105 = scmp.ne.s32.totalorder %s94, %s97
      %p106 = scmp.eq.s32.totalorder %s14, 8
      %p107 = por %p105, %p106
      %p108 = scmp.ne.s32.totalorder %s97, %s98
      %p109 = scmp.eq.s32.totalorder %s14, 0
      %p110 = por %p108, %p109
      %p111 = scmp.ne.s32.totalorder %s97, %s98
      %p112 = scmp.eq.s32.totalorder %s15, 8
      %p113 = por %p111, %p112
      %p115 = scmp.ne.s32.totalorder %s98, %s114
      %p116 = scmp.eq.s32.totalorder %s15, 0
      %p117 = por %p115, %p116
      %s118 = ssub.s32 %s16, %s35
      %s119 = ssub.s32 %s17, %s31
      %s120 = sor.u32 %s118, %s119
      %p121 = scmp.eq.s32.totalorder %s120, 0
      %s123 = sadd.s32 %s122, 1
      %s124 = scalar_select %p121, %s122, %s123
      %p127 = pneg %p121
      %p128 = scmp.eq.s32.totalorder %s9, 8
      %p129 = por %p127, %p128
      %p130 = scmp.ne.s32.totalorder %s122, %s125
      %p131 = scmp.eq.s32.totalorder %s9, 0
      %p132 = por %p130, %p131
      %p133 = scmp.ne.s32.totalorder %s122, %s125
      %p134 = scmp.eq.s32.totalorder %s14, 8
      %p135 = por %p133, %p134
      %p136 = scmp.ne.s32.totalorder %s125, %s126
      %p137 = scmp.eq.s32.totalorder %s14, 0
      %p138 = por %p136, %p137
      %p139 = scmp.ne.s32.totalorder %s125, %s126
      %p140 = scmp.eq.s32.totalorder %s15, 8
      %p141 = por %p139, %p140
      %p143 = scmp.ne.s32.totalorder %s126, %s142
      %p144 = scmp.eq.s32.totalorder %s15, 0
      %p145 = por %p143, %p144
      %p146 = scmp.le.s32.totalorder 1, %s9
      %p147 = scmp.lt.s32.totalorder %s9, 10
      %p148 = pnand %p146, %p147
      %p149 = pneg %p148
      // Predicated region
      $region9: #{_lambda_.6} parent=5 // pred_check
        _
      $region10: #{_lambda_.6} parent=5 // pred_check_branch
        %151 = sbr.rel (%p148) target = $region12
      $region11: #{_lambda_.6} parent=5 // pred_region
        %s152 = ssub.s32 %s9, 1
        // Predicated region
        $region13: #{_lambda_.6} parent=11 // pred_check
          %p153 = pneg %p110
        $region14: #{_lambda_.6} parent=11 // pred_check_branch
          %155 = sbr.rel (%p153) target = $region16
        $region15: #{_lambda_.6} parent=11 // pred_region
          %p156 = scmp.lt.s32.totalorder %s20, 0
          %s157 = scalar_select %p156, %s20, 0
          %s158 = scalar_lea.vmem %s2, %s157
        $region16: #{_lambda_.6} parent=11 // pred_fallthru
          _
      $region12: #{_lambda_.6} parent=5 // pred_fallthru
        _
      %p159 = scmp.lt.s32.totalorder %s9, 9
      // Predicated region
      $region17: #{_lambda_.6} parent=5 // pred_check
        %p160 = pneg %p159
      $region18: #{_lambda_.6} parent=5 // pred_check_branch
        %162 = sbr.rel (%p160) target = $region20
      $region19: #{_lambda_.6} parent=5 // pred_region
        // Predicated region
        $region21: #{_lambda_.6} parent=19 // pred_check
          %p163 = pneg %p50
        $region22: #{_lambda_.6} parent=19 // pred_check_branch
          %165 = sbr.rel (%p163) target = $region24
        $region23: #{_lambda_.6} parent=19 // pred_region
          %s166 = sand.u32 %s40, 1
          %s167 = sand.u32 %s40, 1
          %s168 = smul.addr %s167, 64
          %s169 = scalar_lea.vmem [#allocation3], %s168
          %s170 = smul.u32 16, %s16
          %s171 = smul.addr %s170, 9
          %s172 = sadd.s32 %s18, %s171
          %s173 = smul.addr %s172, 4
          %s174 = scalar_lea.vmem %s0, %s173
          // Predicated region
          $region25: #{_lambda_.6} parent=23 // pred_check
            _
          $region26: #{_lambda_.6} parent=23 // pred_check_branch
            %176 = sbr.rel (0) target = $region28
          $region27: #{_lambda_.6} parent=23 // pred_region
            // Predicated region
            $region29: #{_lambda_.6} parent=27 // pred_check
              _
            $region30: #{_lambda_.6} parent=27 // pred_check_branch
              %178 = sbr.rel target = $region32
            $region31: #{_lambda_.6} parent=27 // pred_region
              // Predicated region
              $region44: #{_lambda_.6} parent=31 // pred_check
                _
              $region45: #{_lambda_.6} parent=31 // pred_check_branch
                %223 = sbr.rel (0) target = $region47
              $region46: #{_lambda_.6} parent=31 // pred_region
                loop: start=0, step=1, limit=1
                $region48: #{_lambda_.6} parent=46 // loop_pre_header
                  _
                $region49: #{_lambda_.6} parent=46 // loop_header
                  %s225 = sphi 0, %s229
                  %p226 = scmp.ge.s32.totalorder %s225, 1
                  %s230 = sphi %s174, %s174
                  %s231 = sphi %s169, %s169
                $region50: #{_lambda_.6} parent=46 // loop_header_branch
                  %228 = sbr.rel (%p226) target = $region54
                $region51: #{_lambda_.6} parent=46 // loop_body
                  _
                $region52: #{_lambda_.6} parent=46 // loop_footer
                  %s229 = sadd.s32 1, %s225
                $region53: #{_lambda_.6} parent=46 // loop_footer_branch
                  %224 = sbr.rel target = $region49
                $region54: #{_lambda_.6} parent=46 // loop_exit
                  _
                loop: start=0, step=1, limit=1
                $region55: #{_lambda_.6} parent=46 // loop_pre_header
                  _
                $region56: #{_lambda_.6} parent=46 // loop_header
                  %s234 = sphi 0, %s238
                  %p235 = scmp.ge.s32.totalorder %s234, 1
                  %s239 = sphi %s174, %s174
                  %s240 = sphi %s169, %s169
                $region57: #{_lambda_.6} parent=46 // loop_header_branch
                  %237 = sbr.rel (%p235) target = $region61
                $region58: #{_lambda_.6} parent=46 // loop_body
                  %v241 = vld [vmem:[%s239] sm:$0xf]
                  %242 = vst [vmem:[%s240] sm:$0xf] %v241
                  %v243 = vld [vmem:[%s239 + $0x24] sm:$0xf]
                  %244 = vst [vmem:[%s240 + $0x4] sm:$0xf] %v243
                  %v245 = vld [vmem:[%s239 + $0x48] sm:$0xf]
                  %246 = vst [vmem:[%s240 + $0x8] sm:$0xf] %v245
                  %v247 = vld [vmem:[%s239 + $0x6c] sm:$0xf]
                  %248 = vst [vmem:[%s240 + $0xc] sm:$0xf] %v247
                  %v249 = vld [vmem:[%s239 + $0x90] sm:$0xf]
                  %250 = vst [vmem:[%s240 + $0x10] sm:$0xf] %v249
                  %v251 = vld [vmem:[%s239 + $0xb4] sm:$0xf]
                  %252 = vst [vmem:[%s240 + $0x14] sm:$0xf] %v251
                  %v253 = vld [vmem:[%s239 + $0xd8] sm:$0xf]
                  %254 = vst [vmem:[%s240 + $0x18] sm:$0xf] %v253
                  %v255 = vld [vmem:[%s239 + $0xfc] sm:$0xf]
                  %256 = vst [vmem:[%s240 + $0x1c] sm:$0xf] %v255
                  %v257 = vld [vmem:[%s239 + $0x120] sm:$0xf]
                  %258 = vst [vmem:[%s240 + $0x20] sm:$0xf] %v257
                  %v259 = vld [vmem:[%s239 + $0x144] sm:$0xf]
                  %260 = vst [vmem:[%s240 + $0x24] sm:$0xf] %v259
                  %v261 = vld [vmem:[%s239 + $0x168] sm:$0xf]
                  %262 = vst [vmem:[%s240 + $0x28] sm:$0xf] %v261
                  %v263 = vld [vmem:[%s239 + $0x18c] sm:$0xf]
                  %264 = vst [vmem:[%s240 + $0x2c] sm:$0xf] %v263
                  %v265 = vld [vmem:[%s239 + $0x1b0] sm:$0xf]
                  %266 = vst [vmem:[%s240 + $0x30] sm:$0xf] %v265
                  %v267 = vld [vmem:[%s239 + $0x1d4] sm:$0xf]
                  %268 = vst [vmem:[%s240 + $0x34] sm:$0xf] %v267
                  %v269 = vld [vmem:[%s239 + $0x1f8] sm:$0xf]
                  %270 = vst [vmem:[%s240 + $0x38] sm:$0xf] %v269
                  %v271 = vld [vmem:[%s239 + $0x21c] sm:$0xf]
                  %272 = vst [vmem:[%s240 + $0x3c] sm:$0xf] %v271
                $region59: #{_lambda_.6} parent=46 // loop_footer
                  %s238 = sadd.s32 1, %s234
                $region60: #{_lambda_.6} parent=46 // loop_footer_branch
                  %233 = sbr.rel target = $region56
                $region61: #{_lambda_.6} parent=46 // loop_exit
                  _
              $region47: #{_lambda_.6} parent=31 // pred_fallthru
                _
            $region32: #{_lambda_.6} parent=27 // pred_fallthru
              _
            // Predicated region
            $region33: #{_lambda_.6} parent=27 // pred_check
              _
            $region34: #{_lambda_.6} parent=27 // pred_check_branch
              %180 = sbr.rel (0) target = $region36
            $region35: #{_lambda_.6} parent=27 // pred_region
              loop: start=0, step=1, limit=1
              $region37: #{_lambda_.6} parent=35 // loop_pre_header
                _
              $region38: #{_lambda_.6} parent=35 // loop_header
                %s183 = sphi 0, %s187
                %p184 = scmp.ge.s32.totalorder %s183, 1
                %s188 = sphi %s174, %s174
                %s189 = sphi %s169, %s169
              $region39: #{_lambda_.6} parent=35 // loop_header_branch
                %186 = sbr.rel (%p184) target = $region43
              $region40: #{_lambda_.6} parent=35 // loop_body
                %v190 = vld [vmem:[%s188] sm:$0xf]
                %191 = vst [vmem:[%s189] sm:$0xf] %v190
                %v192 = vld [vmem:[%s188 + $0x24] sm:$0xf]
                %193 = vst [vmem:[%s189 + $0x4] sm:$0xf] %v192
                %v194 = vld [vmem:[%s188 + $0x48] sm:$0xf]
                %195 = vst [vmem:[%s189 + $0x8] sm:$0xf] %v194
                %v196 = vld [vmem:[%s188 + $0x6c] sm:$0xf]
                %197 = vst [vmem:[%s189 + $0xc] sm:$0xf] %v196
                %v198 = vld [vmem:[%s188 + $0x90] sm:$0xf]
                %199 = vst [vmem:[%s189 + $0x10] sm:$0xf] %v198
                %v200 = vld [vmem:[%s188 + $0xb4] sm:$0xf]
                %201 = vst [vmem:[%s189 + $0x14] sm:$0xf] %v200
                %v202 = vld [vmem:[%s188 + $0xd8] sm:$0xf]
                %203 = vst [vmem:[%s189 + $0x18] sm:$0xf] %v202
                %v204 = vld [vmem:[%s188 + $0xfc] sm:$0xf]
                %205 = vst [vmem:[%s189 + $0x1c] sm:$0xf] %v204
                %v206 = vld [vmem:[%s188 + $0x120] sm:$0xf]
                %207 = vst [vmem:[%s189 + $0x20] sm:$0xf] %v206
                %v208 = vld [vmem:[%s188 + $0x144] sm:$0xf]
                %209 = vst [vmem:[%s189 + $0x24] sm:$0xf] %v208
                %v210 = vld [vmem:[%s188 + $0x168] sm:$0xf]
                %211 = vst [vmem:[%s189 + $0x28] sm:$0xf] %v210
                %v212 = vld [vmem:[%s188 + $0x18c] sm:$0xf]
                %213 = vst [vmem:[%s189 + $0x2c] sm:$0xf] %v212
                %v214 = vld [vmem:[%s188 + $0x1b0] sm:$0xf]
                %215 = vst [vmem:[%s189 + $0x30] sm:$0xf] %v214
                %v216 = vld [vmem:[%s188 + $0x1d4] sm:$0xf]
                %217 = vst [vmem:[%s189 + $0x34] sm:$0xf] %v216
                %v218 = vld [vmem:[%s188 + $0x1f8] sm:$0xf]
                %219 = vst [vmem:[%s189 + $0x38] sm:$0xf] %v218
                %v220 = vld [vmem:[%s188 + $0x21c] sm:$0xf]
                %221 = vst [vmem:[%s189 + $0x3c] sm:$0xf] %v220
              $region41: #{_lambda_.6} parent=35 // loop_footer
                %s187 = sadd.s32 1, %s183
              $region42: #{_lambda_.6} parent=35 // loop_footer_branch
                %182 = sbr.rel target = $region38
              $region43: #{_lambda_.6} parent=35 // loop_exit
                _
            $region36: #{_lambda_.6} parent=27 // pred_fallthru
              _
          $region28: #{_lambda_.6} parent=23 // pred_fallthru
            _
          %273 = vnop
        $region24: #{_lambda_.6} parent=19 // pred_fallthru
          _
        // Predicated region
        $region62: #{_lambda_.6} parent=19 // pred_check
          %p274 = pneg %p78
        $region63: #{_lambda_.6} parent=19 // pred_check_branch
          %276 = sbr.rel (%p274) target = $region65
        $region64: #{_lambda_.6} parent=19 // pred_region
          %s277 = smul.u32 16, %s18
          %p278 = scmp.lt.s32.totalorder %s277, 143
          %s279 = scalar_select %p278, %s277, 143
          %p280 = scmp.lt.s32.totalorder %s17, 0
          %s281 = scalar_select %p280, %s17, 0
          %s282 = sadd.s32 %s281, %s279
          %s283 = smul.addr %s282, 4
          %s284 = scalar_lea.vmem %s1, %s283
          %s285 = smul.u32 16, %s18
        $region65: #{_lambda_.6} parent=19 // pred_fallthru
          _
      $region20: #{_lambda_.6} parent=5 // pred_fallthru
        _
      %p286 = scmp.le.s32.totalorder 1, %s9
      %p287 = scmp.lt.s32.totalorder %s9, 10
      %p288 = pnand %p286, %p287
      %p289 = pneg %p288
      // Predicated region
      $region66: #{_lambda_.6} parent=5 // pred_check
        _
      $region67: #{_lambda_.6} parent=5 // pred_check_branch
        %291 = sbr.rel (%p288) target = $region69
      $region68: #{_lambda_.6} parent=5 // pred_region
        %s292 = ssub.s32 %s9, 1
        %s293 = sand.u32 %s43, 1
        %s294 = sand.u32 %s43, 1
        %s295 = smul.addr %s294, 64
        %s296 = scalar_lea.vmem [#allocation3], %s295
        // Predicated region
        $region70: #{_lambda_.6} parent=68 // pred_check
          %p297 = pneg %p56
        $region71: #{_lambda_.6} parent=68 // pred_check_branch
          %299 = sbr.rel (%p297) target = $region73
        $region72: #{_lambda_.6} parent=68 // pred_region
          _
        $region73: #{_lambda_.6} parent=68 // pred_fallthru
          _
        %s300 = sand.u32 %s43, 1
        %s301 = sand.u32 %s43, 1
        %s302 = smul.addr %s301, 64
        %s303 = scalar_lea.vmem [#allocation3], %s302
        %p304 = pneg %p56
        %p305 = pneg %p53
        %s306 = smul.u32 16, %s21
        %p307 = scmp.lt.s32.totalorder %s306, 143
        %s308 = scalar_select %p307, %s306, 143
        %p309 = scmp.lt.s32.totalorder %s20, 0
        %s310 = scalar_select %p309, %s20, 0
        %s311 = sadd.s32 %s310, %s308
        %s312 = smul.addr %s311, 4
        %s313 = scalar_lea.vmem %s1, %s312
        %p314 = pneg %p84
        %p315 = pneg %p81
        %p316 = scmp.lt.s32.totalorder %s20, 0
        %s317 = scalar_select %p316, %s20, 0
        %s318 = scalar_lea.vmem %s2, %s317
        %p319 = pneg %p110
        %p320 = pneg %p107
        %p321 = pneg %p138
        %p322 = pneg %p135
        %s323 = smul.u32 16, %s19
        %p324 = scmp.lt.s32.totalorder %s323, 15
        %s325 = scalar_select %p324, %s323, 15
        %p326 = scmp.lt.s32.totalorder %s20, 0
        %s327 = scalar_select %p326, %s20, 0
        %s328 = sadd.s32 %s327, %s325
        %s329 = smul.addr %s328, 4
        %s330 = scalar_lea.vmem %s3, %s329
        %s331 = smul.u32 16, %s19
        %s332 = smul.u32 16, %s21
        %p333 = scmp.lt.s32.totalorder %s332, 143
        %s334 = scalar_select %p333, %s332, 143
        %p335 = scmp.lt.s32.totalorder %s20, 0
        %s336 = scalar_select %p335, %s20, 0
        %s337 = sadd.s32 %s336, %s334
        %s338 = smul.addr %s337, 4
        %s339 = scalar_lea.vmem %s1, %s338
        %s340 = smul.u32 16, %s21
        %p341 = scmp.lt.s32.totalorder %s20, 0
        %s342 = scalar_select %p341, %s20, 0
        %s343 = scalar_lea.vmem %s2, %s342
        %s344 = smul.u32 16, %s19
        %p345 = scmp.lt.s32.totalorder %s344, 15
        %s346 = scalar_select %p345, %s344, 15
        %p347 = scmp.lt.s32.totalorder %s20, 0
        %s348 = scalar_select %p347, %s20, 0
        %s349 = sadd.s32 %s348, %s346
        %s350 = smul.addr %s349, 4
        %s351 = scalar_lea.vmem %s3, %s350
        %s352 = smul.u32 16, %s19
        %p354 = scmp.eq.s32.totalorder %s21, 0
        // Predicated region
        $region74: #{_lambda_.6} parent=68 // pred_check
          %p355 = pneg %p354
        $region75: #{_lambda_.6} parent=68 // pred_check_branch
          %357 = sbr.rel (%p355) target = $region77
        $region76: #{_lambda_.6} parent=68 // pred_region
          %358 = vst [vmem:[#allocation2] sm:$0xff] 0.0
          %359 = vst [vmem:[#allocation2 + $0x8] sm:$0xff] 0.0
          %360 = vst [vmem:[#allocation2 + $0x10] sm:$0xff] 0.0
          %361 = vst [vmem:[#allocation2 + $0x18] sm:$0xff] 0.0
          %362 = vst [vmem:[#allocation2 + $0x20] sm:$0xff] 0.0
          %363 = vst [vmem:[#allocation2 + $0x28] sm:$0xff] 0.0
          %364 = vst [vmem:[#allocation2 + $0x30] sm:$0xff] 0.0
          %365 = vst [vmem:[#allocation2 + $0x38] sm:$0xff] 0.0
          %366 = vst [vmem:[#allocation2 + $0x40] sm:$0xff] 0.0
          %367 = vst [vmem:[#allocation2 + $0x48] sm:$0xff] 0.0
          %368 = vst [vmem:[#allocation2 + $0x50] sm:$0xff] 0.0
          %369 = vst [vmem:[#allocation2 + $0x58] sm:$0xff] 0.0
          %370 = vst [vmem:[#allocation2 + $0x60] sm:$0xff] 0.0
          %371 = vst [vmem:[#allocation2 + $0x68] sm:$0xff] 0.0
          %372 = vst [vmem:[#allocation2 + $0x70] sm:$0xff] 0.0
          %373 = vst [vmem:[#allocation2 + $0x78] sm:$0xff] 0.0
        $region77: #{_lambda_.6} parent=68 // pred_fallthru
          _
        %v374 = vld [vmem:[#allocation2] sm:$0xff]
        %v375 = vld [vmem:[#allocation2 + $0x8] sm:$0xff]
        %v376 = vld [vmem:[#allocation2 + $0x10] sm:$0xff]
        %v377 = vld [vmem:[#allocation2 + $0x18] sm:$0xff]
        %v378 = vld [vmem:[#allocation2 + $0x20] sm:$0xff]
        %v379 = vld [vmem:[#allocation2 + $0x28] sm:$0xff]
        %v380 = vld [vmem:[#allocation2 + $0x30] sm:$0xff]
        %v381 = vld [vmem:[#allocation2 + $0x38] sm:$0xff]
        %v382 = vld [vmem:[#allocation2 + $0x40] sm:$0xff]
        %v383 = vld [vmem:[#allocation2 + $0x48] sm:$0xff]
        %v384 = vld [vmem:[#allocation2 + $0x50] sm:$0xff]
        %v385 = vld [vmem:[#allocation2 + $0x58] sm:$0xff]
        %v386 = vld [vmem:[#allocation2 + $0x60] sm:$0xff]
        %v387 = vld [vmem:[#allocation2 + $0x68] sm:$0xff]
        %v388 = vld [vmem:[#allocation2 + $0x70] sm:$0xff]
        %v389 = vld [vmem:[#allocation2 + $0x78] sm:$0xff]
        %v390 = vld [vmem:[%s296] sm:$0xf]
        %v391 = vld [vmem:[%s296 + $0x4] sm:$0xf]
        %v392 = vld [vmem:[%s296 + $0x8] sm:$0xf]
        %v393 = vld [vmem:[%s296 + $0xc] sm:$0xf]
        %v394 = vld [vmem:[%s296 + $0x10] sm:$0xf]
        %v395 = vld [vmem:[%s296 + $0x14] sm:$0xf]
        %v396 = vld [vmem:[%s296 + $0x18] sm:$0xf]
        %v397 = vld [vmem:[%s296 + $0x1c] sm:$0xf]
        %v398 = vld [vmem:[%s296 + $0x20] sm:$0xf]
        %v399 = vld [vmem:[%s296 + $0x24] sm:$0xf]
        %v400 = vld [vmem:[%s296 + $0x28] sm:$0xf]
        %v401 = vld [vmem:[%s296 + $0x2c] sm:$0xf]
        %v402 = vld [vmem:[%s296 + $0x30] sm:$0xf]
        %v403 = vld [vmem:[%s296 + $0x34] sm:$0xf]
        %v404 = vld [vmem:[%s296 + $0x38] sm:$0xf]
        %v405 = vld [vmem:[%s296 + $0x3c] sm:$0xf]
        %v406 = vld [vmem:[%s339] sm:$0xf]
        %v407 = vld [vmem:[%s339 + $0x4] sm:$0xf]
        %v408 = vld [vmem:[%s339 + $0x8] sm:$0xf]
        %v409 = vld [vmem:[%s339 + $0xc] sm:$0xf]
        %v410 = vld [vmem:[%s339 + $0x10] sm:$0xf]
        %v411 = vld [vmem:[%s339 + $0x14] sm:$0xf]
        %v412 = vld [vmem:[%s339 + $0x18] sm:$0xf]
        %v413 = vld [vmem:[%s339 + $0x1c] sm:$0xf]
        %v414 = vld [vmem:[%s339 + $0x20] sm:$0xf]
        %v415 = vld [vmem:[%s339 + $0x24] sm:$0xf]
        %v416 = vld [vmem:[%s339 + $0x28] sm:$0xf]
        %v417 = vld [vmem:[%s339 + $0x2c] sm:$0xf]
        %v418 = vld [vmem:[%s339 + $0x30] sm:$0xf]
        %v419 = vld [vmem:[%s339 + $0x34] sm:$0xf]
        %v420 = vld [vmem:[%s339 + $0x38] sm:$0xf]
        %v421 = vld [vmem:[%s339 + $0x3c] sm:$0xf]
        %v438 = vunpack.c.l.b16 %v390
        %v439 = vunpack.c.l.b16 %v391
        %v440 = vunpack.c.l.b16 %v392
        %v441 = vunpack.c.l.b16 %v393
        %v442 = vunpack.c.l.b16 %v394
        %v443 = vunpack.c.l.b16 %v395
        %v444 = vunpack.c.l.b16 %v396
        %v445 = vunpack.c.l.b16 %v397
        %v446 = vunpack.c.l.b16 %v398
        %v447 = vunpack.c.l.b16 %v399
        %v448 = vunpack.c.l.b16 %v400
        %v449 = vunpack.c.l.b16 %v401
        %v450 = vunpack.c.l.b16 %v402
        %v451 = vunpack.c.l.b16 %v403
        %v452 = vunpack.c.l.b16 %v404
        %v453 = vunpack.c.l.b16 %v405
        %v454 = vpack.c.b16 %v439, %v438
        %v455 = vpack.c.b16 %v441, %v440
        %v456 = vpack.c.b16 %v443, %v442
        %v457 = vpack.c.b16 %v445, %v444
        %v458 = vpack.c.b16 %v447, %v446
        %v459 = vpack.c.b16 %v449, %v448
        %v460 = vpack.c.b16 %v451, %v450
        %v461 = vpack.c.b16 %v453, %v452
        %v486 = vunpack.c.l.b16 %v406
        %v487 = vunpack.c.l.b16 %v407
        %v488 = vunpack.c.l.b16 %v408
        %v489 = vunpack.c.l.b16 %v409
        %v490 = vunpack.c.l.b16 %v410
        %v491 = vunpack.c.l.b16 %v411
        %v492 = vunpack.c.l.b16 %v412
        %v493 = vunpack.c.l.b16 %v413
        %v494 = vunpack.c.l.b16 %v414
        %v495 = vunpack.c.l.b16 %v415
        %v496 = vunpack.c.l.b16 %v416
        %v497 = vunpack.c.l.b16 %v417
        %v498 = vunpack.c.l.b16 %v418
        %v499 = vunpack.c.l.b16 %v419
        %v500 = vunpack.c.l.b16 %v420
        %v501 = vunpack.c.l.b16 %v421
        %v502 = vpack.c.b16 %v487, %v486
        %v503 = vpack.c.b16 %v489, %v488
        %v504 = vpack.c.b16 %v491, %v490
        %v505 = vpack.c.b16 %v493, %v492
        %v506 = vpack.c.b16 %v495, %v494
        %v507 = vpack.c.b16 %v497, %v496
        %v508 = vpack.c.b16 %v499, %v498
        %v509 = vpack.c.b16 %v501, %v500
        %518 = vmatprep.subr.bf16.mxu0 0
        %519 = vmatpush1.bf16.msra.mxu0 %v502
        %520 = vmatprep.subr.bf16.mxu0 0
        %521 = vmatpush1.bf16.msra.mxu0 %v503
        %522 = vmatprep.subr.bf16.mxu0 0
        %523 = vmatpush1.bf16.msra.mxu0 %v504
        %524 = vmatprep.subr.bf16.mxu0 0
        %525 = vmatpush1.bf16.msra.mxu0 %v505
        %526 = vmatprep.subr.bf16.mxu0 0
        %527 = vmatpush1.bf16.msra.mxu0 %v506
        %528 = vmatprep.subr.bf16.mxu0 0
        %529 = vmatpush1.bf16.msra.mxu0 %v507
        %530 = vmatprep.subr.bf16.mxu0 0
        %531 = vmatpush1.bf16.msra.mxu0 %v508
        %532 = vmatprep.subr.bf16.mxu0 0
        %533 = vmatpush1.bf16.msra.mxu0 %v509
        %534 = vmatprep.subr.bf16.mxu0 0
        %535 = vmatpush1.bf16.msra.mxu0 0
        %536 = vmatprep.subr.bf16.mxu0 0
        %537 = vmatpush1.bf16.msra.mxu0 0
        %538 = vmatprep.subr.bf16.mxu0 0
        %539 = vmatpush1.bf16.msra.mxu0 0
        %540 = vmatprep.subr.bf16.mxu0 0
        %541 = vmatpush1.bf16.msra.mxu0 0
        %542 = vmatprep.subr.bf16.mxu0 0
        %543 = vmatpush1.bf16.msra.mxu0 0
        %544 = vmatprep.subr.bf16.mxu0 0
        %545 = vmatpush1.bf16.msra.mxu0 0
        %546 = vmatprep.subr.bf16.mxu0 0
        %547 = vmatpush1.bf16.msra.mxu0 0
        %548 = vmatprep.subr.bf16.mxu0 0
        %549 = vmatpush1.bf16.msra.mxu0 0
        %550 = vmatprep.mubr.bf16.mxu0 0
        %551 = vmatmul.mubr.bf16.gmra.mrb[0].mxu0 %v454
        %v552 = vpop.f32.mrb[0].mxu0
        %v553 = vadd.f32 0.0, %v552
        %v554 = vpop.f32.mrb[0].mxu0
        %v555 = vpop.f32.mrb[0].mxu0
        %v556 = vadd.f32 0.0, %v555
        %v557 = vpop.f32.mrb[0].mxu0
        %558 = vmatprep.mubr.bf16.mxu0 0
        %559 = vmatmul.mubr.bf16.gmra.mrb[0].mxu0 %v455
        %v560 = vpop.f32.mrb[0].mxu0
        %v561 = vadd.f32 0.0, %v560
        %v562 = vpop.f32.mrb[0].mxu0
        %v563 = vpop.f32.mrb[0].mxu0
        %v564 = vadd.f32 0.0, %v563
        %v565 = vpop.f32.mrb[0].mxu0
        %566 = vmatprep.mubr.bf16.mxu0 0
        %567 = vmatmul.mubr.bf16.gmra.mrb[0].mxu0 %v456
        %v568 = vpop.f32.mrb[0].mxu0
        %v569 = vadd.f32 0.0, %v568
        %v570 = vpop.f32.mrb[0].mxu0
        %v571 = vpop.f32.mrb[0].mxu0
        %v572 = vadd.f32 0.0, %v571
        %v573 = vpop.f32.mrb[0].mxu0
        %574 = vmatprep.mubr.bf16.mxu0 0
        %575 = vmatmul.mubr.bf16.gmra.mrb[0].mxu0 %v457
        %v576 = vpop.f32.mrb[0].mxu0
        %v577 = vadd.f32 0.0, %v576
        %v578 = vpop.f32.mrb[0].mxu0
        %v579 = vpop.f32.mrb[0].mxu0
        %v580 = vadd.f32 0.0, %v579
        %v581 = vpop.f32.mrb[0].mxu0
        %582 = vmatprep.mubr.bf16.mxu0 0
        %583 = vmatmul.mubr.bf16.gmra.mrb[0].mxu0 %v458
        %v584 = vpop.f32.mrb[0].mxu0
        %v585 = vadd.f32 0.0, %v584
        %v586 = vpop.f32.mrb[0].mxu0
        %v587 = vpop.f32.mrb[0].mxu0
        %v588 = vadd.f32 0.0, %v587
        %v589 = vpop.f32.mrb[0].mxu0
        %590 = vmatprep.mubr.bf16.mxu0 0
        %591 = vmatmul.mubr.bf16.gmra.mrb[0].mxu0 %v459
        %v592 = vpop.f32.mrb[0].mxu0
        %v593 = vadd.f32 0.0, %v592
        %v594 = vpop.f32.mrb[0].mxu0
        %v595 = vpop.f32.mrb[0].mxu0
        %v596 = vadd.f32 0.0, %v595
        %v597 = vpop.f32.mrb[0].mxu0
        %598 = vmatprep.mubr.bf16.mxu0 0
        %599 = vmatmul.mubr.bf16.gmra.mrb[0].mxu0 %v460
        %v600 = vpop.f32.mrb[0].mxu0
        %v601 = vadd.f32 0.0, %v600
        %v602 = vpop.f32.mrb[0].mxu0
        %v603 = vpop.f32.mrb[0].mxu0
        %v604 = vadd.f32 0.0, %v603
        %v605 = vpop.f32.mrb[0].mxu0
        %606 = vmatprep.mubr.bf16.mxu0 0
        %607 = vmatmul.mubr.bf16.gmra.mrb[0].mxu0 %v461
        %v608 = vpop.f32.mrb[0].mxu0
        %v609 = vadd.f32 0.0, %v608
        %v610 = vpop.f32.mrb[0].mxu0
        %v611 = vpop.f32.mrb[0].mxu0
        %v612 = vadd.f32 0.0, %v611
        %v613 = vpop.f32.mrb[0].mxu0
        %614 = vdwg.mxu0
        %v615 = vadd.f32 %v374, %v553
        %v616 = vadd.f32 %v375, %v556
        %v617 = vadd.f32 %v376, %v561
        %v618 = vadd.f32 %v377, %v564
        %v619 = vadd.f32 %v378, %v569
        %v620 = vadd.f32 %v379, %v572
        %v621 = vadd.f32 %v380, %v577
        %v622 = vadd.f32 %v381, %v580
        %v623 = vadd.f32 %v382, %v585
        %v624 = vadd.f32 %v383, %v588
        %v625 = vadd.f32 %v384, %v593
        %v626 = vadd.f32 %v385, %v596
        %v627 = vadd.f32 %v386, %v601
        %v628 = vadd.f32 %v387, %v604
        %v629 = vadd.f32 %v388, %v609
        %v630 = vadd.f32 %v389, %v612
        %631 = vst [vmem:[#allocation2] sm:$0xff] %v615
        %632 = vst [vmem:[#allocation2 + $0x8] sm:$0xff] %v616
        %633 = vst [vmem:[#allocation2 + $0x10] sm:$0xff] %v617
        %634 = vst [vmem:[#allocation2 + $0x18] sm:$0xff] %v618
        %635 = vst [vmem:[#allocation2 + $0x20] sm:$0xff] %v619
        %636 = vst [vmem:[#allocation2 + $0x28] sm:$0xff] %v620
        %637 = vst [vmem:[#allocation2 + $0x30] sm:$0xff] %v621
        %638 = vst [vmem:[#allocation2 + $0x38] sm:$0xff] %v622
        %639 = vst [vmem:[#allocation2 + $0x40] sm:$0xff] %v623
        %640 = vst [vmem:[#allocation2 + $0x48] sm:$0xff] %v624
        %641 = vst [vmem:[#allocation2 + $0x50] sm:$0xff] %v625
        %642 = vst [vmem:[#allocation2 + $0x58] sm:$0xff] %v626
        %643 = vst [vmem:[#allocation2 + $0x60] sm:$0xff] %v627
        %644 = vst [vmem:[#allocation2 + $0x68] sm:$0xff] %v628
        %645 = vst [vmem:[#allocation2 + $0x70] sm:$0xff] %v629
        %646 = vst [vmem:[#allocation2 + $0x78] sm:$0xff] %v630
        %p647 = scmp.eq.s32.totalorder %s21, 8
        // Predicated region
        $region78: #{_lambda_.6} parent=68 // pred_check
          %p648 = pneg %p647
        $region79: #{_lambda_.6} parent=68 // pred_check_branch
          %650 = sbr.rel (%p648) target = $region81
        $region80: #{_lambda_.6} parent=68 // pred_region
          %v651 = vld [vmem:[#allocation2] sm:$0xff]
          %v652 = vld [vmem:[#allocation2 + $0x8] sm:$0xff]
          %v653 = vld [vmem:[#allocation2 + $0x10] sm:$0xff]
          %v654 = vld [vmem:[#allocation2 + $0x18] sm:$0xff]
          %v655 = vld [vmem:[#allocation2 + $0x20] sm:$0xff]
          %v656 = vld [vmem:[#allocation2 + $0x28] sm:$0xff]
          %v657 = vld [vmem:[#allocation2 + $0x30] sm:$0xff]
          %v658 = vld [vmem:[#allocation2 + $0x38] sm:$0xff]
          %v659 = vld [vmem:[#allocation2 + $0x40] sm:$0xff]
          %v660 = vld [vmem:[#allocation2 + $0x48] sm:$0xff]
          %v661 = vld [vmem:[#allocation2 + $0x50] sm:$0xff]
          %v662 = vld [vmem:[#allocation2 + $0x58] sm:$0xff]
          %v663 = vld [vmem:[#allocation2 + $0x60] sm:$0xff]
          %v664 = vld [vmem:[#allocation2 + $0x68] sm:$0xff]
          %v665 = vld [vmem:[#allocation2 + $0x70] sm:$0xff]
          %v666 = vld [vmem:[#allocation2 + $0x78] sm:$0xff]
          %v667 = vld [vmem:[%s343] sm:$0x1]
          %v669 = vlaneseq
          %v670 = vshrl.u32 %v669, 7
          %v671 = vsub.s32 0, %v670
          %v672 = vrot.slane %v667, %v671
          %v674 = vadd.f32 %v651, %v672
          %v675 = vadd.f32 %v652, %v672
          %v676 = vadd.f32 %v653, %v672
          %v677 = vadd.f32 %v654, %v672
          %v678 = vadd.f32 %v655, %v672
          %v679 = vadd.f32 %v656, %v672
          %v680 = vadd.f32 %v657, %v672
          %v681 = vadd.f32 %v658, %v672
          %v682 = vadd.f32 %v659, %v672
          %v683 = vadd.f32 %v660, %v672
          %v684 = vadd.f32 %v661, %v672
          %v685 = vadd.f32 %v662, %v672
          %v686 = vadd.f32 %v663, %v672
          %v687 = vadd.f32 %v664, %v672
          %v688 = vadd.f32 %v665, %v672
          %v689 = vadd.f32 %v666, %v672
          %v690 = vmax.f32 %v674, 0.0
          %v691 = vmax.f32 %v675, 0.0
          %v692 = vmax.f32 %v676, 0.0
          %v693 = vmax.f32 %v677, 0.0
          %v694 = vmax.f32 %v678, 0.0
          %v695 = vmax.f32 %v679, 0.0
          %v696 = vmax.f32 %v680, 0.0
          %v697 = vmax.f32 %v681, 0.0
          %v698 = vmax.f32 %v682, 0.0
          %v699 = vmax.f32 %v683, 0.0
          %v700 = vmax.f32 %v684, 0.0
          %v701 = vmax.f32 %v685, 0.0
          %v702 = vmax.f32 %v686, 0.0
          %v703 = vmax.f32 %v687, 0.0
          %v704 = vmax.f32 %v688, 0.0
          %v705 = vmax.f32 %v689, 0.0
          %v706 = vpack.c.bf16 %v691, %v690
          %v707 = vpack.c.bf16 %v693, %v692
          %v708 = vpack.c.bf16 %v695, %v694
          %v709 = vpack.c.bf16 %v697, %v696
          %v710 = vpack.c.bf16 %v699, %v698
          %v711 = vpack.c.bf16 %v701, %v700
          %v712 = vpack.c.bf16 %v703, %v702
          %v713 = vpack.c.bf16 %v705, %v704
          %v722 = vunpack.c.l.b16 %v706
          %v723 = vunpack.c.h.b16 %v706
          %v724 = vunpack.c.l.b16 %v707
          %v725 = vunpack.c.h.b16 %v707
          %v726 = vunpack.c.l.b16 %v708
          %v727 = vunpack.c.h.b16 %v708
          %v728 = vunpack.c.l.b16 %v709
          %v729 = vunpack.c.h.b16 %v709
          %v730 = vunpack.c.l.b16 %v710
          %v731 = vunpack.c.h.b16 %v710
          %v732 = vunpack.c.l.b16 %v711
          %v733 = vunpack.c.h.b16 %v711
          %v734 = vunpack.c.l.b16 %v712
          %v735 = vunpack.c.h.b16 %v712
          %v736 = vunpack.c.l.b16 %v713
          %v737 = vunpack.c.h.b16 %v713
          %v738 = vpack.c.b16 %v722, %v722
          %v739 = vpack.c.b16 %v723, %v723
          %v740 = vpack.c.b16 %v724, %v724
          %v741 = vpack.c.b16 %v725, %v725
          %v742 = vpack.c.b16 %v726, %v726
          %v743 = vpack.c.b16 %v727, %v727
          %v744 = vpack.c.b16 %v728, %v728
          %v745 = vpack.c.b16 %v729, %v729
          %v746 = vpack.c.b16 %v730, %v730
          %v747 = vpack.c.b16 %v731, %v731
          %v748 = vpack.c.b16 %v732, %v732
          %v749 = vpack.c.b16 %v733, %v733
          %v750 = vpack.c.b16 %v734, %v734
          %v751 = vpack.c.b16 %v735, %v735
          %v752 = vpack.c.b16 %v736, %v736
          %v753 = vpack.c.b16 %v737, %v737
          %770 = vst [vmem:[%s351] sm:$0xf] %v738
          %771 = vst [vmem:[%s351 + $0x4] sm:$0xf] %v739
          %772 = vst [vmem:[%s351 + $0x8] sm:$0xf] %v740
          %773 = vst [vmem:[%s351 + $0xc] sm:$0xf] %v741
          %774 = vst [vmem:[%s351 + $0x10] sm:$0xf] %v742
          %775 = vst [vmem:[%s351 + $0x14] sm:$0xf] %v743
          %776 = vst [vmem:[%s351 + $0x18] sm:$0xf] %v744
          %777 = vst [vmem:[%s351 + $0x1c] sm:$0xf] %v745
          %778 = vst [vmem:[%s351 + $0x20] sm:$0xf] %v746
          %779 = vst [vmem:[%s351 + $0x24] sm:$0xf] %v747
          %780 = vst [vmem:[%s351 + $0x28] sm:$0xf] %v748
          %781 = vst [vmem:[%s351 + $0x2c] sm:$0xf] %v749
          %782 = vst [vmem:[%s351 + $0x30] sm:$0xf] %v750
          %783 = vst [vmem:[%s351 + $0x34] sm:$0xf] %v751
          %784 = vst [vmem:[%s351 + $0x38] sm:$0xf] %v752
          %785 = vst [vmem:[%s351 + $0x3c] sm:$0xf] %v753
        $region81: #{_lambda_.6} parent=68 // pred_fallthru
          _
        %s786 = smul.u32 16, %s19
        %p787 = scmp.lt.s32.totalorder %s786, 15
        %s788 = scalar_select %p787, %s786, 15
        %p789 = scmp.lt.s32.totalorder %s20, 0
        %s790 = scalar_select %p789, %s20, 0
        %s791 = sadd.s32 %s790, %s788
        %s792 = smul.addr %s791, 4
        %s793 = scalar_lea.vmem %s3, %s792
        // Predicated region
        $region82: #{_lambda_.6} parent=68 // pred_check
          %p794 = pneg %p135
        $region83: #{_lambda_.6} parent=68 // pred_check_branch
          %796 = sbr.rel (%p794) target = $region85
        $region84: #{_lambda_.6} parent=68 // pred_region
          %s797 = smul.u32 16, %s19
        $region85: #{_lambda_.6} parent=68 // pred_fallthru
          _
        // Predicated region
        $region86: #{_lambda_.6} parent=68 // pred_check
          %p798 = pneg %p135
        $region87: #{_lambda_.6} parent=68 // pred_check_branch
          %800 = sbr.rel (%p798) target = $region89
        $region88: #{_lambda_.6} parent=68 // pred_region
          %s801 = smul.u32 16, %s19
          %p802 = scmp.lt.s32.totalorder %s801, 15
          %s803 = scalar_select %p802, %s801, 15
          %p804 = scmp.lt.s32.totalorder %s20, 0
          %s805 = scalar_select %p804, %s20, 0
          %s806 = sadd.s32 %s805, %s803
          %s807 = smul.addr %s806, 4
          %s808 = scalar_lea.vmem %s3, %s807
        $region89: #{_lambda_.6} parent=68 // pred_fallthru
          _
      $region69: #{_lambda_.6} parent=5 // pred_fallthru
        _
      %p809 = scmp.le.s32.totalorder 2, %s9
      // Predicated region
      $region90: #{_lambda_.6} parent=5 // pred_check
        %p810 = pneg %p809
      $region91: #{_lambda_.6} parent=5 // pred_check_branch
        %812 = sbr.rel (%p810) target = $region93
      $region92: #{_lambda_.6} parent=5 // pred_region
        %s813 = ssub.s32 %s9, 2
      $region93: #{_lambda_.6} parent=5 // pred_fallthru
        _
    $region6: #{_lambda_.6} parent=1 // loop_footer
      %s13 = sadd.s32 1, %s9
    $region7: #{_lambda_.6} parent=1 // loop_footer_branch
      %8 = sbr.rel target = $region3
    $region8: #{_lambda_.6} parent=1 // loop_exit
      _

// kernel: _lambda_.5
$region0: #{_lambda_.5}
  #allocation0 [shape = 'u32[]', space=smem, size = 0x4, offset = 0x4, fixed_abs, tag = 'smem constant byte address 0x4 - core index']
  #allocation1 [shape = 'u32[144,128]{1,0:T(1,128)}', space=vmem, size = 0x12000, scoped, tag = 'internal scratch']
  #allocation2 [shape = 'f32[512,128]{1,0:T(8,128)}', space=vmem, size = 0x40000, scoped, tag = 'scratch operand']
  %s0 = inlined_call_operand.vmem [shape: bf16[512,128], index: 0, kind: input, shape index: {}]
  %s1 = inlined_call_operand.vmem [shape: bf16[128,128], index: 1, kind: input, shape index: {}]
  %s2 = inlined_call_operand.vmem [shape: f32[1,128], index: 2, kind: input, shape index: {}]
  %s3 = inlined_call_operand.vmem [shape: bf16[512,128], index: 3, kind: output, shape index: {}]
  %s4 = sld [smem:[#allocation0]]
  $region30: #{_lambda_.5} parent=0
    _
  %s6 = ssub.s32 1, %s4
  %s7 = scalar_select 0, %s6, %s4
  // Predicated region
  $region2: #{_lambda_.5} parent=0 // pred_check
    _
  $region3: #{_lambda_.5} parent=0 // pred_check_branch
    %9 = sbr.rel (0) target = $region5
  $region4: #{_lambda_.5} parent=0 // pred_region
    _
  $region5: #{_lambda_.5} parent=0 // pred_fallthru
    _
  // Predicated region
  $region6: #{_lambda_.5} parent=0 // pred_check
    _
  $region7: #{_lambda_.5} parent=0 // pred_check_branch
    %11 = sbr.rel (0) target = $region9
  $region8: #{_lambda_.5} parent=0 // pred_region
    _
  $region9: #{_lambda_.5} parent=0 // pred_fallthru
    _
  // Predicated region
  $region10: #{_lambda_.5} parent=0 // pred_check
    _
  $region11: #{_lambda_.5} parent=0 // pred_check_branch
    %13 = sbr.rel (0) target = $region13
  $region12: #{_lambda_.5} parent=0 // pred_region
    _
  $region13: #{_lambda_.5} parent=0 // pred_fallthru
    _
  %p15 = scmp.eq.s32.totalorder 0, 0
  // Predicated region
  $region14: #{_lambda_.5} parent=0 // pred_check
    %p16 = pneg %p15
  $region15: #{_lambda_.5} parent=0 // pred_check_branch
    %18 = sbr.rel (%p16) target = $region17
  $region16: #{_lambda_.5} parent=0 // pred_region
    %19 = vst [vmem:[#allocation2] sm:$0xff] 0.0
    %20 = vst [vmem:[#allocation2 + $0x8] sm:$0xff] 0.0
    %21 = vst [vmem:[#allocation2 + $0x10] sm:$0xff] 0.0
    %22 = vst [vmem:[#allocation2 + $0x18] sm:$0xff] 0.0
    %23 = vst [vmem:[#allocation2 + $0x20] sm:$0xff] 0.0
    %24 = vst [vmem:[#allocation2 + $0x28] sm:$0xff] 0.0
    %25 = vst [vmem:[#allocation2 + $0x30] sm:$0xff] 0.0
    %26 = vst [vmem:[#allocation2 + $0x38] sm:$0xff] 0.0
    %27 = vst [vmem:[#allocation2 + $0x40] sm:$0xff] 0.0
    %28 = vst [vmem:[#allocation2 + $0x48] sm:$0xff] 0.0
    %29 = vst [vmem:[#allocation2 + $0x50] sm:$0xff] 0.0
    %30 = vst [vmem:[#allocation2 + $0x58] sm:$0xff] 0.0
    %31 = vst [vmem:[#allocation2 + $0x60] sm:$0xff] 0.0
    %32 = vst [vmem:[#allocation2 + $0x68] sm:$0xff] 0.0
    %33 = vst [vmem:[#allocation2 + $0x70] sm:$0xff] 0.0
    %34 = vst [vmem:[#allocation2 + $0x78] sm:$0xff] 0.0
    %35 = vst [vmem:[#allocation2 + $0x80] sm:$0xff] 0.0
    %36 = vst [vmem:[#allocation2 + $0x88] sm:$0xff] 0.0
    %37 = vst [vmem:[#allocation2 + $0x90] sm:$0xff] 0.0
    %38 = vst [vmem:[#allocation2 + $0x98] sm:$0xff] 0.0
    %39 = vst [vmem:[#allocation2 + $0xa0] sm:$0xff] 0.0
    %40 = vst [vmem:[#allocation2 + $0xa8] sm:$0xff] 0.0
    %41 = vst [vmem:[#allocation2 + $0xb0] sm:$0xff] 0.0
    %42 = vst [vmem:[#allocation2 + $0xb8] sm:$0xff] 0.0
    %43 = vst [vmem:[#allocation2 + $0xc0] sm:$0xff] 0.0
    %44 = vst [vmem:[#allocation2 + $0xc8] sm:$0xff] 0.0
    %45 = vst [vmem:[#allocation2 + $0xd0] sm:$0xff] 0.0
    %46 = vst [vmem:[#allocation2 + $0xd8] sm:$0xff] 0.0
    %47 = vst [vmem:[#allocation2 + $0xe0] sm:$0xff] 0.0
    %48 = vst [vmem:[#allocation2 + $0xe8] sm:$0xff] 0.0
    %49 = vst [vmem:[#allocation2 + $0xf0] sm:$0xff] 0.0
    %50 = vst [vmem:[#allocation2 + $0xf8] sm:$0xff] 0.0
    %51 = vst [vmem:[#allocation2 + $0x100] sm:$0xff] 0.0
    %52 = vst [vmem:[#allocation2 + $0x108] sm:$0xff] 0.0
    %53 = vst [vmem:[#allocation2 + $0x110] sm:$0xff] 0.0
    %54 = vst [vmem:[#allocation2 + $0x118] sm:$0xff] 0.0
    %55 = vst [vmem:[#allocation2 + $0x120] sm:$0xff] 0.0
    %56 = vst [vmem:[#allocation2 + $0x128] sm:$0xff] 0.0
    %57 = vst [vmem:[#allocation2 + $0x130] sm:$0xff] 0.0
    %58 = vst [vmem:[#allocation2 + $0x138] sm:$0xff] 0.0
    %59 = vst [vmem:[#allocation2 + $0x140] sm:$0xff] 0.0
    %60 = vst [vmem:[#allocation2 + $0x148] sm:$0xff] 0.0
    %61 = vst [vmem:[#allocation2 + $0x150] sm:$0xff] 0.0
    %62 = vst [vmem:[#allocation2 + $0x158] sm:$0xff] 0.0
    %63 = vst [vmem:[#allocation2 + $0x160] sm:$0xff] 0.0
    %64 = vst [vmem:[#allocation2 + $0x168] sm:$0xff] 0.0
    %65 = vst [vmem:[#allocation2 + $0x170] sm:$0xff] 0.0
    %66 = vst [vmem:[#allocation2 + $0x178] sm:$0xff] 0.0
    %67 = vst [vmem:[#allocation2 + $0x180] sm:$0xff] 0.0
    %68 = vst [vmem:[#allocation2 + $0x188] sm:$0xff] 0.0
    %69 = vst [vmem:[#allocation2 + $0x190] sm:$0xff] 0.0
    %70 = vst [vmem:[#allocation2 + $0x198] sm:$0xff] 0.0
    %71 = vst [vmem:[#allocation2 + $0x1a0] sm:$0xff] 0.0
    %72 = vst [vmem:[#allocation2 + $0x1a8] sm:$0xff] 0.0
    %73 = vst [vmem:[#allocation2 + $0x1b0] sm:$0xff] 0.0
    %74 = vst [vmem:[#allocation2 + $0x1b8] sm:$0xff] 0.0
    %75 = vst [vmem:[#allocation2 + $0x1c0] sm:$0xff] 0.0
    %76 = vst [vmem:[#allocation2 + $0x1c8] sm:$0xff] 0.0
    %77 = vst [vmem:[#allocation2 + $0x1d0] sm:$0xff] 0.0
    %78 = vst [vmem:[#allocation2 + $0x1d8] sm:$0xff] 0.0
    %79 = vst [vmem:[#allocation2 + $0x1e0] sm:$0xff] 0.0
    %80 = vst [vmem:[#allocation2 + $0x1e8] sm:$0xff] 0.0
    %81 = vst [vmem:[#allocation2 + $0x1f0] sm:$0xff] 0.0
    %82 = vst [vmem:[#allocation2 + $0x1f8] sm:$0xff] 0.0
  $region17: #{_lambda_.5} parent=0 // pred_fallthru
    _
  %v83 = vld [vmem:[#allocation2] sm:$0xff]
  %v84 = vld [vmem:[#allocation2 + $0x8] sm:$0xff]
  %v85 = vld [vmem:[#allocation2 + $0x10] sm:$0xff]
  %v86 = vld [vmem:[#allocation2 + $0x18] sm:$0xff]
  %v87 = vld [vmem:[#allocation2 + $0x20] sm:$0xff]
  %v88 = vld [vmem:[#allocation2 + $0x28] sm:$0xff]
  %v89 = vld [vmem:[#allocation2 + $0x30] sm:$0xff]
  %v90 = vld [vmem:[#allocation2 + $0x38] sm:$0xff]
  %v91 = vld [vmem:[#allocation2 + $0x40] sm:$0xff]
  %v92 = vld [vmem:[#allocation2 + $0x48] sm:$0xff]
  %v93 = vld [vmem:[#allocation2 + $0x50] sm:$0xff]
  %v94 = vld [vmem:[#allocation2 + $0x58] sm:$0xff]
  %v95 = vld [vmem:[#allocation2 + $0x60] sm:$0xff]
  %v96 = vld [vmem:[#allocation2 + $0x68] sm:$0xff]
  %v97 = vld [vmem:[#allocation2 + $0x70] sm:$0xff]
  %v98 = vld [vmem:[#allocation2 + $0x78] sm:$0xff]
  %v99 = vld [vmem:[#allocation2 + $0x80] sm:$0xff]
  %v100 = vld [vmem:[#allocation2 + $0x88] sm:$0xff]
  %v101 = vld [vmem:[#allocation2 + $0x90] sm:$0xff]
  %v102 = vld [vmem:[#allocation2 + $0x98] sm:$0xff]
  %v103 = vld [vmem:[#allocation2 + $0xa0] sm:$0xff]
  %v104 = vld [vmem:[#allocation2 + $0xa8] sm:$0xff]
  %v105 = vld [vmem:[#allocation2 + $0xb0] sm:$0xff]
  %v106 = vld [vmem:[#allocation2 + $0xb8] sm:$0xff]
  %v107 = vld [vmem:[#allocation2 + $0xc0] sm:$0xff]
  %v108 = vld [vmem:[#allocation2 + $0xc8] sm:$0xff]
  %v109 = vld [vmem:[#allocation2 + $0xd0] sm:$0xff]
  %v110 = vld [vmem:[#allocation2 + $0xd8] sm:$0xff]
  %v111 = vld [vmem:[#allocation2 + $0xe0] sm:$0xff]
  %v112 = vld [vmem:[#allocation2 + $0xe8] sm:$0xff]
  %v113 = vld [vmem:[#allocation2 + $0xf0] sm:$0xff]
  %v114 = vld [vmem:[#allocation2 + $0xf8] sm:$0xff]
  %v115 = vld [vmem:[#allocation2 + $0x100] sm:$0xff]
  %v116 = vld [vmem:[#allocation2 + $0x108] sm:$0xff]
  %v117 = vld [vmem:[#allocation2 + $0x110] sm:$0xff]
  %v118 = vld [vmem:[#allocation2 + $0x118] sm:$0xff]
  %v119 = vld [vmem:[#allocation2 + $0x120] sm:$0xff]
  %v120 = vld [vmem:[#allocation2 + $0x128] sm:$0xff]
  %v121 = vld [vmem:[#allocation2 + $0x130] sm:$0xff]
  %v122 = vld [vmem:[#allocation2 + $0x138] sm:$0xff]
  %v123 = vld [vmem:[#allocation2 + $0x140] sm:$0xff]
  %v124 = vld [vmem:[#allocation2 + $0x148] sm:$0xff]
  %v125 = vld [vmem:[#allocation2 + $0x150] sm:$0xff]
  %v126 = vld [vmem:[#allocation2 + $0x158] sm:$0xff]
  %v127 = vld [vmem:[#allocation2 + $0x160] sm:$0xff]
  %v128 = vld [vmem:[#allocation2 + $0x168] sm:$0xff]
  %v129 = vld [vmem:[#allocation2 + $0x170] sm:$0xff]
  %v130 = vld [vmem:[#allocation2 + $0x178] sm:$0xff]
  %v131 = vld [vmem:[#allocation2 + $0x180] sm:$0xff]
  %v132 = vld [vmem:[#allocation2 + $0x188] sm:$0xff]
  %v133 = vld [vmem:[#allocation2 + $0x190] sm:$0xff]
  %v134 = vld [vmem:[#allocation2 + $0x198] sm:$0xff]
  %v135 = vld [vmem:[#allocation2 + $0x1a0] sm:$0xff]
  %v136 = vld [vmem:[#allocation2 + $0x1a8] sm:$0xff]
  %v137 = vld [vmem:[#allocation2 + $0x1b0] sm:$0xff]
  %v138 = vld [vmem:[#allocation2 + $0x1b8] sm:$0xff]
  %v139 = vld [vmem:[#allocation2 + $0x1c0] sm:$0xff]
  %v140 = vld [vmem:[#allocation2 + $0x1c8] sm:$0xff]
  %v141 = vld [vmem:[#allocation2 + $0x1d0] sm:$0xff]
  %v142 = vld [vmem:[#allocation2 + $0x1d8] sm:$0xff]
  %v143 = vld [vmem:[#allocation2 + $0x1e0] sm:$0xff]
  %v144 = vld [vmem:[#allocation2 + $0x1e8] sm:$0xff]
  %v145 = vld [vmem:[#allocation2 + $0x1f0] sm:$0xff]
  %v146 = vld [vmem:[#allocation2 + $0x1f8] sm:$0xff]
  %v147 = vld [vmem:[%s0] sm:$0xf]
  %v148 = vld [vmem:[%s0 + $0x4] sm:$0xf]
  %v149 = vld [vmem:[%s0 + $0x8] sm:$0xf]
  %v150 = vld [vmem:[%s0 + $0xc] sm:$0xf]
  %v151 = vld [vmem:[%s0 + $0x10] sm:$0xf]
  %v152 = vld [vmem:[%s0 + $0x14] sm:$0xf]
  %v153 = vld [vmem:[%s0 + $0x18] sm:$0xf]
  %v154 = vld [vmem:[%s0 + $0x1c] sm:$0xf]
  %v155 = vld [vmem:[%s0 + $0x20] sm:$0xf]
  %v156 = vld [vmem:[%s0 + $0x24] sm:$0xf]
  %v157 = vld [vmem:[%s0 + $0x28] sm:$0xf]
  %v158 = vld [vmem:[%s0 + $0x2c] sm:$0xf]
  %v159 = vld [vmem:[%s0 + $0x30] sm:$0xf]
  %v160 = vld [vmem:[%s0 + $0x34] sm:$0xf]
  %v161 = vld [vmem:[%s0 + $0x38] sm:$0xf]
  %v162 = vld [vmem:[%s0 + $0x3c] sm:$0xf]
  %v163 = vld [vmem:[%s0 + $0x40] sm:$0xf]
  %v164 = vld [vmem:[%s0 + $0x44] sm:$0xf]
  %v165 = vld [vmem:[%s0 + $0x48] sm:$0xf]
  %v166 = vld [vmem:[%s0 + $0x4c] sm:$0xf]
  %v167 = vld [vmem:[%s0 + $0x50] sm:$0xf]
  %v168 = vld [vmem:[%s0 + $0x54] sm:$0xf]
  %v169 = vld [vmem:[%s0 + $0x58] sm:$0xf]
  %v170 = vld [vmem:[%s0 + $0x5c] sm:$0xf]
  %v171 = vld [vmem:[%s0 + $0x60] sm:$0xf]
  %v172 = vld [vmem:[%s0 + $0x64] sm:$0xf]
  %v173 = vld [vmem:[%s0 + $0x68] sm:$0xf]
  %v174 = vld [vmem:[%s0 + $0x6c] sm:$0xf]
  %v175 = vld [vmem:[%s0 + $0x70] sm:$0xf]
  %v176 = vld [vmem:[%s0 + $0x74] sm:$0xf]
  %v177 = vld [vmem:[%s0 + $0x78] sm:$0xf]
  %v178 = vld [vmem:[%s0 + $0x7c] sm:$0xf]
  %v179 = vld [vmem:[%s0 + $0x80] sm:$0xf]
  %v180 = vld [vmem:[%s0 + $0x84] sm:$0xf]
  %v181 = vld [vmem:[%s0 + $0x88] sm:$0xf]
  %v182 = vld [vmem:[%s0 + $0x8c] sm:$0xf]
  %v183 = vld [vmem:[%s0 + $0x90] sm:$0xf]
  %v184 = vld [vmem:[%s0 + $0x94] sm:$0xf]
  %v185 = vld [vmem:[%s0 + $0x98] sm:$0xf]
  %v186 = vld [vmem:[%s0 + $0x9c] sm:$0xf]
  %v187 = vld [vmem:[%s0 + $0xa0] sm:$0xf]
  %v188 = vld [vmem:[%s0 + $0xa4] sm:$0xf]
  %v189 = vld [vmem:[%s0 + $0xa8] sm:$0xf]
  %v190 = vld [vmem:[%s0 + $0xac] sm:$0xf]
  %v191 = vld [vmem:[%s0 + $0xb0] sm:$0xf]
  %v192 = vld [vmem:[%s0 + $0xb4] sm:$0xf]
  %v193 = vld [vmem:[%s0 + $0xb8] sm:$0xf]
  %v194 = vld [vmem:[%s0 + $0xbc] sm:$0xf]
  %v195 = vld [vmem:[%s0 + $0xc0] sm:$0xf]
  %v196 = vld [vmem:[%s0 + $0xc4] sm:$0xf]
  %v197 = vld [vmem:[%s0 + $0xc8] sm:$0xf]
  %v198 = vld [vmem:[%s0 + $0xcc] sm:$0xf]
  %v199 = vld [vmem:[%s0 + $0xd0] sm:$0xf]
  %v200 = vld [vmem:[%s0 + $0xd4] sm:$0xf]
  %v201 = vld [vmem:[%s0 + $0xd8] sm:$0xf]
  %v202 = vld [vmem:[%s0 + $0xdc] sm:$0xf]
  %v203 = vld [vmem:[%s0 + $0xe0] sm:$0xf]
  %v204 = vld [vmem:[%s0 + $0xe4] sm:$0xf]
  %v205 = vld [vmem:[%s0 + $0xe8] sm:$0xf]
  %v206 = vld [vmem:[%s0 + $0xec] sm:$0xf]
  %v207 = vld [vmem:[%s0 + $0xf0] sm:$0xf]
  %v208 = vld [vmem:[%s0 + $0xf4] sm:$0xf]
  %v209 = vld [vmem:[%s0 + $0xf8] sm:$0xf]
  %v210 = vld [vmem:[%s0 + $0xfc] sm:$0xf]
  %v211 = vld [vmem:[%s1] sm:$0xf]
  %v212 = vld [vmem:[%s1 + $0x4] sm:$0xf]
  %v213 = vld [vmem:[%s1 + $0x8] sm:$0xf]
  %v214 = vld [vmem:[%s1 + $0xc] sm:$0xf]
  %v215 = vld [vmem:[%s1 + $0x10] sm:$0xf]
  %v216 = vld [vmem:[%s1 + $0x14] sm:$0xf]
  %v217 = vld [vmem:[%s1 + $0x18] sm:$0xf]
  %v218 = vld [vmem:[%s1 + $0x1c] sm:$0xf]
  %v219 = vld [vmem:[%s1 + $0x20] sm:$0xf]
  %v220 = vld [vmem:[%s1 + $0x24] sm:$0xf]
  %v221 = vld [vmem:[%s1 + $0x28] sm:$0xf]
  %v222 = vld [vmem:[%s1 + $0x2c] sm:$0xf]
  %v223 = vld [vmem:[%s1 + $0x30] sm:$0xf]
  %v224 = vld [vmem:[%s1 + $0x34] sm:$0xf]
  %v225 = vld [vmem:[%s1 + $0x38] sm:$0xf]
  %v226 = vld [vmem:[%s1 + $0x3c] sm:$0xf]
  %v291 = vunpack.c.l.b16 %v147
  %v292 = vunpack.c.l.b16 %v148
  %v293 = vunpack.c.l.b16 %v149
  %v294 = vunpack.c.l.b16 %v150
  %v295 = vunpack.c.l.b16 %v151
  %v296 = vunpack.c.l.b16 %v152
  %v297 = vunpack.c.l.b16 %v153
  %v298 = vunpack.c.l.b16 %v154
  %v299 = vunpack.c.l.b16 %v155
  %v300 = vunpack.c.l.b16 %v156
  %v301 = vunpack.c.l.b16 %v157
  %v302 = vunpack.c.l.b16 %v158
  %v303 = vunpack.c.l.b16 %v159
  %v304 = vunpack.c.l.b16 %v160
  %v305 = vunpack.c.l.b16 %v161
  %v306 = vunpack.c.l.b16 %v162
  %v307 = vunpack.c.l.b16 %v163
  %v308 = vunpack.c.l.b16 %v164
  %v309 = vunpack.c.l.b16 %v165
  %v310 = vunpack.c.l.b16 %v166
  %v311 = vunpack.c.l.b16 %v167
  %v312 = vunpack.c.l.b16 %v168
  %v313 = vunpack.c.l.b16 %v169
  %v314 = vunpack.c.l.b16 %v170
  %v315 = vunpack.c.l.b16 %v171
  %v316 = vunpack.c.l.b16 %v172
  %v317 = vunpack.c.l.b16 %v173
  %v318 = vunpack.c.l.b16 %v174
  %v319 = vunpack.c.l.b16 %v175
  %v320 = vunpack.c.l.b16 %v176
  %v321 = vunpack.c.l.b16 %v177
  %v322 = vunpack.c.l.b16 %v178
  %v323 = vunpack.c.l.b16 %v179
  %v324 = vunpack.c.l.b16 %v180
  %v325 = vunpack.c.l.b16 %v181
  %v326 = vunpack.c.l.b16 %v182
  %v327 = vunpack.c.l.b16 %v183
  %v328 = vunpack.c.l.b16 %v184
  %v329 = vunpack.c.l.b16 %v185
  %v330 = vunpack.c.l.b16 %v186
  %v331 = vunpack.c.l.b16 %v187
  %v332 = vunpack.c.l.b16 %v188
  %v333 = vunpack.c.l.b16 %v189
  %v334 = vunpack.c.l.b16 %v190
  %v335 = vunpack.c.l.b16 %v191
  %v336 = vunpack.c.l.b16 %v192
  %v337 = vunpack.c.l.b16 %v193
  %v338 = vunpack.c.l.b16 %v194
  %v339 = vunpack.c.l.b16 %v195
  %v340 = vunpack.c.l.b16 %v196
  %v341 = vunpack.c.l.b16 %v197
  %v342 = vunpack.c.l.b16 %v198
  %v343 = vunpack.c.l.b16 %v199
  %v344 = vunpack.c.l.b16 %v200
  %v345 = vunpack.c.l.b16 %v201
  %v346 = vunpack.c.l.b16 %v202
  %v347 = vunpack.c.l.b16 %v203
  %v348 = vunpack.c.l.b16 %v204
  %v349 = vunpack.c.l.b16 %v205
  %v350 = vunpack.c.l.b16 %v206
  %v351 = vunpack.c.l.b16 %v207
  %v352 = vunpack.c.l.b16 %v208
  %v353 = vunpack.c.l.b16 %v209
  %v354 = vunpack.c.l.b16 %v210
  %v355 = vpack.c.b16 %v292, %v291
  %v356 = vpack.c.b16 %v294, %v293
  %v357 = vpack.c.b16 %v296, %v295
  %v358 = vpack.c.b16 %v298, %v297
  %v359 = vpack.c.b16 %v300, %v299
  %v360 = vpack.c.b16 %v302, %v301
  %v361 = vpack.c.b16 %v304, %v303
  %v362 = vpack.c.b16 %v306, %v305
  %v363 = vpack.c.b16 %v308, %v307
  %v364 = vpack.c.b16 %v310, %v309
  %v365 = vpack.c.b16 %v312, %v311
  %v366 = vpack.c.b16 %v314, %v313
  %v367 = vpack.c.b16 %v316, %v315
  %v368 = vpack.c.b16 %v318, %v317
  %v369 = vpack.c.b16 %v320, %v319
  %v370 = vpack.c.b16 %v322, %v321
  %v371 = vpack.c.b16 %v324, %v323
  %v372 = vpack.c.b16 %v326, %v325
  %v373 = vpack.c.b16 %v328, %v327
  %v374 = vpack.c.b16 %v330, %v329
  %v375 = vpack.c.b16 %v332, %v331
  %v376 = vpack.c.b16 %v334, %v333
  %v377 = vpack.c.b16 %v336, %v335
  %v378 = vpack.c.b16 %v338, %v337
  %v379 = vpack.c.b16 %v340, %v339
  %v380 = vpack.c.b16 %v342, %v341
  %v381 = vpack.c.b16 %v344, %v343
  %v382 = vpack.c.b16 %v346, %v345
  %v383 = vpack.c.b16 %v348, %v347
  %v384 = vpack.c.b16 %v350, %v349
  %v385 = vpack.c.b16 %v352, %v351
  %v386 = vpack.c.b16 %v354, %v353
  %v435 = vunpack.c.l.b16 %v211
  %v436 = vunpack.c.l.b16 %v212
  %v437 = vunpack.c.l.b16 %v213
  %v438 = vunpack.c.l.b16 %v214
  %v439 = vunpack.c.l.b16 %v215
  %v440 = vunpack.c.l.b16 %v216
  %v441 = vunpack.c.l.b16 %v217
  %v442 = vunpack.c.l.b16 %v218
  %v443 = vunpack.c.l.b16 %v219
  %v444 = vunpack.c.l.b16 %v220
  %v445 = vunpack.c.l.b16 %v221
  %v446 = vunpack.c.l.b16 %v222
  %v447 = vunpack.c.l.b16 %v223
  %v448 = vunpack.c.l.b16 %v224
  %v449 = vunpack.c.l.b16 %v225
  %v450 = vunpack.c.l.b16 %v226
  %v451 = vpack.c.b16 %v436, %v435
  %v452 = vpack.c.b16 %v438, %v437
  %v453 = vpack.c.b16 %v440, %v439
  %v454 = vpack.c.b16 %v442, %v441
  %v455 = vpack.c.b16 %v444, %v443
  %v456 = vpack.c.b16 %v446, %v445
  %v457 = vpack.c.b16 %v448, %v447
  %v458 = vpack.c.b16 %v450, %v449
  %467 = vmatprep.subr.bf16.mxu0 0
  %468 = vmatpush1.bf16.msra.mxu0 %v451
  %469 = vmatprep.subr.bf16.mxu0 0
  %470 = vmatpush1.bf16.msra.mxu0 %v452
  %471 = vmatprep.subr.bf16.mxu0 0
  %472 = vmatpush1.bf16.msra.mxu0 %v453
  %473 = vmatprep.subr.bf16.mxu0 0
  %474 = vmatpush1.bf16.msra.mxu0 %v454
  %475 = vmatprep.subr.bf16.mxu0 0
  %476 = vmatpush1.bf16.msra.mxu0 %v455
  %477 = vmatprep.subr.bf16.mxu0 0
  %478 = vmatpush1.bf16.msra.mxu0 %v456
  %479 = vmatprep.subr.bf16.mxu0 0
  %480 = vmatpush1.bf16.msra.mxu0 %v457
  %481 = vmatprep.subr.bf16.mxu0 0
  %482 = vmatpush1.bf16.msra.mxu0 %v458
  %483 = vmatprep.subr.bf16.mxu0 0
  %484 = vmatpush1.bf16.msra.mxu0 0
  %485 = vmatprep.subr.bf16.mxu0 0
  %486 = vmatpush1.bf16.msra.mxu0 0
  %487 = vmatprep.subr.bf16.mxu0 0
  %488 = vmatpush1.bf16.msra.mxu0 0
  %489 = vmatprep.subr.bf16.mxu0 0
  %490 = vmatpush1.bf16.msra.mxu0 0
  %491 = vmatprep.subr.bf16.mxu0 0
  %492 = vmatpush1.bf16.msra.mxu0 0
  %493 = vmatprep.subr.bf16.mxu0 0
  %494 = vmatpush1.bf16.msra.mxu0 0
  %495 = vmatprep.subr.bf16.mxu0 0
  %496 = vmatpush1.bf16.msra.mxu0 0
  %497 = vmatprep.subr.bf16.mxu0 0
  %498 = vmatpush1.bf16.msra.mxu0 0
  %499 = vmatprep.mubr.bf16.mxu0 0
  %500 = vmatmul.mubr.bf16.gmra.mrb[0].mxu0 %v355
  %v501 = vpop.f32.mrb[0].mxu0
  %v502 = vadd.f32 0.0, %v501
  %v503 = vpop.f32.mrb[0].mxu0
  %v504 = vpop.f32.mrb[0].mxu0
  %v505 = vadd.f32 0.0, %v504
  %v506 = vpop.f32.mrb[0].mxu0
  %507 = vmatprep.mubr.bf16.mxu0 0
  %508 = vmatmul.mubr.bf16.gmra.mrb[0].mxu0 %v356
  %v509 = vpop.f32.mrb[0].mxu0
  %v510 = vadd.f32 0.0, %v509
  %v511 = vpop.f32.mrb[0].mxu0
  %v512 = vpop.f32.mrb[0].mxu0
  %v513 = vadd.f32 0.0, %v512
  %v514 = vpop.f32.mrb[0].mxu0
  %515 = vmatprep.mubr.bf16.mxu0 0
  %516 = vmatmul.mubr.bf16.gmra.mrb[0].mxu0 %v357
  %v517 = vpop.f32.mrb[0].mxu0
  %v518 = vadd.f32 0.0, %v517
  %v519 = vpop.f32.mrb[0].mxu0
  %v520 = vpop.f32.mrb[0].mxu0
  %v521 = vadd.f32 0.0, %v520
  %v522 = vpop.f32.mrb[0].mxu0
  %523 = vmatprep.mubr.bf16.mxu0 0
  %524 = vmatmul.mubr.bf16.gmra.mrb[0].mxu0 %v358
  %v525 = vpop.f32.mrb[0].mxu0
  %v526 = vadd.f32 0.0, %v525
  %v527 = vpop.f32.mrb[0].mxu0
  %v528 = vpop.f32.mrb[0].mxu0
  %v529 = vadd.f32 0.0, %v528
  %v530 = vpop.f32.mrb[0].mxu0
  %531 = vmatprep.mubr.bf16.mxu0 0
  %532 = vmatmul.mubr.bf16.gmra.mrb[0].mxu0 %v359
  %v533 = vpop.f32.mrb[0].mxu0
  %v534 = vadd.f32 0.0, %v533
  %v535 = vpop.f32.mrb[0].mxu0
  %v536 = vpop.f32.mrb[0].mxu0
  %v537 = vadd.f32 0.0, %v536
  %v538 = vpop.f32.mrb[0].mxu0
  %539 = vmatprep.mubr.bf16.mxu0 0
  %540 = vmatmul.mubr.bf16.gmra.mrb[0].mxu0 %v360
  %v541 = vpop.f32.mrb[0].mxu0
  %v542 = vadd.f32 0.0, %v541
  %v543 = vpop.f32.mrb[0].mxu0
  %v544 = vpop.f32.mrb[0].mxu0
  %v545 = vadd.f32 0.0, %v544
  %v546 = vpop.f32.mrb[0].mxu0
  %547 = vmatprep.mubr.bf16.mxu0 0
  %548 = vmatmul.mubr.bf16.gmra.mrb[0].mxu0 %v361
  %v549 = vpop.f32.mrb[0].mxu0
  %v550 = vadd.f32 0.0, %v549
  %v551 = vpop.f32.mrb[0].mxu0
  %v552 = vpop.f32.mrb[0].mxu0
  %v553 = vadd.f32 0.0, %v552
  %v554 = vpop.f32.mrb[0].mxu0
  %555 = vmatprep.mubr.bf16.mxu0 0
  %556 = vmatmul.mubr.bf16.gmra.mrb[0].mxu0 %v362
  %v557 = vpop.f32.mrb[0].mxu0
  %v558 = vadd.f32 0.0, %v557
  %v559 = vpop.f32.mrb[0].mxu0
  %v560 = vpop.f32.mrb[0].mxu0
  %v561 = vadd.f32 0.0, %v560
  %v562 = vpop.f32.mrb[0].mxu0
  %563 = vmatprep.mubr.bf16.mxu0 0
  %564 = vmatmul.mubr.bf16.gmra.mrb[0].mxu0 %v363
  %v565 = vpop.f32.mrb[0].mxu0
  %v566 = vadd.f32 0.0, %v565
  %v567 = vpop.f32.mrb[0].mxu0
  %v568 = vpop.f32.mrb[0].mxu0
  %v569 = vadd.f32 0.0, %v568
  %v570 = vpop.f32.mrb[0].mxu0
  %571 = vmatprep.mubr.bf16.mxu0 0
  %572 = vmatmul.mubr.bf16.gmra.mrb[0].mxu0 %v364
  %v573 = vpop.f32.mrb[0].mxu0
  %v574 = vadd.f32 0.0, %v573
  %v575 = vpop.f32.mrb[0].mxu0
  %v576 = vpop.f32.mrb[0].mxu0
  %v577 = vadd.f32 0.0, %v576
  %v578 = vpop.f32.mrb[0].mxu0
  %579 = vmatprep.mubr.bf16.mxu0 0
  %580 = vmatmul.mubr.bf16.gmra.mrb[0].mxu0 %v365
  %v581 = vpop.f32.mrb[0].mxu0
  %v582 = vadd.f32 0.0, %v581
  %v583 = vpop.f32.mrb[0].mxu0
  %v584 = vpop.f32.mrb[0].mxu0
  %v585 = vadd.f32 0.0, %v584
  %v586 = vpop.f32.mrb[0].mxu0
  %587 = vmatprep.mubr.bf16.mxu0 0
  %588 = vmatmul.mubr.bf16.gmra.mrb[0].mxu0 %v366
  %v589 = vpop.f32.mrb[0].mxu0
  %v590 = vadd.f32 0.0, %v589
  %v591 = vpop.f32.mrb[0].mxu0
  %v592 = vpop.f32.mrb[0].mxu0
  %v593 = vadd.f32 0.0, %v592
  %v594 = vpop.f32.mrb[0].mxu0
  %595 = vmatprep.mubr.bf16.mxu0 0
  %596 = vmatmul.mubr.bf16.gmra.mrb[0].mxu0 %v367
  %v597 = vpop.f32.mrb[0].mxu0
  %v598 = vadd.f32 0.0, %v597
  %v599 = vpop.f32.mrb[0].mxu0
  %v600 = vpop.f32.mrb[0].mxu0
  %v601 = vadd.f32 0.0, %v600
  %v602 = vpop.f32.mrb[0].mxu0
  %603 = vmatprep.mubr.bf16.mxu0 0
  %604 = vmatmul.mubr.bf16.gmra.mrb[0].mxu0 %v368
  %v605 = vpop.f32.mrb[0].mxu0
  %v606 = vadd.f32 0.0, %v605
  %v607 = vpop.f32.mrb[0].mxu0
  %v608 = vpop.f32.mrb[0].mxu0
  %v609 = vadd.f32 0.0, %v608
  %v610 = vpop.f32.mrb[0].mxu0
  %611 = vmatprep.mubr.bf16.mxu0 0
  %612 = vmatmul.mubr.bf16.gmra.mrb[0].mxu0 %v369
  %v613 = vpop.f32.mrb[0].mxu0
  %v614 = vadd.f32 0.0, %v613
  %v615 = vpop.f32.mrb[0].mxu0
  %v616 = vpop.f32.mrb[0].mxu0
  %v617 = vadd.f32 0.0, %v616
  %v618 = vpop.f32.mrb[0].mxu0
  %619 = vmatprep.mubr.bf16.mxu0 0
  %620 = vmatmul.mubr.bf16.gmra.mrb[0].mxu0 %v370
  %v621 = vpop.f32.mrb[0].mxu0
  %v622 = vadd.f32 0.0, %v621
  %v623 = vpop.f32.mrb[0].mxu0
  %v624 = vpop.f32.mrb[0].mxu0
  %v625 = vadd.f32 0.0, %v624
  %v626 = vpop.f32.mrb[0].mxu0
  %627 = vmatprep.mubr.bf16.mxu0 0
  %628 = vmatmul.mubr.bf16.gmra.mrb[0].mxu0 %v371
  %v629 = vpop.f32.mrb[0].mxu0
  %v630 = vadd.f32 0.0, %v629
  %v631 = vpop.f32.mrb[0].mxu0
  %v632 = vpop.f32.mrb[0].mxu0
  %v633 = vadd.f32 0.0, %v632
  %v634 = vpop.f32.mrb[0].mxu0
  %635 = vmatprep.mubr.bf16.mxu0 0
  %636 = vmatmul.mubr.bf16.gmra.mrb[0].mxu0 %v372
  %v637 = vpop.f32.mrb[0].mxu0
  %v638 = vadd.f32 0.0, %v637
  %v639 = vpop.f32.mrb[0].mxu0
  %v640 = vpop.f32.mrb[0].mxu0
  %v641 = vadd.f32 0.0, %v640
  %v642 = vpop.f32.mrb[0].mxu0
  %643 = vmatprep.mubr.bf16.mxu0 0
  %644 = vmatmul.mubr.bf16.gmra.mrb[0].mxu0 %v373
  %v645 = vpop.f32.mrb[0].mxu0
  %v646 = vadd.f32 0.0, %v645
  %v647 = vpop.f32.mrb[0].mxu0
  %v648 = vpop.f32.mrb[0].mxu0
  %v649 = vadd.f32 0.0, %v648
  %v650 = vpop.f32.mrb[0].mxu0
  %651 = vmatprep.mubr.bf16.mxu0 0
  %652 = vmatmul.mubr.bf16.gmra.mrb[0].mxu0 %v374
  %v653 = vpop.f32.mrb[0].mxu0
  %v654 = vadd.f32 0.0, %v653
  %v655 = vpop.f32.mrb[0].mxu0
  %v656 = vpop.f32.mrb[0].mxu0
  %v657 = vadd.f32 0.0, %v656
  %v658 = vpop.f32.mrb[0].mxu0
  %659 = vmatprep.mubr.bf16.mxu0 0
  %660 = vmatmul.mubr.bf16.gmra.mrb[0].mxu0 %v375
  %v661 = vpop.f32.mrb[0].mxu0
  %v662 = vadd.f32 0.0, %v661
  %v663 = vpop.f32.mrb[0].mxu0
  %v664 = vpop.f32.mrb[0].mxu0
  %v665 = vadd.f32 0.0, %v664
  %v666 = vpop.f32.mrb[0].mxu0
  %667 = vmatprep.mubr.bf16.mxu0 0
  %668 = vmatmul.mubr.bf16.gmra.mrb[0].mxu0 %v376
  %v669 = vpop.f32.mrb[0].mxu0
  %v670 = vadd.f32 0.0, %v669
  %v671 = vpop.f32.mrb[0].mxu0
  %v672 = vpop.f32.mrb[0].mxu0
  %v673 = vadd.f32 0.0, %v672
  %v674 = vpop.f32.mrb[0].mxu0
  %675 = vmatprep.mubr.bf16.mxu0 0
  %676 = vmatmul.mubr.bf16.gmra.mrb[0].mxu0 %v377
  %v677 = vpop.f32.mrb[0].mxu0
  %v678 = vadd.f32 0.0, %v677
  %v679 = vpop.f32.mrb[0].mxu0
  %v680 = vpop.f32.mrb[0].mxu0
  %v681 = vadd.f32 0.0, %v680
  %v682 = vpop.f32.mrb[0].mxu0
  %683 = vmatprep.mubr.bf16.mxu0 0
  %684 = vmatmul.mubr.bf16.gmra.mrb[0].mxu0 %v378
  %v685 = vpop.f32.mrb[0].mxu0
  %v686 = vadd.f32 0.0, %v685
  %v687 = vpop.f32.mrb[0].mxu0
  %v688 = vpop.f32.mrb[0].mxu0
  %v689 = vadd.f32 0.0, %v688
  %v690 = vpop.f32.mrb[0].mxu0
  %691 = vmatprep.mubr.bf16.mxu0 0
  %692 = vmatmul.mubr.bf16.gmra.mrb[0].mxu0 %v379
  %v693 = vpop.f32.mrb[0].mxu0
  %v694 = vadd.f32 0.0, %v693
  %v695 = vpop.f32.mrb[0].mxu0
  %v696 = vpop.f32.mrb[0].mxu0
  %v697 = vadd.f32 0.0, %v696
  %v698 = vpop.f32.mrb[0].mxu0
  %699 = vmatprep.mubr.bf16.mxu0 0
  %700 = vmatmul.mubr.bf16.gmra.mrb[0].mxu0 %v380
  %v701 = vpop.f32.mrb[0].mxu0
  %v702 = vadd.f32 0.0, %v701
  %v703 = vpop.f32.mrb[0].mxu0
  %v704 = vpop.f32.mrb[0].mxu0
  %v705 = vadd.f32 0.0, %v704
  %v706 = vpop.f32.mrb[0].mxu0
  %707 = vmatprep.mubr.bf16.mxu0 0
  %708 = vmatmul.mubr.bf16.gmra.mrb[0].mxu0 %v381
  %v709 = vpop.f32.mrb[0].mxu0
  %v710 = vadd.f32 0.0, %v709
  %v711 = vpop.f32.mrb[0].mxu0
  %v712 = vpop.f32.mrb[0].mxu0
  %v713 = vadd.f32 0.0, %v712
  %v714 = vpop.f32.mrb[0].mxu0
  %715 = vmatprep.mubr.bf16.mxu0 0
  %716 = vmatmul.mubr.bf16.gmra.mrb[0].mxu0 %v382
  %v717 = vpop.f32.mrb[0].mxu0
  %v718 = vadd.f32 0.0, %v717
  %v719 = vpop.f32.mrb[0].mxu0
  %v720 = vpop.f32.mrb[0].mxu0
  %v721 = vadd.f32 0.0, %v720
  %v722 = vpop.f32.mrb[0].mxu0
  %723 = vmatprep.mubr.bf16.mxu0 0
  %724 = vmatmul.mubr.bf16.gmra.mrb[0].mxu0 %v383
  %v725 = vpop.f32.mrb[0].mxu0
  %v726 = vadd.f32 0.0, %v725
  %v727 = vpop.f32.mrb[0].mxu0
  %v728 = vpop.f32.mrb[0].mxu0
  %v729 = vadd.f32 0.0, %v728
  %v730 = vpop.f32.mrb[0].mxu0
  %731 = vmatprep.mubr.bf16.mxu0 0
  %732 = vmatmul.mubr.bf16.gmra.mrb[0].mxu0 %v384
  %v733 = vpop.f32.mrb[0].mxu0
  %v734 = vadd.f32 0.0, %v733
  %v735 = vpop.f32.mrb[0].mxu0
  %v736 = vpop.f32.mrb[0].mxu0
  %v737 = vadd.f32 0.0, %v736
  %v738 = vpop.f32.mrb[0].mxu0
  %739 = vmatprep.mubr.bf16.mxu0 0
  %740 = vmatmul.mubr.bf16.gmra.mrb[0].mxu0 %v385
  %v741 = vpop.f32.mrb[0].mxu0
  %v742 = vadd.f32 0.0, %v741
  %v743 = vpop.f32.mrb[0].mxu0
  %v744 = vpop.f32.mrb[0].mxu0
  %v745 = vadd.f32 0.0, %v744
  %v746 = vpop.f32.mrb[0].mxu0
  %747 = vmatprep.mubr.bf16.mxu0 0
  %748 = vmatmul.mubr.bf16.gmra.mrb[0].mxu0 %v386
  %v749 = vpop.f32.mrb[0].mxu0
  %v750 = vadd.f32 0.0, %v749
  %v751 = vpop.f32.mrb[0].mxu0
  %v752 = vpop.f32.mrb[0].mxu0
  %v753 = vadd.f32 0.0, %v752
  %v754 = vpop.f32.mrb[0].mxu0
  %755 = vdwg.mxu0
  %v756 = vadd.f32 %v83, %v502
  %v757 = vadd.f32 %v84, %v505
  %v758 = vadd.f32 %v85, %v510
  %v759 = vadd.f32 %v86, %v513
  %v760 = vadd.f32 %v87, %v518
  %v761 = vadd.f32 %v88, %v521
  %v762 = vadd.f32 %v89, %v526
  %v763 = vadd.f32 %v90, %v529
  %v764 = vadd.f32 %v91, %v534
  %v765 = vadd.f32 %v92, %v537
  %v766 = vadd.f32 %v93, %v542
  %v767 = vadd.f32 %v94, %v545
  %v768 = vadd.f32 %v95, %v550
  %v769 = vadd.f32 %v96, %v553
  %v770 = vadd.f32 %v97, %v558
  %v771 = vadd.f32 %v98, %v561
  %v772 = vadd.f32 %v99, %v566
  %v773 = vadd.f32 %v100, %v569
  %v774 = vadd.f32 %v101, %v574
  %v775 = vadd.f32 %v102, %v577
  %v776 = vadd.f32 %v103, %v582
  %v777 = vadd.f32 %v104, %v585
  %v778 = vadd.f32 %v105, %v590
  %v779 = vadd.f32 %v106, %v593
  %v780 = vadd.f32 %v107, %v598
  %v781 = vadd.f32 %v108, %v601
  %v782 = vadd.f32 %v109, %v606
  %v783 = vadd.f32 %v110, %v609
  %v784 = vadd.f32 %v111, %v614
  %v785 = vadd.f32 %v112, %v617
  %v786 = vadd.f32 %v113, %v622
  %v787 = vadd.f32 %v114, %v625
  %v788 = vadd.f32 %v115, %v630
  %v789 = vadd.f32 %v116, %v633
  %v790 = vadd.f32 %v117, %v638
  %v791 = vadd.f32 %v118, %v641
  %v792 = vadd.f32 %v119, %v646
  %v793 = vadd.f32 %v120, %v649
  %v794 = vadd.f32 %v121, %v654
  %v795 = vadd.f32 %v122, %v657
  %v796 = vadd.f32 %v123, %v662
  %v797 = vadd.f32 %v124, %v665
  %v798 = vadd.f32 %v125, %v670
  %v799 = vadd.f32 %v126, %v673
  %v800 = vadd.f32 %v127, %v678
  %v801 = vadd.f32 %v128, %v681
  %v802 = vadd.f32 %v129, %v686
  %v803 = vadd.f32 %v130, %v689
  %v804 = vadd.f32 %v131, %v694
  %v805 = vadd.f32 %v132, %v697
  %v806 = vadd.f32 %v133, %v702
  %v807 = vadd.f32 %v134, %v705
  %v808 = vadd.f32 %v135, %v710
  %v809 = vadd.f32 %v136, %v713
  %v810 = vadd.f32 %v137, %v718
  %v811 = vadd.f32 %v138, %v721
  %v812 = vadd.f32 %v139, %v726
  %v813 = vadd.f32 %v140, %v729
  %v814 = vadd.f32 %v141, %v734
  %v815 = vadd.f32 %v142, %v737
  %v816 = vadd.f32 %v143, %v742
  %v817 = vadd.f32 %v144, %v745
  %v818 = vadd.f32 %v145, %v750
  %v819 = vadd.f32 %v146, %v753
  %820 = vst [vmem:[#allocation2] sm:$0xff] %v756
  %821 = vst [vmem:[#allocation2 + $0x8] sm:$0xff] %v757
  %822 = vst [vmem:[#allocation2 + $0x10] sm:$0xff] %v758
  %823 = vst [vmem:[#allocation2 + $0x18] sm:$0xff] %v759
  %824 = vst [vmem:[#allocation2 + $0x20] sm:$0xff] %v760
  %825 = vst [vmem:[#allocation2 + $0x28] sm:$0xff] %v761
  %826 = vst [vmem:[#allocation2 + $0x30] sm:$0xff] %v762
  %827 = vst [vmem:[#allocation2 + $0x38] sm:$0xff] %v763
  %828 = vst [vmem:[#allocation2 + $0x40] sm:$0xff] %v764
  %829 = vst [vmem:[#allocation2 + $0x48] sm:$0xff] %v765
  %830 = vst [vmem:[#allocation2 + $0x50] sm:$0xff] %v766
  %831 = vst [vmem:[#allocation2 + $0x58] sm:$0xff] %v767
  %832 = vst [vmem:[#allocation2 + $0x60] sm:$0xff] %v768
  %833 = vst [vmem:[#allocation2 + $0x68] sm:$0xff] %v769
  %834 = vst [vmem:[#allocation2 + $0x70] sm:$0xff] %v770
  %835 = vst [vmem:[#allocation2 + $0x78] sm:$0xff] %v771
  %836 = vst [vmem:[#allocation2 + $0x80] sm:$0xff] %v772
  %837 = vst [vmem:[#allocation2 + $0x88] sm:$0xff] %v773
  %838 = vst [vmem:[#allocation2 + $0x90] sm:$0xff] %v774
  %839 = vst [vmem:[#allocation2 + $0x98] sm:$0xff] %v775
  %840 = vst [vmem:[#allocation2 + $0xa0] sm:$0xff] %v776
  %841 = vst [vmem:[#allocation2 + $0xa8] sm:$0xff] %v777
  %842 = vst [vmem:[#allocation2 + $0xb0] sm:$0xff] %v778
  %843 = vst [vmem:[#allocation2 + $0xb8] sm:$0xff] %v779
  %844 = vst [vmem:[#allocation2 + $0xc0] sm:$0xff] %v780
  %845 = vst [vmem:[#allocation2 + $0xc8] sm:$0xff] %v781
  %846 = vst [vmem:[#allocation2 + $0xd0] sm:$0xff] %v782
  %847 = vst [vmem:[#allocation2 + $0xd8] sm:$0xff] %v783
  %848 = vst [vmem:[#allocation2 + $0xe0] sm:$0xff] %v784
  %849 = vst [vmem:[#allocation2 + $0xe8] sm:$0xff] %v785
  %850 = vst [vmem:[#allocation2 + $0xf0] sm:$0xff] %v786
  %851 = vst [vmem:[#allocation2 + $0xf8] sm:$0xff] %v787
  %852 = vst [vmem:[#allocation2 + $0x100] sm:$0xff] %v788
  %853 = vst [vmem:[#allocation2 + $0x108] sm:$0xff] %v789
  %854 = vst [vmem:[#allocation2 + $0x110] sm:$0xff] %v790
  %855 = vst [vmem:[#allocation2 + $0x118] sm:$0xff] %v791
  %856 = vst [vmem:[#allocation2 + $0x120] sm:$0xff] %v792
  %857 = vst [vmem:[#allocation2 + $0x128] sm:$0xff] %v793
  %858 = vst [vmem:[#allocation2 + $0x130] sm:$0xff] %v794
  %859 = vst [vmem:[#allocation2 + $0x138] sm:$0xff] %v795
  %860 = vst [vmem:[#allocation2 + $0x140] sm:$0xff] %v796
  %861 = vst [vmem:[#allocation2 + $0x148] sm:$0xff] %v797
  %862 = vst [vmem:[#allocation2 + $0x150] sm:$0xff] %v798
  %863 = vst [vmem:[#allocation2 + $0x158] sm:$0xff] %v799
  %864 = vst [vmem:[#allocation2 + $0x160] sm:$0xff] %v800
  %865 = vst [vmem:[#allocation2 + $0x168] sm:$0xff] %v801
  %866 = vst [vmem:[#allocation2 + $0x170] sm:$0xff] %v802
  %867 = vst [vmem:[#allocation2 + $0x178] sm:$0xff] %v803
  %868 = vst [vmem:[#allocation2 + $0x180] sm:$0xff] %v804
  %869 = vst [vmem:[#allocation2 + $0x188] sm:$0xff] %v805
  %870 = vst [vmem:[#allocation2 + $0x190] sm:$0xff] %v806
  %871 = vst [vmem:[#allocation2 + $0x198] sm:$0xff] %v807
  %872 = vst [vmem:[#allocation2 + $0x1a0] sm:$0xff] %v808
  %873 = vst [vmem:[#allocation2 + $0x1a8] sm:$0xff] %v809
  %874 = vst [vmem:[#allocation2 + $0x1b0] sm:$0xff] %v810
  %875 = vst [vmem:[#allocation2 + $0x1b8] sm:$0xff] %v811
  %876 = vst [vmem:[#allocation2 + $0x1c0] sm:$0xff] %v812
  %877 = vst [vmem:[#allocation2 + $0x1c8] sm:$0xff] %v813
  %878 = vst [vmem:[#allocation2 + $0x1d0] sm:$0xff] %v814
  %879 = vst [vmem:[#allocation2 + $0x1d8] sm:$0xff] %v815
  %880 = vst [vmem:[#allocation2 + $0x1e0] sm:$0xff] %v816
  %881 = vst [vmem:[#allocation2 + $0x1e8] sm:$0xff] %v817
  %882 = vst [vmem:[#allocation2 + $0x1f0] sm:$0xff] %v818
  %883 = vst [vmem:[#allocation2 + $0x1f8] sm:$0xff] %v819
  // Predicated region
  $region18: #{_lambda_.5} parent=0 // pred_check
    %p884 = pneg %p15
  $region19: #{_lambda_.5} parent=0 // pred_check_branch
    %886 = sbr.rel (%p884) target = $region21
  $region20: #{_lambda_.5} parent=0 // pred_region
    %v887 = vld [vmem:[#allocation2] sm:$0xff]
    %v888 = vld [vmem:[#allocation2 + $0x8] sm:$0xff]
    %v889 = vld [vmem:[#allocation2 + $0x10] sm:$0xff]
    %v890 = vld [vmem:[#allocation2 + $0x18] sm:$0xff]
    %v891 = vld [vmem:[#allocation2 + $0x20] sm:$0xff]
    %v892 = vld [vmem:[#allocation2 + $0x28] sm:$0xff]
    %v893 = vld [vmem:[#allocation2 + $0x30] sm:$0xff]
    %v894 = vld [vmem:[#allocation2 + $0x38] sm:$0xff]
    %v895 = vld [vmem:[#allocation2 + $0x40] sm:$0xff]
    %v896 = vld [vmem:[#allocation2 + $0x48] sm:$0xff]
    %v897 = vld [vmem:[#allocation2 + $0x50] sm:$0xff]
    %v898 = vld [vmem:[#allocation2 + $0x58] sm:$0xff]
    %v899 = vld [vmem:[#allocation2 + $0x60] sm:$0xff]
    %v900 = vld [vmem:[#allocation2 + $0x68] sm:$0xff]
    %v901 = vld [vmem:[#allocation2 + $0x70] sm:$0xff]
    %v902 = vld [vmem:[#allocation2 + $0x78] sm:$0xff]
    %v903 = vld [vmem:[#allocation2 + $0x80] sm:$0xff]
    %v904 = vld [vmem:[#allocation2 + $0x88] sm:$0xff]
    %v905 = vld [vmem:[#allocation2 + $0x90] sm:$0xff]
    %v906 = vld [vmem:[#allocation2 + $0x98] sm:$0xff]
    %v907 = vld [vmem:[#allocation2 + $0xa0] sm:$0xff]
    %v908 = vld [vmem:[#allocation2 + $0xa8] sm:$0xff]
    %v909 = vld [vmem:[#allocation2 + $0xb0] sm:$0xff]
    %v910 = vld [vmem:[#allocation2 + $0xb8] sm:$0xff]
    %v911 = vld [vmem:[#allocation2 + $0xc0] sm:$0xff]
    %v912 = vld [vmem:[#allocation2 + $0xc8] sm:$0xff]
    %v913 = vld [vmem:[#allocation2 + $0xd0] sm:$0xff]
    %v914 = vld [vmem:[#allocation2 + $0xd8] sm:$0xff]
    %v915 = vld [vmem:[#allocation2 + $0xe0] sm:$0xff]
    %v916 = vld [vmem:[#allocation2 + $0xe8] sm:$0xff]
    %v917 = vld [vmem:[#allocation2 + $0xf0] sm:$0xff]
    %v918 = vld [vmem:[#allocation2 + $0xf8] sm:$0xff]
    %v919 = vld [vmem:[#allocation2 + $0x100] sm:$0xff]
    %v920 = vld [vmem:[#allocation2 + $0x108] sm:$0xff]
    %v921 = vld [vmem:[#allocation2 + $0x110] sm:$0xff]
    %v922 = vld [vmem:[#allocation2 + $0x118] sm:$0xff]
    %v923 = vld [vmem:[#allocation2 + $0x120] sm:$0xff]
    %v924 = vld [vmem:[#allocation2 + $0x128] sm:$0xff]
    %v925 = vld [vmem:[#allocation2 + $0x130] sm:$0xff]
    %v926 = vld [vmem:[#allocation2 + $0x138] sm:$0xff]
    %v927 = vld [vmem:[#allocation2 + $0x140] sm:$0xff]
    %v928 = vld [vmem:[#allocation2 + $0x148] sm:$0xff]
    %v929 = vld [vmem:[#allocation2 + $0x150] sm:$0xff]
    %v930 = vld [vmem:[#allocation2 + $0x158] sm:$0xff]
    %v931 = vld [vmem:[#allocation2 + $0x160] sm:$0xff]
    %v932 = vld [vmem:[#allocation2 + $0x168] sm:$0xff]
    %v933 = vld [vmem:[#allocation2 + $0x170] sm:$0xff]
    %v934 = vld [vmem:[#allocation2 + $0x178] sm:$0xff]
    %v935 = vld [vmem:[#allocation2 + $0x180] sm:$0xff]
    %v936 = vld [vmem:[#allocation2 + $0x188] sm:$0xff]
    %v937 = vld [vmem:[#allocation2 + $0x190] sm:$0xff]
    %v938 = vld [vmem:[#allocation2 + $0x198] sm:$0xff]
    %v939 = vld [vmem:[#allocation2 + $0x1a0] sm:$0xff]
    %v940 = vld [vmem:[#allocation2 + $0x1a8] sm:$0xff]
    %v941 = vld [vmem:[#allocation2 + $0x1b0] sm:$0xff]
    %v942 = vld [vmem:[#allocation2 + $0x1b8] sm:$0xff]
    %v943 = vld [vmem:[#allocation2 + $0x1c0] sm:$0xff]
    %v944 = vld [vmem:[#allocation2 + $0x1c8] sm:$0xff]
    %v945 = vld [vmem:[#allocation2 + $0x1d0] sm:$0xff]
    %v946 = vld [vmem:[#allocation2 + $0x1d8] sm:$0xff]
    %v947 = vld [vmem:[#allocation2 + $0x1e0] sm:$0xff]
    %v948 = vld [vmem:[#allocation2 + $0x1e8] sm:$0xff]
    %v949 = vld [vmem:[#allocation2 + $0x1f0] sm:$0xff]
    %v950 = vld [vmem:[#allocation2 + $0x1f8] sm:$0xff]
    %v951 = vld [vmem:[%s2] sm:$0x1]
    %v953 = vlaneseq
    %v954 = vshrl.u32 %v953, 7
    %v955 = vsub.s32 0, %v954
    %v956 = vrot.slane %v951, %v955
    %v958 = vadd.f32 %v887, %v956
    %v959 = vadd.f32 %v888, %v956
    %v960 = vadd.f32 %v889, %v956
    %v961 = vadd.f32 %v890, %v956
    %v962 = vadd.f32 %v891, %v956
    %v963 = vadd.f32 %v892, %v956
    %v964 = vadd.f32 %v893, %v956
    %v965 = vadd.f32 %v894, %v956
    %v966 = vadd.f32 %v895, %v956
    %v967 = vadd.f32 %v896, %v956
    %v968 = vadd.f32 %v897, %v956
    %v969 = vadd.f32 %v898, %v956
    %v970 = vadd.f32 %v899, %v956
    %v971 = vadd.f32 %v900, %v956
    %v972 = vadd.f32 %v901, %v956
    %v973 = vadd.f32 %v902, %v956
    %v974 = vadd.f32 %v903, %v956
    %v975 = vadd.f32 %v904, %v956
    %v976 = vadd.f32 %v905, %v956
    %v977 = vadd.f32 %v906, %v956
    %v978 = vadd.f32 %v907, %v956
    %v979 = vadd.f32 %v908, %v956
    %v980 = vadd.f32 %v909, %v956
    %v981 = vadd.f32 %v910, %v956
    %v982 = vadd.f32 %v911, %v956
    %v983 = vadd.f32 %v912, %v956
    %v984 = vadd.f32 %v913, %v956
    %v985 = vadd.f32 %v914, %v956
    %v986 = vadd.f32 %v915, %v956
    %v987 = vadd.f32 %v916, %v956
    %v988 = vadd.f32 %v917, %v956
    %v989 = vadd.f32 %v918, %v956
    %v990 = vadd.f32 %v919, %v956
    %v991 = vadd.f32 %v920, %v956
    %v992 = vadd.f32 %v921, %v956
    %v993 = vadd.f32 %v922, %v956
    %v994 = vadd.f32 %v923, %v956
    %v995 = vadd.f32 %v924, %v956
    %v996 = vadd.f32 %v925, %v956
    %v997 = vadd.f32 %v926, %v956
    %v998 = vadd.f32 %v927, %v956
    %v999 = vadd.f32 %v928, %v956
    %v1000 = vadd.f32 %v929, %v956
    %v1001 = vadd.f32 %v930, %v956
    %v1002 = vadd.f32 %v931, %v956
    %v1003 = vadd.f32 %v932, %v956
    %v1004 = vadd.f32 %v933, %v956
    %v1005 = vadd.f32 %v934, %v956
    %v1006 = vadd.f32 %v935, %v956
    %v1007 = vadd.f32 %v936, %v956
    %v1008 = vadd.f32 %v937, %v956
    %v1009 = vadd.f32 %v938, %v956
    %v1010 = vadd.f32 %v939, %v956
    %v1011 = vadd.f32 %v940, %v956
    %v1012 = vadd.f32 %v941, %v956
    %v1013 = vadd.f32 %v942, %v956
    %v1014 = vadd.f32 %v943, %v956
    %v1015 = vadd.f32 %v944, %v956
    %v1016 = vadd.f32 %v945, %v956
    %v1017 = vadd.f32 %v946, %v956
    %v1018 = vadd.f32 %v947, %v956
    %v1019 = vadd.f32 %v948, %v956
    %v1020 = vadd.f32 %v949, %v956
    %v1021 = vadd.f32 %v950, %v956
    %v1022 = vmax.f32 %v958, 0.0
    %v1023 = vmax.f32 %v959, 0.0
    %v1024 = vmax.f32 %v960, 0.0
    %v1025 = vmax.f32 %v961, 0.0
    %v1026 = vmax.f32 %v962, 0.0
    %v1027 = vmax.f32 %v963, 0.0
    %v1028 = vmax.f32 %v964, 0.0
    %v1029 = vmax.f32 %v965, 0.0
    %v1030 = vmax.f32 %v966, 0.0
    %v1031 = vmax.f32 %v967, 0.0
    %v1032 = vmax.f32 %v968, 0.0
    %v1033 = vmax.f32 %v969, 0.0
    %v1034 = vmax.f32 %v970, 0.0
    %v1035 = vmax.f32 %v971, 0.0
    %v1036 = vmax.f32 %v972, 0.0
    %v1037 = vmax.f32 %v973, 0.0
    %v1038 = vmax.f32 %v974, 0.0
    %v1039 = vmax.f32 %v975, 0.0
    %v1040 = vmax.f32 %v976, 0.0
    %v1041 = vmax.f32 %v977, 0.0
    %v1042 = vmax.f32 %v978, 0.0
    %v1043 = vmax.f32 %v979, 0.0
    %v1044 = vmax.f32 %v980, 0.0
    %v1045 = vmax.f32 %v981, 0.0
    %v1046 = vmax.f32 %v982, 0.0
    %v1047 = vmax.f32 %v983, 0.0
    %v1048 = vmax.f32 %v984, 0.0
    %v1049 = vmax.f32 %v985, 0.0
    %v1050 = vmax.f32 %v986, 0.0
    %v1051 = vmax.f32 %v987, 0.0
    %v1052 = vmax.f32 %v988, 0.0
    %v1053 = vmax.f32 %v989, 0.0
    %v1054 = vmax.f32 %v990, 0.0
    %v1055 = vmax.f32 %v991, 0.0
    %v1056 = vmax.f32 %v992, 0.0
    %v1057 = vmax.f32 %v993, 0.0
    %v1058 = vmax.f32 %v994, 0.0
    %v1059 = vmax.f32 %v995, 0.0
    %v1060 = vmax.f32 %v996, 0.0
    %v1061 = vmax.f32 %v997, 0.0
    %v1062 = vmax.f32 %v998, 0.0
    %v1063 = vmax.f32 %v999, 0.0
    %v1064 = vmax.f32 %v1000, 0.0
    %v1065 = vmax.f32 %v1001, 0.0
    %v1066 = vmax.f32 %v1002, 0.0
    %v1067 = vmax.f32 %v1003, 0.0
    %v1068 = vmax.f32 %v1004, 0.0
    %v1069 = vmax.f32 %v1005, 0.0
    %v1070 = vmax.f32 %v1006, 0.0
    %v1071 = vmax.f32 %v1007, 0.0
    %v1072 = vmax.f32 %v1008, 0.0
    %v1073 = vmax.f32 %v1009, 0.0
    %v1074 = vmax.f32 %v1010, 0.0
    %v1075 = vmax.f32 %v1011, 0.0
    %v1076 = vmax.f32 %v1012, 0.0
    %v1077 = vmax.f32 %v1013, 0.0
    %v1078 = vmax.f32 %v1014, 0.0
    %v1079 = vmax.f32 %v1015, 0.0
    %v1080 = vmax.f32 %v1016, 0.0
    %v1081 = vmax.f32 %v1017, 0.0
    %v1082 = vmax.f32 %v1018, 0.0
    %v1083 = vmax.f32 %v1019, 0.0
    %v1084 = vmax.f32 %v1020, 0.0
    %v1085 = vmax.f32 %v1021, 0.0
    %v1086 = vpack.c.bf16 %v1023, %v1022
    %v1087 = vpack.c.bf16 %v1025, %v1024
    %v1088 = vpack.c.bf16 %v1027, %v1026
    %v1089 = vpack.c.bf16 %v1029, %v1028
    %v1090 = vpack.c.bf16 %v1031, %v1030
    %v1091 = vpack.c.bf16 %v1033, %v1032
    %v1092 = vpack.c.bf16 %v1035, %v1034
    %v1093 = vpack.c.bf16 %v1037, %v1036
    %v1094 = vpack.c.bf16 %v1039, %v1038
    %v1095 = vpack.c.bf16 %v1041, %v1040
    %v1096 = vpack.c.bf16 %v1043, %v1042
    %v1097 = vpack.c.bf16 %v1045, %v1044
    %v1098 = vpack.c.bf16 %v1047, %v1046
    %v1099 = vpack.c.bf16 %v1049, %v1048
    %v1100 = vpack.c.bf16 %v1051, %v1050
    %v1101 = vpack.c.bf16 %v1053, %v1052
    %v1102 = vpack.c.bf16 %v1055, %v1054
    %v1103 = vpack.c.bf16 %v1057, %v1056
    %v1104 = vpack.c.bf16 %v1059, %v1058
    %v1105 = vpack.c.bf16 %v1061, %v1060
    %v1106 = vpack.c.bf16 %v1063, %v1062
    %v1107 = vpack.c.bf16 %v1065, %v1064
    %v1108 = vpack.c.bf16 %v1067, %v1066
    %v1109 = vpack.c.bf16 %v1069, %v1068
    %v1110 = vpack.c.bf16 %v1071, %v1070
    %v1111 = vpack.c.bf16 %v1073, %v1072
    %v1112 = vpack.c.bf16 %v1075, %v1074
    %v1113 = vpack.c.bf16 %v1077, %v1076
    %v1114 = vpack.c.bf16 %v1079, %v1078
    %v1115 = vpack.c.bf16 %v1081, %v1080
    %v1116 = vpack.c.bf16 %v1083, %v1082
    %v1117 = vpack.c.bf16 %v1085, %v1084
    %v1150 = vunpack.c.l.b16 %v1086
    %v1151 = vunpack.c.h.b16 %v1086
    %v1152 = vunpack.c.l.b16 %v1087
    %v1153 = vunpack.c.h.b16 %v1087
    %v1154 = vunpack.c.l.b16 %v1088
    %v1155 = vunpack.c.h.b16 %v1088
    %v1156 = vunpack.c.l.b16 %v1089
    %v1157 = vunpack.c.h.b16 %v1089
    %v1158 = vunpack.c.l.b16 %v1090
    %v1159 = vunpack.c.h.b16 %v1090
    %v1160 = vunpack.c.l.b16 %v1091
    %v1161 = vunpack.c.h.b16 %v1091
    %v1162 = vunpack.c.l.b16 %v1092
    %v1163 = vunpack.c.h.b16 %v1092
    %v1164 = vunpack.c.l.b16 %v1093
    %v1165 = vunpack.c.h.b16 %v1093
    %v1166 = vunpack.c.l.b16 %v1094
    %v1167 = vunpack.c.h.b16 %v1094
    %v1168 = vunpack.c.l.b16 %v1095
    %v1169 = vunpack.c.h.b16 %v1095
    %v1170 = vunpack.c.l.b16 %v1096
    %v1171 = vunpack.c.h.b16 %v1096
    %v1172 = vunpack.c.l.b16 %v1097
    %v1173 = vunpack.c.h.b16 %v1097
    %v1174 = vunpack.c.l.b16 %v1098
    %v1175 = vunpack.c.h.b16 %v1098
    %v1176 = vunpack.c.l.b16 %v1099
    %v1177 = vunpack.c.h.b16 %v1099
    %v1178 = vunpack.c.l.b16 %v1100
    %v1179 = vunpack.c.h.b16 %v1100
    %v1180 = vunpack.c.l.b16 %v1101
    %v1181 = vunpack.c.h.b16 %v1101
    %v1182 = vunpack.c.l.b16 %v1102
    %v1183 = vunpack.c.h.b16 %v1102
    %v1184 = vunpack.c.l.b16 %v1103
    %v1185 = vunpack.c.h.b16 %v1103
    %v1186 = vunpack.c.l.b16 %v1104
    %v1187 = vunpack.c.h.b16 %v1104
    %v1188 = vunpack.c.l.b16 %v1105
    %v1189 = vunpack.c.h.b16 %v1105
    %v1190 = vunpack.c.l.b16 %v1106
    %v1191 = vunpack.c.h.b16 %v1106
    %v1192 = vunpack.c.l.b16 %v1107
    %v1193 = vunpack.c.h.b16 %v1107
    %v1194 = vunpack.c.l.b16 %v1108
    %v1195 = vunpack.c.h.b16 %v1108
    %v1196 = vunpack.c.l.b16 %v1109
    %v1197 = vunpack.c.h.b16 %v1109
    %v1198 = vunpack.c.l.b16 %v1110
    %v1199 = vunpack.c.h.b16 %v1110
    %v1200 = vunpack.c.l.b16 %v1111
    %v1201 = vunpack.c.h.b16 %v1111
    %v1202 = vunpack.c.l.b16 %v1112
    %v1203 = vunpack.c.h.b16 %v1112
    %v1204 = vunpack.c.l.b16 %v1113
    %v1205 = vunpack.c.h.b16 %v1113
    %v1206 = vunpack.c.l.b16 %v1114
    %v1207 = vunpack.c.h.b16 %v1114
    %v1208 = vunpack.c.l.b16 %v1115
    %v1209 = vunpack.c.h.b16 %v1115
    %v1210 = vunpack.c.l.b16 %v1116
    %v1211 = vunpack.c.h.b16 %v1116
    %v1212 = vunpack.c.l.b16 %v1117
    %v1213 = vunpack.c.h.b16 %v1117
    %v1214 = vpack.c.b16 %v1150, %v1150
    %v1215 = vpack.c.b16 %v1151, %v1151
    %v1216 = vpack.c.b16 %v1152, %v1152
    %v1217 = vpack.c.b16 %v1153, %v1153
    %v1218 = vpack.c.b16 %v1154, %v1154
    %v1219 = vpack.c.b16 %v1155, %v1155
    %v1220 = vpack.c.b16 %v1156, %v1156
    %v1221 = vpack.c.b16 %v1157, %v1157
    %v1222 = vpack.c.b16 %v1158, %v1158
    %v1223 = vpack.c.b16 %v1159, %v1159
    %v1224 = vpack.c.b16 %v1160, %v1160
    %v1225 = vpack.c.b16 %v1161, %v1161
    %v1226 = vpack.c.b16 %v1162, %v1162
    %v1227 = vpack.c.b16 %v1163, %v1163
    %v1228 = vpack.c.b16 %v1164, %v1164
    %v1229 = vpack.c.b16 %v1165, %v1165
    %v1230 = vpack.c.b16 %v1166, %v1166
    %v1231 = vpack.c.b16 %v1167, %v1167
    %v1232 = vpack.c.b16 %v1168, %v1168
    %v1233 = vpack.c.b16 %v1169, %v1169
    %v1234 = vpack.c.b16 %v1170, %v1170
    %v1235 = vpack.c.b16 %v1171, %v1171
    %v1236 = vpack.c.b16 %v1172, %v1172
    %v1237 = vpack.c.b16 %v1173, %v1173
    %v1238 = vpack.c.b16 %v1174, %v1174
    %v1239 = vpack.c.b16 %v1175, %v1175
    %v1240 = vpack.c.b16 %v1176, %v1176
    %v1241 = vpack.c.b16 %v1177, %v1177
    %v1242 = vpack.c.b16 %v1178, %v1178
    %v1243 = vpack.c.b16 %v1179, %v1179
    %v1244 = vpack.c.b16 %v1180, %v1180
    %v1245 = vpack.c.b16 %v1181, %v1181
    %v1246 = vpack.c.b16 %v1182, %v1182
    %v1247 = vpack.c.b16 %v1183, %v1183
    %v1248 = vpack.c.b16 %v1184, %v1184
    %v1249 = vpack.c.b16 %v1185, %v1185
    %v1250 = vpack.c.b16 %v1186, %v1186
    %v1251 = vpack.c.b16 %v1187, %v1187
    %v1252 = vpack.c.b16 %v1188, %v1188
    %v1253 = vpack.c.b16 %v1189, %v1189
    %v1254 = vpack.c.b16 %v1190, %v1190
    %v1255 = vpack.c.b16 %v1191, %v1191
    %v1256 = vpack.c.b16 %v1192, %v1192
    %v1257 = vpack.c.b16 %v1193, %v1193
    %v1258 = vpack.c.b16 %v1194, %v1194
    %v1259 = vpack.c.b16 %v1195, %v1195
    %v1260 = vpack.c.b16 %v1196, %v1196
    %v1261 = vpack.c.b16 %v1197, %v1197
    %v1262 = vpack.c.b16 %v1198, %v1198
    %v1263 = vpack.c.b16 %v1199, %v1199
    %v1264 = vpack.c.b16 %v1200, %v1200
    %v1265 = vpack.c.b16 %v1201, %v1201
    %v1266 = vpack.c.b16 %v1202, %v1202
    %v1267 = vpack.c.b16 %v1203, %v1203
    %v1268 = vpack.c.b16 %v1204, %v1204
    %v1269 = vpack.c.b16 %v1205, %v1205
    %v1270 = vpack.c.b16 %v1206, %v1206
    %v1271 = vpack.c.b16 %v1207, %v1207
    %v1272 = vpack.c.b16 %v1208, %v1208
    %v1273 = vpack.c.b16 %v1209, %v1209
    %v1274 = vpack.c.b16 %v1210, %v1210
    %v1275 = vpack.c.b16 %v1211, %v1211
    %v1276 = vpack.c.b16 %v1212, %v1212
    %v1277 = vpack.c.b16 %v1213, %v1213
    %1342 = vst [vmem:[%s3] sm:$0xf] %v1214
    %1343 = vst [vmem:[%s3 + $0x4] sm:$0xf] %v1215
    %1344 = vst [vmem:[%s3 + $0x8] sm:$0xf] %v1216
    %1345 = vst [vmem:[%s3 + $0xc] sm:$0xf] %v1217
    %1346 = vst [vmem:[%s3 + $0x10] sm:$0xf] %v1218
    %1347 = vst [vmem:[%s3 + $0x14] sm:$0xf] %v1219
    %1348 = vst [vmem:[%s3 + $0x18] sm:$0xf] %v1220
    %1349 = vst [vmem:[%s3 + $0x1c] sm:$0xf] %v1221
    %1350 = vst [vmem:[%s3 + $0x20] sm:$0xf] %v1222
    %1351 = vst [vmem:[%s3 + $0x24] sm:$0xf] %v1223
    %1352 = vst [vmem:[%s3 + $0x28] sm:$0xf] %v1224
    %1353 = vst [vmem:[%s3 + $0x2c] sm:$0xf] %v1225
    %1354 = vst [vmem:[%s3 + $0x30] sm:$0xf] %v1226
    %1355 = vst [vmem:[%s3 + $0x34] sm:$0xf] %v1227
    %1356 = vst [vmem:[%s3 + $0x38] sm:$0xf] %v1228
    %1357 = vst [vmem:[%s3 + $0x3c] sm:$0xf] %v1229
    %1358 = vst [vmem:[%s3 + $0x40] sm:$0xf] %v1230
    %1359 = vst [vmem:[%s3 + $0x44] sm:$0xf] %v1231
    %1360 = vst [vmem:[%s3 + $0x48] sm:$0xf] %v1232
    %1361 = vst [vmem:[%s3 + $0x4c] sm:$0xf] %v1233
    %1362 = vst [vmem:[%s3 + $0x50] sm:$0xf] %v1234
    %1363 = vst [vmem:[%s3 + $0x54] sm:$0xf] %v1235
    %1364 = vst [vmem:[%s3 + $0x58] sm:$0xf] %v1236
    %1365 = vst [vmem:[%s3 + $0x5c] sm:$0xf] %v1237
    %1366 = vst [vmem:[%s3 + $0x60] sm:$0xf] %v1238
    %1367 = vst [vmem:[%s3 + $0x64] sm:$0xf] %v1239
    %1368 = vst [vmem:[%s3 + $0x68] sm:$0xf] %v1240
    %1369 = vst [vmem:[%s3 + $0x6c] sm:$0xf] %v1241
    %1370 = vst [vmem:[%s3 + $0x70] sm:$0xf] %v1242
    %1371 = vst [vmem:[%s3 + $0x74] sm:$0xf] %v1243
    %1372 = vst [vmem:[%s3 + $0x78] sm:$0xf] %v1244
    %1373 = vst [vmem:[%s3 + $0x7c] sm:$0xf] %v1245
    %1374 = vst [vmem:[%s3 + $0x80] sm:$0xf] %v1246
    %1375 = vst [vmem:[%s3 + $0x84] sm:$0xf] %v1247
    %1376 = vst [vmem:[%s3 + $0x88] sm:$0xf] %v1248
    %1377 = vst [vmem:[%s3 + $0x8c] sm:$0xf] %v1249
    %1378 = vst [vmem:[%s3 + $0x90] sm:$0xf] %v1250
    %1379 = vst [vmem:[%s3 + $0x94] sm:$0xf] %v1251
    %1380 = vst [vmem:[%s3 + $0x98] sm:$0xf] %v1252
    %1381 = vst [vmem:[%s3 + $0x9c] sm:$0xf] %v1253
    %1382 = vst [vmem:[%s3 + $0xa0] sm:$0xf] %v1254
    %1383 = vst [vmem:[%s3 + $0xa4] sm:$0xf] %v1255
    %1384 = vst [vmem:[%s3 + $0xa8] sm:$0xf] %v1256
    %1385 = vst [vmem:[%s3 + $0xac] sm:$0xf] %v1257
    %1386 = vst [vmem:[%s3 + $0xb0] sm:$0xf] %v1258
    %1387 = vst [vmem:[%s3 + $0xb4] sm:$0xf] %v1259
    %1388 = vst [vmem:[%s3 + $0xb8] sm:$0xf] %v1260
    %1389 = vst [vmem:[%s3 + $0xbc] sm:$0xf] %v1261
    %1390 = vst [vmem:[%s3 + $0xc0] sm:$0xf] %v1262
    %1391 = vst [vmem:[%s3 + $0xc4] sm:$0xf] %v1263
    %1392 = vst [vmem:[%s3 + $0xc8] sm:$0xf] %v1264
    %1393 = vst [vmem:[%s3 + $0xcc] sm:$0xf] %v1265
    %1394 = vst [vmem:[%s3 + $0xd0] sm:$0xf] %v1266
    %1395 = vst [vmem:[%s3 + $0xd4] sm:$0xf] %v1267
    %1396 = vst [vmem:[%s3 + $0xd8] sm:$0xf] %v1268
    %1397 = vst [vmem:[%s3 + $0xdc] sm:$0xf] %v1269
    %1398 = vst [vmem:[%s3 + $0xe0] sm:$0xf] %v1270
    %1399 = vst [vmem:[%s3 + $0xe4] sm:$0xf] %v1271
    %1400 = vst [vmem:[%s3 + $0xe8] sm:$0xf] %v1272
    %1401 = vst [vmem:[%s3 + $0xec] sm:$0xf] %v1273
    %1402 = vst [vmem:[%s3 + $0xf0] sm:$0xf] %v1274
    %1403 = vst [vmem:[%s3 + $0xf4] sm:$0xf] %v1275
    %1404 = vst [vmem:[%s3 + $0xf8] sm:$0xf] %v1276
    %1405 = vst [vmem:[%s3 + $0xfc] sm:$0xf] %v1277
  $region21: #{_lambda_.5} parent=0 // pred_fallthru
    _
  // Predicated region
  $region22: #{_lambda_.5} parent=0 // pred_check
    _
  $region23: #{_lambda_.5} parent=0 // pred_check_branch
    %1407 = sbr.rel (0) target = $region25
  $region24: #{_lambda_.5} parent=0 // pred_region
    _
  $region25: #{_lambda_.5} parent=0 // pred_fallthru
    _
  // Predicated region
  $region26: #{_lambda_.5} parent=0 // pred_check
    _
  $region27: #{_lambda_.5} parent=0 // pred_check_branch
    %1409 = sbr.rel (0) target = $region29
  $region28: #{_lambda_.5} parent=0 // pred_region
    _
  $region29: #{_lambda_.5} parent=0 // pred_fallthru
    _

// kernel: _lambda_.7
$region0: #{_lambda_.7}
  #allocation0 [shape = 'u32[]', space=smem, size = 0x4, offset = 0x4, fixed_abs, tag = 'smem constant byte address 0x4 - core index']
  #allocation1 [shape = 'u32[144,128]{1,0:T(1,128)}', space=vmem, size = 0x12000, scoped, tag = 'internal scratch']
  #allocation2 [shape = 'f32[32,128]{1,0:T(8,128)}', space=vmem, size = 0x4000, scoped, tag = 'scratch operand']
  %s0 = inlined_call_operand.vmem [shape: bf16[32,1152], index: 0, kind: input, shape index: {}]
  %s1 = inlined_call_operand.vmem [shape: bf16[1152,128], index: 1, kind: input, shape index: {}]
  %s2 = inlined_call_operand.vmem [shape: f32[1,128], index: 2, kind: input, shape index: {}]
  %s3 = inlined_call_operand.vmem [shape: bf16[32,128], index: 3, kind: output, shape index: {}]
  %s4 = sld [smem:[#allocation0]]
  $region94: #{_lambda_.7} parent=0
    _
  %s6 = ssub.s32 1, %s4
  %s7 = scalar_select 0, %s6, %s4
  $region1: #{_lambda_.7} parent=0
    #allocation3 [shape = 'u8[16384]{0}', space=vmem, size = 0x4000, scoped, tag = 'input window, operand 0']
    loop: start=0, step=1, limit=11
    $region2: #{_lambda_.7} parent=1 // loop_pre_header
      _
    $region3: #{_lambda_.7} parent=1 // loop_header
      %s9 = sphi 0, %s13
      %p10 = scmp.ge.s32.totalorder %s9, 11
      %s16 = sphi 0, %s35
      %s17 = sphi 0, %s31
      %s18 = sphi 0, %s27
      %s19 = sphi 0, %s16
      %s20 = sphi 0, %s17
      %s21 = sphi 0, %s18
      %s22 = sphi 0, %s19
      %s23 = sphi 0, %s20
      %s24 = sphi 0, %s21
      %s40 = sphi 0, %s42
      %s43 = sphi 0, %s40
      %s44 = sphi 0, %s43
      %s60 = sphi 0, %s44
      %s68 = sphi 0, %s70
      %s71 = sphi 0, %s68
      %s72 = sphi 0, %s71
      %s88 = sphi 0, %s72
      %s94 = sphi 0, %s96
      %s97 = sphi 0, %s94
      %s98 = sphi 0, %s97
      %s114 = sphi 0, %s98
      %s122 = sphi 0, %s124
      %s125 = sphi 0, %s122
      %s126 = sphi 0, %s125
      %s142 = sphi 0, %s126
    $region4: #{_lambda_.7} parent=1 // loop_header_branch
      %12 = sbr.rel (%p10) target = $region8
    $region5: #{_lambda_.7} parent=1 // loop_body
      %s14 = ssub.s32 %s9, 1
      %s15 = ssub.s32 %s9, 2
      %s25 = sadd.s32 1, %s18
      %p26 = scmp.ge.s32.totalorder %s25, 9
      %s27 = scalar_select %p26, 0, %s25
      %s28 = sadd.s32 1, %s17
      %s29 = scalar_select %p26, %s28, %s17
      %p30 = scmp.ge.s32.totalorder %s29, 1
      %s31 = scalar_select %p30, 0, %s29
      %s32 = sadd.s32 1, %s16
      %s33 = scalar_select %p30, %s32, %s16
      %p34 = scmp.ge.s32.totalorder %s33, 1
      %s35 = scalar_select %p34, 0, %s33
      %s36 = ssub.s32 %s16, %s35
      %s37 = ssub.s32 %s18, %s27
      %s38 = sor.u32 %s36, %s37
      %p39 = scmp.eq.s32.totalorder %s38, 0
      %s41 = sadd.s32 %s40, 1
      %s42 = scalar_select %p39, %s40, %s41
      %p45 = pneg %p39
      %p46 = scmp.eq.s32.totalorder %s9, 8
      %p47 = por %p45, %p46
      %p48 = scmp.ne.s32.totalorder %s40, %s43
      %p49 = scmp.eq.s32.totalorder %s9, 0
      %p50 = por %p48, %p49
      %p51 = scmp.ne.s32.totalorder %s40, %s43
      %p52 = scmp.eq.s32.totalorder %s14, 8
      %p53 = por %p51, %p52
      %p54 = scmp.ne.s32.totalorder %s43, %s44
      %p55 = scmp.eq.s32.totalorder %s14, 0
      %p56 = por %p54, %p55
      %p57 = scmp.ne.s32.totalorder %s43, %s44
      %p58 = scmp.eq.s32.totalorder %s15, 8
      %p59 = por %p57, %p58
      %p61 = scmp.ne.s32.totalorder %s44, %s60
      %p62 = scmp.eq.s32.totalorder %s15, 0
      %p63 = por %p61, %p62
      %s64 = ssub.s32 %s18, %s27
      %s65 = ssub.s32 %s17, %s31
      %s66 = sor.u32 %s64, %s65
      %p67 = scmp.eq.s32.totalorder %s66, 0
      %s69 = sadd.s32 %s68, 1
      %s70 = scalar_select %p67, %s68, %s69
      %p73 = pneg %p67
      %p74 = scmp.eq.s32.totalorder %s9, 8
      %p75 = por %p73, %p74
      %p76 = scmp.ne.s32.totalorder %s68, %s71
      %p77 = scmp.eq.s32.totalorder %s9, 0
      %p78 = por %p76, %p77
      %p79 = scmp.ne.s32.totalorder %s68, %s71
      %p80 = scmp.eq.s32.totalorder %s14, 8
      %p81 = por %p79, %p80
      %p82 = scmp.ne.s32.totalorder %s71, %s72
      %p83 = scmp.eq.s32.totalorder %s14, 0
      %p84 = por %p82, %p83
      %p85 = scmp.ne.s32.totalorder %s71, %s72
      %p86 = scmp.eq.s32.totalorder %s15, 8
      %p87 = por %p85, %p86
      %p89 = scmp.ne.s32.totalorder %s72, %s88
      %p90 = scmp.eq.s32.totalorder %s15, 0
      %p91 = por %p89, %p90
      %s92 = ssub.s32 %s17, %s31
      %p93 = scmp.eq.s32.totalorder %s92, 0
      %s95 = sadd.s32 %s94, 1
      %s96 = scalar_select %p93, %s94, %s95
      %p99 = pneg %p93
      %p100 = scmp.eq.s32.totalorder %s9, 8
      %p101 = por %p99, %p100
      %p102 = scmp.ne.s32.totalorder %s94, %s97
      %p103 = scmp.eq.s32.totalorder %s9, 0
      %p104 = por %p102, %p103
      %p105 = scmp.ne.s32.totalorder %s94, %s97
      %p106 = scmp.eq.s32.totalorder %s14, 8
      %p107 = por %p105, %p106
      %p108 = scmp.ne.s32.totalorder %s97, %s98
      %p109 = scmp.eq.s32.totalorder %s14, 0
      %p110 = por %p108, %p109
      %p111 = scmp.ne.s32.totalorder %s97, %s98
      %p112 = scmp.eq.s32.totalorder %s15, 8
      %p113 = por %p111, %p112
      %p115 = scmp.ne.s32.totalorder %s98, %s114
      %p116 = scmp.eq.s32.totalorder %s15, 0
      %p117 = por %p115, %p116
      %s118 = ssub.s32 %s16, %s35
      %s119 = ssub.s32 %s17, %s31
      %s120 = sor.u32 %s118, %s119
      %p121 = scmp.eq.s32.totalorder %s120, 0
      %s123 = sadd.s32 %s122, 1
      %s124 = scalar_select %p121, %s122, %s123
      %p127 = pneg %p121
      %p128 = scmp.eq.s32.totalorder %s9, 8
      %p129 = por %p127, %p128
      %p130 = scmp.ne.s32.totalorder %s122, %s125
      %p131 = scmp.eq.s32.totalorder %s9, 0
      %p132 = por %p130, %p131
      %p133 = scmp.ne.s32.totalorder %s122, %s125
      %p134 = scmp.eq.s32.totalorder %s14, 8
      %p135 = por %p133, %p134
      %p136 = scmp.ne.s32.totalorder %s125, %s126
      %p137 = scmp.eq.s32.totalorder %s14, 0
      %p138 = por %p136, %p137
      %p139 = scmp.ne.s32.totalorder %s125, %s126
      %p140 = scmp.eq.s32.totalorder %s15, 8
      %p141 = por %p139, %p140
      %p143 = scmp.ne.s32.totalorder %s126, %s142
      %p144 = scmp.eq.s32.totalorder %s15, 0
      %p145 = por %p143, %p144
      %p146 = scmp.le.s32.totalorder 1, %s9
      %p147 = scmp.lt.s32.totalorder %s9, 10
      %p148 = pnand %p146, %p147
      %p149 = pneg %p148
      // Predicated region
      $region9: #{_lambda_.7} parent=5 // pred_check
        _
      $region10: #{_lambda_.7} parent=5 // pred_check_branch
        %151 = sbr.rel (%p148) target = $region12
      $region11: #{_lambda_.7} parent=5 // pred_region
        %s152 = ssub.s32 %s9, 1
        // Predicated region
        $region13: #{_lambda_.7} parent=11 // pred_check
          %p153 = pneg %p110
        $region14: #{_lambda_.7} parent=11 // pred_check_branch
          %155 = sbr.rel (%p153) target = $region16
        $region15: #{_lambda_.7} parent=11 // pred_region
          %p156 = scmp.lt.s32.totalorder %s20, 0
          %s157 = scalar_select %p156, %s20, 0
          %s158 = scalar_lea.vmem %s2, %s157
        $region16: #{_lambda_.7} parent=11 // pred_fallthru
          _
      $region12: #{_lambda_.7} parent=5 // pred_fallthru
        _
      %p159 = scmp.lt.s32.totalorder %s9, 9
      // Predicated region
      $region17: #{_lambda_.7} parent=5 // pred_check
        %p160 = pneg %p159
      $region18: #{_lambda_.7} parent=5 // pred_check_branch
        %162 = sbr.rel (%p160) target = $region20
      $region19: #{_lambda_.7} parent=5 // pred_region
        // Predicated region
        $region21: #{_lambda_.7} parent=19 // pred_check
          %p163 = pneg %p50
        $region22: #{_lambda_.7} parent=19 // pred_check_branch
          %165 = sbr.rel (%p163) target = $region24
        $region23: #{_lambda_.7} parent=19 // pred_region
          %s166 = sand.u32 %s40, 1
          %s167 = sand.u32 %s40, 1
          %s168 = smul.addr %s167, 16
          %s169 = scalar_lea.vmem [#allocation3], %s168
          %s170 = smul.u32 4, %s16
          %s171 = smul.addr %s170, 9
          %s172 = sadd.s32 %s18, %s171
          %s173 = smul.addr %s172, 4
          %s174 = scalar_lea.vmem %s0, %s173
          // Predicated region
          $region25: #{_lambda_.7} parent=23 // pred_check
            _
          $region26: #{_lambda_.7} parent=23 // pred_check_branch
            %176 = sbr.rel (0) target = $region28
          $region27: #{_lambda_.7} parent=23 // pred_region
            // Predicated region
            $region29: #{_lambda_.7} parent=27 // pred_check
              _
            $region30: #{_lambda_.7} parent=27 // pred_check_branch
              %178 = sbr.rel target = $region32
            $region31: #{_lambda_.7} parent=27 // pred_region
              // Predicated region
              $region44: #{_lambda_.7} parent=31 // pred_check
                _
              $region45: #{_lambda_.7} parent=31 // pred_check_branch
                %199 = sbr.rel (0) target = $region47
              $region46: #{_lambda_.7} parent=31 // pred_region
                loop: start=0, step=1, limit=1
                $region48: #{_lambda_.7} parent=46 // loop_pre_header
                  _
                $region49: #{_lambda_.7} parent=46 // loop_header
                  %s201 = sphi 0, %s205
                  %p202 = scmp.ge.s32.totalorder %s201, 1
                  %s206 = sphi %s174, %s174
                  %s207 = sphi %s169, %s169
                $region50: #{_lambda_.7} parent=46 // loop_header_branch
                  %204 = sbr.rel (%p202) target = $region54
                $region51: #{_lambda_.7} parent=46 // loop_body
                  _
                $region52: #{_lambda_.7} parent=46 // loop_footer
                  %s205 = sadd.s32 1, %s201
                $region53: #{_lambda_.7} parent=46 // loop_footer_branch
                  %200 = sbr.rel target = $region49
                $region54: #{_lambda_.7} parent=46 // loop_exit
                  _
                loop: start=0, step=1, limit=1
                $region55: #{_lambda_.7} parent=46 // loop_pre_header
                  _
                $region56: #{_lambda_.7} parent=46 // loop_header
                  %s210 = sphi 0, %s214
                  %p211 = scmp.ge.s32.totalorder %s210, 1
                  %s215 = sphi %s174, %s174
                  %s216 = sphi %s169, %s169
                $region57: #{_lambda_.7} parent=46 // loop_header_branch
                  %213 = sbr.rel (%p211) target = $region61
                $region58: #{_lambda_.7} parent=46 // loop_body
                  %v217 = vld [vmem:[%s215] sm:$0xf]
                  %218 = vst [vmem:[%s216] sm:$0xf] %v217
                  %v219 = vld [vmem:[%s215 + $0x24] sm:$0xf]
                  %220 = vst [vmem:[%s216 + $0x4] sm:$0xf] %v219
                  %v221 = vld [vmem:[%s215 + $0x48] sm:$0xf]
                  %222 = vst [vmem:[%s216 + $0x8] sm:$0xf] %v221
                  %v223 = vld [vmem:[%s215 + $0x6c] sm:$0xf]
                  %224 = vst [vmem:[%s216 + $0xc] sm:$0xf] %v223
                $region59: #{_lambda_.7} parent=46 // loop_footer
                  %s214 = sadd.s32 1, %s210
                $region60: #{_lambda_.7} parent=46 // loop_footer_branch
                  %209 = sbr.rel target = $region56
                $region61: #{_lambda_.7} parent=46 // loop_exit
                  _
              $region47: #{_lambda_.7} parent=31 // pred_fallthru
                _
            $region32: #{_lambda_.7} parent=27 // pred_fallthru
              _
            // Predicated region
            $region33: #{_lambda_.7} parent=27 // pred_check
              _
            $region34: #{_lambda_.7} parent=27 // pred_check_branch
              %180 = sbr.rel (0) target = $region36
            $region35: #{_lambda_.7} parent=27 // pred_region
              loop: start=0, step=1, limit=1
              $region37: #{_lambda_.7} parent=35 // loop_pre_header
                _
              $region38: #{_lambda_.7} parent=35 // loop_header
                %s183 = sphi 0, %s187
                %p184 = scmp.ge.s32.totalorder %s183, 1
                %s188 = sphi %s174, %s174
                %s189 = sphi %s169, %s169
              $region39: #{_lambda_.7} parent=35 // loop_header_branch
                %186 = sbr.rel (%p184) target = $region43
              $region40: #{_lambda_.7} parent=35 // loop_body
                %v190 = vld [vmem:[%s188] sm:$0xf]
                %191 = vst [vmem:[%s189] sm:$0xf] %v190
                %v192 = vld [vmem:[%s188 + $0x24] sm:$0xf]
                %193 = vst [vmem:[%s189 + $0x4] sm:$0xf] %v192
                %v194 = vld [vmem:[%s188 + $0x48] sm:$0xf]
                %195 = vst [vmem:[%s189 + $0x8] sm:$0xf] %v194
                %v196 = vld [vmem:[%s188 + $0x6c] sm:$0xf]
                %197 = vst [vmem:[%s189 + $0xc] sm:$0xf] %v196
              $region41: #{_lambda_.7} parent=35 // loop_footer
                %s187 = sadd.s32 1, %s183
              $region42: #{_lambda_.7} parent=35 // loop_footer_branch
                %182 = sbr.rel target = $region38
              $region43: #{_lambda_.7} parent=35 // loop_exit
                _
            $region36: #{_lambda_.7} parent=27 // pred_fallthru
              _
          $region28: #{_lambda_.7} parent=23 // pred_fallthru
            _
          %225 = vnop
        $region24: #{_lambda_.7} parent=19 // pred_fallthru
          _
        // Predicated region
        $region62: #{_lambda_.7} parent=19 // pred_check
          %p226 = pneg %p78
        $region63: #{_lambda_.7} parent=19 // pred_check_branch
          %228 = sbr.rel (%p226) target = $region65
        $region64: #{_lambda_.7} parent=19 // pred_region
          %s229 = smul.u32 16, %s18
          %p230 = scmp.lt.s32.totalorder %s229, 143
          %s231 = scalar_select %p230, %s229, 143
          %p232 = scmp.lt.s32.totalorder %s17, 0
          %s233 = scalar_select %p232, %s17, 0
          %s234 = sadd.s32 %s233, %s231
          %s235 = smul.addr %s234, 4
          %s236 = scalar_lea.vmem %s1, %s235
          %s237 = smul.u32 16, %s18
        $region65: #{_lambda_.7} parent=19 // pred_fallthru
          _
      $region20: #{_lambda_.7} parent=5 // pred_fallthru
        _
      %p238 = scmp.le.s32.totalorder 1, %s9
      %p239 = scmp.lt.s32.totalorder %s9, 10
      %p240 = pnand %p238, %p239
      %p241 = pneg %p240
      // Predicated region
      $region66: #{_lambda_.7} parent=5 // pred_check
        _
      $region67: #{_lambda_.7} parent=5 // pred_check_branch
        %243 = sbr.rel (%p240) target = $region69
      $region68: #{_lambda_.7} parent=5 // pred_region
        %s244 = ssub.s32 %s9, 1
        %s245 = sand.u32 %s43, 1
        %s246 = sand.u32 %s43, 1
        %s247 = smul.addr %s246, 16
        %s248 = scalar_lea.vmem [#allocation3], %s247
        // Predicated region
        $region70: #{_lambda_.7} parent=68 // pred_check
          %p249 = pneg %p56
        $region71: #{_lambda_.7} parent=68 // pred_check_branch
          %251 = sbr.rel (%p249) target = $region73
        $region72: #{_lambda_.7} parent=68 // pred_region
          _
        $region73: #{_lambda_.7} parent=68 // pred_fallthru
          _
        %s252 = sand.u32 %s43, 1
        %s253 = sand.u32 %s43, 1
        %s254 = smul.addr %s253, 16
        %s255 = scalar_lea.vmem [#allocation3], %s254
        %p256 = pneg %p56
        %p257 = pneg %p53
        %s258 = smul.u32 16, %s21
        %p259 = scmp.lt.s32.totalorder %s258, 143
        %s260 = scalar_select %p259, %s258, 143
        %p261 = scmp.lt.s32.totalorder %s20, 0
        %s262 = scalar_select %p261, %s20, 0
        %s263 = sadd.s32 %s262, %s260
        %s264 = smul.addr %s263, 4
        %s265 = scalar_lea.vmem %s1, %s264
        %p266 = pneg %p84
        %p267 = pneg %p81
        %p268 = scmp.lt.s32.totalorder %s20, 0
        %s269 = scalar_select %p268, %s20, 0
        %s270 = scalar_lea.vmem %s2, %s269
        %p271 = pneg %p110
        %p272 = pneg %p107
        %p273 = pneg %p138
        %p274 = pneg %p135
        %s275 = smul.u32 4, %s19
        %p276 = scmp.lt.s32.totalorder %s275, 3
        %s277 = scalar_select %p276, %s275, 3
        %p278 = scmp.lt.s32.totalorder %s20, 0
        %s279 = scalar_select %p278, %s20, 0
        %s280 = sadd.s32 %s279, %s277
        %s281 = smul.addr %s280, 4
        %s282 = scalar_lea.vmem %s3, %s281
        %s283 = smul.u32 4, %s19
        %s284 = smul.u32 16, %s21
        %p285 = scmp.lt.s32.totalorder %s284, 143
        %s286 = scalar_select %p285, %s284, 143
        %p287 = scmp.lt.s32.totalorder %s20, 0
        %s288 = scalar_select %p287, %s20, 0
        %s289 = sadd.s32 %s288, %s286
        %s290 = smul.addr %s289, 4
        %s291 = scalar_lea.vmem %s1, %s290
        %s292 = smul.u32 16, %s21
        %p293 = scmp.lt.s32.totalorder %s20, 0
        %s294 = scalar_select %p293, %s20, 0
        %s295 = scalar_lea.vmem %s2, %s294
        %s296 = smul.u32 4, %s19
        %p297 = scmp.lt.s32.totalorder %s296, 3
        %s298 = scalar_select %p297, %s296, 3
        %p299 = scmp.lt.s32.totalorder %s20, 0
        %s300 = scalar_select %p299, %s20, 0
        %s301 = sadd.s32 %s300, %s298
        %s302 = smul.addr %s301, 4
        %s303 = scalar_lea.vmem %s3, %s302
        %s304 = smul.u32 4, %s19
        %p306 = scmp.eq.s32.totalorder %s21, 0
        // Predicated region
        $region74: #{_lambda_.7} parent=68 // pred_check
          %p307 = pneg %p306
        $region75: #{_lambda_.7} parent=68 // pred_check_branch
          %309 = sbr.rel (%p307) target = $region77
        $region76: #{_lambda_.7} parent=68 // pred_region
          %310 = vst [vmem:[#allocation2] sm:$0xff] 0.0
          %311 = vst [vmem:[#allocation2 + $0x8] sm:$0xff] 0.0
          %312 = vst [vmem:[#allocation2 + $0x10] sm:$0xff] 0.0
          %313 = vst [vmem:[#allocation2 + $0x18] sm:$0xff] 0.0
        $region77: #{_lambda_.7} parent=68 // pred_fallthru
          _
        %v314 = vld [vmem:[#allocation2] sm:$0xff]
        %v315 = vld [vmem:[#allocation2 + $0x8] sm:$0xff]
        %v316 = vld [vmem:[#allocation2 + $0x10] sm:$0xff]
        %v317 = vld [vmem:[#allocation2 + $0x18] sm:$0xff]
        %v318 = vld [vmem:[%s248] sm:$0xf]
        %v319 = vld [vmem:[%s248 + $0x4] sm:$0xf]
        %v320 = vld [vmem:[%s248 + $0x8] sm:$0xf]
        %v321 = vld [vmem:[%s248 + $0xc] sm:$0xf]
        %v322 = vld [vmem:[%s291] sm:$0xf]
        %v323 = vld [vmem:[%s291 + $0x4] sm:$0xf]
        %v324 = vld [vmem:[%s291 + $0x8] sm:$0xf]
        %v325 = vld [vmem:[%s291 + $0xc] sm:$0xf]
        %v326 = vld [vmem:[%s291 + $0x10] sm:$0xf]
        %v327 = vld [vmem:[%s291 + $0x14] sm:$0xf]
        %v328 = vld [vmem:[%s291 + $0x18] sm:$0xf]
        %v329 = vld [vmem:[%s291 + $0x1c] sm:$0xf]
        %v330 = vld [vmem:[%s291 + $0x20] sm:$0xf]
        %v331 = vld [vmem:[%s291 + $0x24] sm:$0xf]
        %v332 = vld [vmem:[%s291 + $0x28] sm:$0xf]
        %v333 = vld [vmem:[%s291 + $0x2c] sm:$0xf]
        %v334 = vld [vmem:[%s291 + $0x30] sm:$0xf]
        %v335 = vld [vmem:[%s291 + $0x34] sm:$0xf]
        %v336 = vld [vmem:[%s291 + $0x38] sm:$0xf]
        %v337 = vld [vmem:[%s291 + $0x3c] sm:$0xf]
        %v342 = vunpack.c.l.b16 %v318
        %v343 = vunpack.c.l.b16 %v319
        %v344 = vunpack.c.l.b16 %v320
        %v345 = vunpack.c.l.b16 %v321
        %v346 = vpack.c.b16 %v343, %v342
        %v347 = vpack.c.b16 %v345, %v344
        %v366 = vunpack.c.l.b16 %v322
        %v367 = vunpack.c.l.b16 %v323
        %v368 = vunpack.c.l.b16 %v324
        %v369 = vunpack.c.l.b16 %v325
        %v370 = vunpack.c.l.b16 %v326
        %v371 = vunpack.c.l.b16 %v327
        %v372 = vunpack.c.l.b16 %v328
        %v373 = vunpack.c.l.b16 %v329
        %v374 = vunpack.c.l.b16 %v330
        %v375 = vunpack.c.l.b16 %v331
        %v376 = vunpack.c.l.b16 %v332
        %v377 = vunpack.c.l.b16 %v333
        %v378 = vunpack.c.l.b16 %v334
        %v379 = vunpack.c.l.b16 %v335
        %v380 = vunpack.c.l.b16 %v336
        %v381 = vunpack.c.l.b16 %v337
        %v382 = vpack.c.b16 %v367, %v366
        %v383 = vpack.c.b16 %v369, %v368
        %v384 = vpack.c.b16 %v371, %v370
        %v385 = vpack.c.b16 %v373, %v372
        %v386 = vpack.c.b16 %v375, %v374
        %v387 = vpack.c.b16 %v377, %v376
        %v388 = vpack.c.b16 %v379, %v378
        %v389 = vpack.c.b16 %v381, %v380
        %398 = vmatprep.subr.bf16.mxu0 0
        %399 = vmatpush1.bf16.msra.mxu0 %v382
        %400 = vmatprep.subr.bf16.mxu0 0
        %401 = vmatpush1.bf16.msra.mxu0 %v383
        %402 = vmatprep.subr.bf16.mxu0 0
        %403 = vmatpush1.bf16.msra.mxu0 %v384
        %404 = vmatprep.subr.bf16.mxu0 0
        %405 = vmatpush1.bf16.msra.mxu0 %v385
        %406 = vmatprep.subr.bf16.mxu0 0
        %407 = vmatpush1.bf16.msra.mxu0 %v386
        %408 = vmatprep.subr.bf16.mxu0 0
        %409 = vmatpush1.bf16.msra.mxu0 %v387
        %410 = vmatprep.subr.bf16.mxu0 0
        %411 = vmatpush1.bf16.msra.mxu0 %v388
        %412 = vmatprep.subr.bf16.mxu0 0
        %413 = vmatpush1.bf16.msra.mxu0 %v389
        %414 = vmatprep.subr.bf16.mxu0 0
        %415 = vmatpush1.bf16.msra.mxu0 0
        %416 = vmatprep.subr.bf16.mxu0 0
        %417 = vmatpush1.bf16.msra.mxu0 0
        %418 = vmatprep.subr.bf16.mxu0 0
        %419 = vmatpush1.bf16.msra.mxu0 0
        %420 = vmatprep.subr.bf16.mxu0 0
        %421 = vmatpush1.bf16.msra.mxu0 0
        %422 = vmatprep.subr.bf16.mxu0 0
        %423 = vmatpush1.bf16.msra.mxu0 0
        %424 = vmatprep.subr.bf16.mxu0 0
        %425 = vmatpush1.bf16.msra.mxu0 0
        %426 = vmatprep.subr.bf16.mxu0 0
        %427 = vmatpush1.bf16.msra.mxu0 0
        %428 = vmatprep.subr.bf16.mxu0 0
        %429 = vmatpush1.bf16.msra.mxu0 0
        %430 = vmatprep.mubr.bf16.mxu0 0
        %431 = vmatmul.mubr.bf16.gmra.mrb[0].mxu0 %v346
        %v432 = vpop.f32.mrb[0].mxu0
        %v433 = vadd.f32 0.0, %v432
        %v434 = vpop.f32.mrb[0].mxu0
        %v435 = vpop.f32.mrb[0].mxu0
        %v436 = vadd.f32 0.0, %v435
        %v437 = vpop.f32.mrb[0].mxu0
        %438 = vmatprep.mubr.bf16.mxu0 0
        %439 = vmatmul.mubr.bf16.gmra.mrb[0].mxu0 %v347
        %v440 = vpop.f32.mrb[0].mxu0
        %v441 = vadd.f32 0.0, %v440
        %v442 = vpop.f32.mrb[0].mxu0
        %v443 = vpop.f32.mrb[0].mxu0
        %v444 = vadd.f32 0.0, %v443
        %v445 = vpop.f32.mrb[0].mxu0
        %446 = vdwg.mxu0
        %v447 = vadd.f32 %v314, %v433
        %v448 = vadd.f32 %v315, %v436
        %v449 = vadd.f32 %v316, %v441
        %v450 = vadd.f32 %v317, %v444
        %451 = vst [vmem:[#allocation2] sm:$0xff] %v447
        %452 = vst [vmem:[#allocation2 + $0x8] sm:$0xff] %v448
        %453 = vst [vmem:[#allocation2 + $0x10] sm:$0xff] %v449
        %454 = vst [vmem:[#allocation2 + $0x18] sm:$0xff] %v450
        %p455 = scmp.eq.s32.totalorder %s21, 8
        // Predicated region
        $region78: #{_lambda_.7} parent=68 // pred_check
          %p456 = pneg %p455
        $region79: #{_lambda_.7} parent=68 // pred_check_branch
          %458 = sbr.rel (%p456) target = $region81
        $region80: #{_lambda_.7} parent=68 // pred_region
          %v459 = vld [vmem:[#allocation2] sm:$0xff]
          %v460 = vld [vmem:[#allocation2 + $0x8] sm:$0xff]
          %v461 = vld [vmem:[#allocation2 + $0x10] sm:$0xff]
          %v462 = vld [vmem:[#allocation2 + $0x18] sm:$0xff]
          %v463 = vld [vmem:[%s295] sm:$0x1]
          %v465 = vlaneseq
          %v466 = vshrl.u32 %v465, 7
          %v467 = vsub.s32 0, %v466
          %v468 = vrot.slane %v463, %v467
          %v470 = vadd.f32 %v459, %v468
          %v471 = vadd.f32 %v460, %v468
          %v472 = vadd.f32 %v461, %v468
          %v473 = vadd.f32 %v462, %v468
          %v474 = vmax.f32 %v470, 0.0
          %v475 = vmax.f32 %v471, 0.0
          %v476 = vmax.f32 %v472, 0.0
          %v477 = vmax.f32 %v473, 0.0
          %v478 = vpack.c.bf16 %v475, %v474
          %v479 = vpack.c.bf16 %v477, %v476
          %v482 = vunpack.c.l.b16 %v478
          %v483 = vunpack.c.h.b16 %v478
          %v484 = vunpack.c.l.b16 %v479
          %v485 = vunpack.c.h.b16 %v479
          %v486 = vpack.c.b16 %v482, %v482
          %v487 = vpack.c.b16 %v483, %v483
          %v488 = vpack.c.b16 %v484, %v484
          %v489 = vpack.c.b16 %v485, %v485
          %494 = vst [vmem:[%s303] sm:$0xf] %v486
          %495 = vst [vmem:[%s303 + $0x4] sm:$0xf] %v487
          %496 = vst [vmem:[%s303 + $0x8] sm:$0xf] %v488
          %497 = vst [vmem:[%s303 + $0xc] sm:$0xf] %v489
        $region81: #{_lambda_.7} parent=68 // pred_fallthru
          _
        %s498 = smul.u32 4, %s19
        %p499 = scmp.lt.s32.totalorder %s498, 3
        %s500 = scalar_select %p499, %s498, 3
        %p501 = scmp.lt.s32.totalorder %s20, 0
        %s502 = scalar_select %p501, %s20, 0
        %s503 = sadd.s32 %s502, %s500
        %s504 = smul.addr %s503, 4
        %s505 = scalar_lea.vmem %s3, %s504
        // Predicated region
        $region82: #{_lambda_.7} parent=68 // pred_check
          %p506 = pneg %p135
        $region83: #{_lambda_.7} parent=68 // pred_check_branch
          %508 = sbr.rel (%p506) target = $region85
        $region84: #{_lambda_.7} parent=68 // pred_region
          %s509 = smul.u32 4, %s19
        $region85: #{_lambda_.7} parent=68 // pred_fallthru
          _
        // Predicated region
        $region86: #{_lambda_.7} parent=68 // pred_check
          %p510 = pneg %p135
        $region87: #{_lambda_.7} parent=68 // pred_check_branch
          %512 = sbr.rel (%p510) target = $region89
        $region88: #{_lambda_.7} parent=68 // pred_region
          %s513 = smul.u32 4, %s19
          %p514 = scmp.lt.s32.totalorder %s513, 3
          %s515 = scalar_select %p514, %s513, 3
          %p516 = scmp.lt.s32.totalorder %s20, 0
          %s517 = scalar_select %p516, %s20, 0
          %s518 = sadd.s32 %s517, %s515
          %s519 = smul.addr %s518, 4
          %s520 = scalar_lea.vmem %s3, %s519
        $region89: #{_lambda_.7} parent=68 // pred_fallthru
          _
      $region69: #{_lambda_.7} parent=5 // pred_fallthru
        _
      %p521 = scmp.le.s32.totalorder 2, %s9
      // Predicated region
      $region90: #{_lambda_.7} parent=5 // pred_check
        %p522 = pneg %p521
      $region91: #{_lambda_.7} parent=5 // pred_check_branch
        %524 = sbr.rel (%p522) target = $region93
      $region92: #{_lambda_.7} parent=5 // pred_region
        %s525 = ssub.s32 %s9, 2
      $region93: #{_lambda_.7} parent=5 // pred_fallthru
        _
    $region6: #{_lambda_.7} parent=1 // loop_footer
      %s13 = sadd.s32 1, %s9
    $region7: #{_lambda_.7} parent=1 // loop_footer_branch
      %8 = sbr.rel target = $region3
    $region8: #{_lambda_.7} parent=1 // loop_exit
      _

// kernel: _lambda_.8
$region0: #{_lambda_.8}
  #allocation0 [shape = 'u32[]', space=smem, size = 0x4, offset = 0x4, fixed_abs, tag = 'smem constant byte address 0x4 - core index']
  #allocation1 [shape = 'u32[144,128]{1,0:T(1,128)}', space=vmem, size = 0x12000, scoped, tag = 'internal scratch']
  #allocation2 [shape = 'f32[8,128]{1,0:T(8,128)}', space=vmem, size = 0x1000, scoped, tag = 'scratch operand']
  %s0 = inlined_call_operand.vmem [shape: bf16[8,1152], index: 0, kind: input, shape index: {}]
  %s1 = inlined_call_operand.vmem [shape: bf16[1152,128], index: 1, kind: input, shape index: {}]
  %s2 = inlined_call_operand.vmem [shape: f32[1,128], index: 2, kind: input, shape index: {}]
  %s3 = inlined_call_operand.vmem [shape: bf16[8,128], index: 3, kind: output, shape index: {}]
  %s4 = sld [smem:[#allocation0]]
  $region53: #{_lambda_.8} parent=0
    _
  %s6 = ssub.s32 1, %s4
  %s7 = scalar_select 0, %s6, %s4
  loop: start=0, step=1, limit=11
  $region2: #{_lambda_.8} parent=0 // loop_pre_header
    _
  $region3: #{_lambda_.8} parent=0 // loop_header
    %s9 = sphi 0, %s13
    %p10 = scmp.ge.s32.totalorder %s9, 11
    %s16 = sphi 0, %s35
    %s17 = sphi 0, %s31
    %s18 = sphi 0, %s27
    %s19 = sphi 0, %s16
    %s20 = sphi 0, %s17
    %s21 = sphi 0, %s18
    %s22 = sphi 0, %s19
    %s23 = sphi 0, %s20
    %s24 = sphi 0, %s21
    %s40 = sphi 0, %s42
    %s43 = sphi 0, %s40
    %s44 = sphi 0, %s43
    %s60 = sphi 0, %s44
    %s68 = sphi 0, %s70
    %s71 = sphi 0, %s68
    %s72 = sphi 0, %s71
    %s88 = sphi 0, %s72
    %s94 = sphi 0, %s96
    %s97 = sphi 0, %s94
    %s98 = sphi 0, %s97
    %s114 = sphi 0, %s98
    %s122 = sphi 0, %s124
    %s125 = sphi 0, %s122
    %s126 = sphi 0, %s125
    %s142 = sphi 0, %s126
  $region4: #{_lambda_.8} parent=0 // loop_header_branch
    %12 = sbr.rel (%p10) target = $region8
  $region5: #{_lambda_.8} parent=0 // loop_body
    %s14 = ssub.s32 %s9, 1
    %s15 = ssub.s32 %s9, 2
    %s25 = sadd.s32 1, %s18
    %p26 = scmp.ge.s32.totalorder %s25, 9
    %s27 = scalar_select %p26, 0, %s25
    %s28 = sadd.s32 1, %s17
    %s29 = scalar_select %p26, %s28, %s17
    %p30 = scmp.ge.s32.totalorder %s29, 1
    %s31 = scalar_select %p30, 0, %s29
    %s32 = sadd.s32 1, %s16
    %s33 = scalar_select %p30, %s32, %s16
    %p34 = scmp.ge.s32.totalorder %s33, 1
    %s35 = scalar_select %p34, 0, %s33
    %s36 = ssub.s32 %s16, %s35
    %s37 = ssub.s32 %s18, %s27
    %s38 = sor.u32 %s36, %s37
    %p39 = scmp.eq.s32.totalorder %s38, 0
    %s41 = sadd.s32 %s40, 1
    %s42 = scalar_select %p39, %s40, %s41
    %p45 = pneg %p39
    %p46 = scmp.eq.s32.totalorder %s9, 8
    %p47 = por %p45, %p46
    %p48 = scmp.ne.s32.totalorder %s40, %s43
    %p49 = scmp.eq.s32.totalorder %s9, 0
    %p50 = por %p48, %p49
    %p51 = scmp.ne.s32.totalorder %s40, %s43
    %p52 = scmp.eq.s32.totalorder %s14, 8
    %p53 = por %p51, %p52
    %p54 = scmp.ne.s32.totalorder %s43, %s44
    %p55 = scmp.eq.s32.totalorder %s14, 0
    %p56 = por %p54, %p55
    %p57 = scmp.ne.s32.totalorder %s43, %s44
    %p58 = scmp.eq.s32.totalorder %s15, 8
    %p59 = por %p57, %p58
    %p61 = scmp.ne.s32.totalorder %s44, %s60
    %p62 = scmp.eq.s32.totalorder %s15, 0
    %p63 = por %p61, %p62
    %s64 = ssub.s32 %s18, %s27
    %s65 = ssub.s32 %s17, %s31
    %s66 = sor.u32 %s64, %s65
    %p67 = scmp.eq.s32.totalorder %s66, 0
    %s69 = sadd.s32 %s68, 1
    %s70 = scalar_select %p67, %s68, %s69
    %p73 = pneg %p67
    %p74 = scmp.eq.s32.totalorder %s9, 8
    %p75 = por %p73, %p74
    %p76 = scmp.ne.s32.totalorder %s68, %s71
    %p77 = scmp.eq.s32.totalorder %s9, 0
    %p78 = por %p76, %p77
    %p79 = scmp.ne.s32.totalorder %s68, %s71
    %p80 = scmp.eq.s32.totalorder %s14, 8
    %p81 = por %p79, %p80
    %p82 = scmp.ne.s32.totalorder %s71, %s72
    %p83 = scmp.eq.s32.totalorder %s14, 0
    %p84 = por %p82, %p83
    %p85 = scmp.ne.s32.totalorder %s71, %s72
    %p86 = scmp.eq.s32.totalorder %s15, 8
    %p87 = por %p85, %p86
    %p89 = scmp.ne.s32.totalorder %s72, %s88
    %p90 = scmp.eq.s32.totalorder %s15, 0
    %p91 = por %p89, %p90
    %s92 = ssub.s32 %s17, %s31
    %p93 = scmp.eq.s32.totalorder %s92, 0
    %s95 = sadd.s32 %s94, 1
    %s96 = scalar_select %p93, %s94, %s95
    %p99 = pneg %p93
    %p100 = scmp.eq.s32.totalorder %s9, 8
    %p101 = por %p99, %p100
    %p102 = scmp.ne.s32.totalorder %s94, %s97
    %p103 = scmp.eq.s32.totalorder %s9, 0
    %p104 = por %p102, %p103
    %p105 = scmp.ne.s32.totalorder %s94, %s97
    %p106 = scmp.eq.s32.totalorder %s14, 8
    %p107 = por %p105, %p106
    %p108 = scmp.ne.s32.totalorder %s97, %s98
    %p109 = scmp.eq.s32.totalorder %s14, 0
    %p110 = por %p108, %p109
    %p111 = scmp.ne.s32.totalorder %s97, %s98
    %p112 = scmp.eq.s32.totalorder %s15, 8
    %p113 = por %p111, %p112
    %p115 = scmp.ne.s32.totalorder %s98, %s114
    %p116 = scmp.eq.s32.totalorder %s15, 0
    %p117 = por %p115, %p116
    %s118 = ssub.s32 %s16, %s35
    %s119 = ssub.s32 %s17, %s31
    %s120 = sor.u32 %s118, %s119
    %p121 = scmp.eq.s32.totalorder %s120, 0
    %s123 = sadd.s32 %s122, 1
    %s124 = scalar_select %p121, %s122, %s123
    %p127 = pneg %p121
    %p128 = scmp.eq.s32.totalorder %s9, 8
    %p129 = por %p127, %p128
    %p130 = scmp.ne.s32.totalorder %s122, %s125
    %p131 = scmp.eq.s32.totalorder %s9, 0
    %p132 = por %p130, %p131
    %p133 = scmp.ne.s32.totalorder %s122, %s125
    %p134 = scmp.eq.s32.totalorder %s14, 8
    %p135 = por %p133, %p134
    %p136 = scmp.ne.s32.totalorder %s125, %s126
    %p137 = scmp.eq.s32.totalorder %s14, 0
    %p138 = por %p136, %p137
    %p139 = scmp.ne.s32.totalorder %s125, %s126
    %p140 = scmp.eq.s32.totalorder %s15, 8
    %p141 = por %p139, %p140
    %p143 = scmp.ne.s32.totalorder %s126, %s142
    %p144 = scmp.eq.s32.totalorder %s15, 0
    %p145 = por %p143, %p144
    %p146 = scmp.le.s32.totalorder 1, %s9
    %p147 = scmp.lt.s32.totalorder %s9, 10
    %p148 = pnand %p146, %p147
    %p149 = pneg %p148
    // Predicated region
    $region9: #{_lambda_.8} parent=5 // pred_check
      _
    $region10: #{_lambda_.8} parent=5 // pred_check_branch
      %151 = sbr.rel (%p148) target = $region12
    $region11: #{_lambda_.8} parent=5 // pred_region
      %s152 = ssub.s32 %s9, 1
      // Predicated region
      $region13: #{_lambda_.8} parent=11 // pred_check
        %p153 = pneg %p110
      $region14: #{_lambda_.8} parent=11 // pred_check_branch
        %155 = sbr.rel (%p153) target = $region16
      $region15: #{_lambda_.8} parent=11 // pred_region
        %p156 = scmp.lt.s32.totalorder %s20, 0
        %s157 = scalar_select %p156, %s20, 0
        %s158 = scalar_lea.vmem %s2, %s157
      $region16: #{_lambda_.8} parent=11 // pred_fallthru
        _
    $region12: #{_lambda_.8} parent=5 // pred_fallthru
      _
    %p159 = scmp.lt.s32.totalorder %s9, 9
    // Predicated region
    $region17: #{_lambda_.8} parent=5 // pred_check
      %p160 = pneg %p159
    $region18: #{_lambda_.8} parent=5 // pred_check_branch
      %162 = sbr.rel (%p160) target = $region20
    $region19: #{_lambda_.8} parent=5 // pred_region
      // Predicated region
      $region21: #{_lambda_.8} parent=19 // pred_check
        %p163 = pneg %p50
      $region22: #{_lambda_.8} parent=19 // pred_check_branch
        %165 = sbr.rel (%p163) target = $region24
      $region23: #{_lambda_.8} parent=19 // pred_region
        %p166 = scmp.lt.s32.totalorder %s16, 0
        %s167 = scalar_select %p166, %s16, 0
        %p168 = scmp.lt.s32.totalorder %s18, 8
        %s169 = scalar_select %p168, %s18, 8
        %s170 = smul.addr %s167, 9
        %s171 = sadd.s32 %s169, %s170
        %s172 = smul.addr %s171, 4
        %s173 = scalar_lea.vmem %s0, %s172
      $region24: #{_lambda_.8} parent=19 // pred_fallthru
        _
      // Predicated region
      $region25: #{_lambda_.8} parent=19 // pred_check
        %p174 = pneg %p78
      $region26: #{_lambda_.8} parent=19 // pred_check_branch
        %176 = sbr.rel (%p174) target = $region28
      $region27: #{_lambda_.8} parent=19 // pred_region
        %s177 = smul.u32 16, %s18
        %p178 = scmp.lt.s32.totalorder %s177, 143
        %s179 = scalar_select %p178, %s177, 143
        %p180 = scmp.lt.s32.totalorder %s17, 0
        %s181 = scalar_select %p180, %s17, 0
        %s182 = sadd.s32 %s181, %s179
        %s183 = smul.addr %s182, 4
        %s184 = scalar_lea.vmem %s1, %s183
        %s185 = smul.u32 16, %s18
      $region28: #{_lambda_.8} parent=19 // pred_fallthru
        _
    $region20: #{_lambda_.8} parent=5 // pred_fallthru
      _
    %p186 = scmp.le.s32.totalorder 1, %s9
    %p187 = scmp.lt.s32.totalorder %s9, 10
    %p188 = pnand %p186, %p187
    %p189 = pneg %p188
    // Predicated region
    $region29: #{_lambda_.8} parent=5 // pred_check
      _
    $region30: #{_lambda_.8} parent=5 // pred_check_branch
      %191 = sbr.rel (%p188) target = $region32
    $region31: #{_lambda_.8} parent=5 // pred_region
      %s192 = ssub.s32 %s9, 1
      %p193 = scmp.lt.s32.totalorder %s19, 0
      %s194 = scalar_select %p193, %s19, 0
      %p195 = scmp.lt.s32.totalorder %s21, 8
      %s196 = scalar_select %p195, %s21, 8
      %s197 = smul.addr %s194, 9
      %s198 = sadd.s32 %s196, %s197
      %s199 = smul.addr %s198, 4
      %s200 = scalar_lea.vmem %s0, %s199
      %p201 = pneg %p56
      %p202 = pneg %p53
      %s203 = smul.u32 16, %s21
      %p204 = scmp.lt.s32.totalorder %s203, 143
      %s205 = scalar_select %p204, %s203, 143
      %p206 = scmp.lt.s32.totalorder %s20, 0
      %s207 = scalar_select %p206, %s20, 0
      %s208 = sadd.s32 %s207, %s205
      %s209 = smul.addr %s208, 4
      %s210 = scalar_lea.vmem %s1, %s209
      %p211 = pneg %p84
      %p212 = pneg %p81
      %p213 = scmp.lt.s32.totalorder %s20, 0
      %s214 = scalar_select %p213, %s20, 0
      %s215 = scalar_lea.vmem %s2, %s214
      %p216 = pneg %p110
      %p217 = pneg %p107
      %p218 = pneg %p138
      %p219 = pneg %p135
      %p220 = scmp.lt.s32.totalorder %s19, 0
      %s221 = scalar_select %p220, %s19, 0
      %p222 = scmp.lt.s32.totalorder %s20, 0
      %s223 = scalar_select %p222, %s20, 0
      %s224 = sadd.s32 %s223, %s221
      %s225 = smul.addr %s224, 4
      %s226 = scalar_lea.vmem %s3, %s225
      %p227 = scmp.lt.s32.totalorder %s19, 0
      %s228 = scalar_select %p227, %s19, 0
      %p229 = scmp.lt.s32.totalorder %s21, 8
      %s230 = scalar_select %p229, %s21, 8
      %s231 = smul.addr %s228, 9
      %s232 = sadd.s32 %s230, %s231
      %s233 = smul.addr %s232, 4
      %s234 = scalar_lea.vmem %s0, %s233
      %s235 = smul.u32 16, %s21
      %p236 = scmp.lt.s32.totalorder %s235, 143
      %s237 = scalar_select %p236, %s235, 143
      %p238 = scmp.lt.s32.totalorder %s20, 0
      %s239 = scalar_select %p238, %s20, 0
      %s240 = sadd.s32 %s239, %s237
      %s241 = smul.addr %s240, 4
      %s242 = scalar_lea.vmem %s1, %s241
      %s243 = smul.u32 16, %s21
      %p244 = scmp.lt.s32.totalorder %s20, 0
      %s245 = scalar_select %p244, %s20, 0
      %s246 = scalar_lea.vmem %s2, %s245
      %p247 = scmp.lt.s32.totalorder %s19, 0
      %s248 = scalar_select %p247, %s19, 0
      %p249 = scmp.lt.s32.totalorder %s20, 0
      %s250 = scalar_select %p249, %s20, 0
      %s251 = sadd.s32 %s250, %s248
      %s252 = smul.addr %s251, 4
      %s253 = scalar_lea.vmem %s3, %s252
      %p255 = scmp.eq.s32.totalorder %s21, 0
      // Predicated region
      $region33: #{_lambda_.8} parent=31 // pred_check
        %p256 = pneg %p255
      $region34: #{_lambda_.8} parent=31 // pred_check_branch
        %258 = sbr.rel (%p256) target = $region36
      $region35: #{_lambda_.8} parent=31 // pred_region
        %259 = vst [vmem:[#allocation2] sm:$0xff] 0.0
      $region36: #{_lambda_.8} parent=31 // pred_fallthru
        _
      %v260 = vld [vmem:[#allocation2] sm:$0xff]
      %v261 = vld [vmem:[%s234] sm:$0xf]
      %v262 = vld [vmem:[%s242] sm:$0xf]
      %v263 = vld [vmem:[%s242 + $0x4] sm:$0xf]
      %v264 = vld [vmem:[%s242 + $0x8] sm:$0xf]
      %v265 = vld [vmem:[%s242 + $0xc] sm:$0xf]
      %v266 = vld [vmem:[%s242 + $0x10] sm:$0xf]
      %v267 = vld [vmem:[%s242 + $0x14] sm:$0xf]
      %v268 = vld [vmem:[%s242 + $0x18] sm:$0xf]
      %v269 = vld [vmem:[%s242 + $0x1c] sm:$0xf]
      %v270 = vld [vmem:[%s242 + $0x20] sm:$0xf]
      %v271 = vld [vmem:[%s242 + $0x24] sm:$0xf]
      %v272 = vld [vmem:[%s242 + $0x28] sm:$0xf]
      %v273 = vld [vmem:[%s242 + $0x2c] sm:$0xf]
      %v274 = vld [vmem:[%s242 + $0x30] sm:$0xf]
      %v275 = vld [vmem:[%s242 + $0x34] sm:$0xf]
      %v276 = vld [vmem:[%s242 + $0x38] sm:$0xf]
      %v277 = vld [vmem:[%s242 + $0x3c] sm:$0xf]
      %v294 = vunpack.c.l.b16 %v262
      %v295 = vunpack.c.l.b16 %v263
      %v296 = vunpack.c.l.b16 %v264
      %v297 = vunpack.c.l.b16 %v265
      %v298 = vunpack.c.l.b16 %v266
      %v299 = vunpack.c.l.b16 %v267
      %v300 = vunpack.c.l.b16 %v268
      %v301 = vunpack.c.l.b16 %v269
      %v302 = vunpack.c.l.b16 %v270
      %v303 = vunpack.c.l.b16 %v271
      %v304 = vunpack.c.l.b16 %v272
      %v305 = vunpack.c.l.b16 %v273
      %v306 = vunpack.c.l.b16 %v274
      %v307 = vunpack.c.l.b16 %v275
      %v308 = vunpack.c.l.b16 %v276
      %v309 = vunpack.c.l.b16 %v277
      %v310 = vpack.c.b16 %v295, %v294
      %v311 = vpack.c.b16 %v297, %v296
      %v312 = vpack.c.b16 %v299, %v298
      %v313 = vpack.c.b16 %v301, %v300
      %v314 = vpack.c.b16 %v303, %v302
      %v315 = vpack.c.b16 %v305, %v304
      %v316 = vpack.c.b16 %v307, %v306
      %v317 = vpack.c.b16 %v309, %v308
      %326 = vmatprep.subr.bf16.mxu0 0
      %327 = vmatpush1.bf16.msra.mxu0 %v310
      %328 = vmatprep.subr.bf16.mxu0 0
      %329 = vmatpush1.bf16.msra.mxu0 %v311
      %330 = vmatprep.subr.bf16.mxu0 0
      %331 = vmatpush1.bf16.msra.mxu0 %v312
      %332 = vmatprep.subr.bf16.mxu0 0
      %333 = vmatpush1.bf16.msra.mxu0 %v313
      %334 = vmatprep.subr.bf16.mxu0 0
      %335 = vmatpush1.bf16.msra.mxu0 %v314
      %336 = vmatprep.subr.bf16.mxu0 0
      %337 = vmatpush1.bf16.msra.mxu0 %v315
      %338 = vmatprep.subr.bf16.mxu0 0
      %339 = vmatpush1.bf16.msra.mxu0 %v316
      %340 = vmatprep.subr.bf16.mxu0 0
      %341 = vmatpush1.bf16.msra.mxu0 %v317
      %342 = vmatprep.subr.bf16.mxu0 0
      %343 = vmatpush1.bf16.msra.mxu0 0
      %344 = vmatprep.subr.bf16.mxu0 0
      %345 = vmatpush1.bf16.msra.mxu0 0
      %346 = vmatprep.subr.bf16.mxu0 0
      %347 = vmatpush1.bf16.msra.mxu0 0
      %348 = vmatprep.subr.bf16.mxu0 0
      %349 = vmatpush1.bf16.msra.mxu0 0
      %350 = vmatprep.subr.bf16.mxu0 0
      %351 = vmatpush1.bf16.msra.mxu0 0
      %352 = vmatprep.subr.bf16.mxu0 0
      %353 = vmatpush1.bf16.msra.mxu0 0
      %354 = vmatprep.subr.bf16.mxu0 0
      %355 = vmatpush1.bf16.msra.mxu0 0
      %356 = vmatprep.subr.bf16.mxu0 0
      %357 = vmatpush1.bf16.msra.mxu0 0
      %358 = vmatprep.mubr.bf16.mxu0 0
      %359 = vmatmul.mubr.bf16.gmra.mrb[0].mxu0 %v261
      %v360 = vpop.f32.mrb[0].mxu0
      %v361 = vadd.f32 0.0, %v360
      %v362 = vpop.f32.mrb[0].mxu0
      %v363 = vpop.f32.mrb[0].mxu0
      %v364 = vpop.f32.mrb[0].mxu0
      %365 = vdwg.mxu0
      %v366 = vadd.f32 %v260, %v361
      %367 = vst [vmem:[#allocation2] sm:$0xff] %v366
      %p368 = scmp.eq.s32.totalorder %s21, 8
      // Predicated region
      $region37: #{_lambda_.8} parent=31 // pred_check
        %p369 = pneg %p368
      $region38: #{_lambda_.8} parent=31 // pred_check_branch
        %371 = sbr.rel (%p369) target = $region40
      $region39: #{_lambda_.8} parent=31 // pred_region
        %v372 = vld [vmem:[#allocation2] sm:$0xff]
        %v373 = vld [vmem:[%s246] sm:$0x1]
        %v375 = vlaneseq
        %v376 = vshrl.u32 %v375, 7
        %v377 = vsub.s32 0, %v376
        %v378 = vrot.slane %v373, %v377
        %v380 = vadd.f32 %v372, %v378
        %v381 = vmax.f32 %v380, 0.0
        %v382 = vpack.c.bf16 %v381, %v381
        %383 = vst [vmem:[%s253] sm:$0xf] %v382
      $region40: #{_lambda_.8} parent=31 // pred_fallthru
        _
      %p384 = scmp.lt.s32.totalorder %s19, 0
      %s385 = scalar_select %p384, %s19, 0
      %p386 = scmp.lt.s32.totalorder %s20, 0
      %s387 = scalar_select %p386, %s20, 0
      %s388 = sadd.s32 %s387, %s385
      %s389 = smul.addr %s388, 4
      %s390 = scalar_lea.vmem %s3, %s389
      // Predicated region
      $region41: #{_lambda_.8} parent=31 // pred_check
        %p391 = pneg %p135
      $region42: #{_lambda_.8} parent=31 // pred_check_branch
        %393 = sbr.rel (%p391) target = $region44
      $region43: #{_lambda_.8} parent=31 // pred_region
        _
      $region44: #{_lambda_.8} parent=31 // pred_fallthru
        _
      // Predicated region
      $region45: #{_lambda_.8} parent=31 // pred_check
        %p394 = pneg %p135
      $region46: #{_lambda_.8} parent=31 // pred_check_branch
        %396 = sbr.rel (%p394) target = $region48
      $region47: #{_lambda_.8} parent=31 // pred_region
        %p397 = scmp.lt.s32.totalorder %s19, 0
        %s398 = scalar_select %p397, %s19, 0
        %p399 = scmp.lt.s32.totalorder %s20, 0
        %s400 = scalar_select %p399, %s20, 0
        %s401 = sadd.s32 %s400, %s398
        %s402 = smul.addr %s401, 4
        %s403 = scalar_lea.vmem %s3, %s402
      $region48: #{_lambda_.8} parent=31 // pred_fallthru
        _
    $region32: #{_lambda_.8} parent=5 // pred_fallthru
      _
    %p404 = scmp.le.s32.totalorder 2, %s9
    // Predicated region
    $region49: #{_lambda_.8} parent=5 // pred_check
      %p405 = pneg %p404
    $region50: #{_lambda_.8} parent=5 // pred_check_branch
      %407 = sbr.rel (%p405) target = $region52
    $region51: #{_lambda_.8} parent=5 // pred_region
      %s408 = ssub.s32 %s9, 2
    $region52: #{_lambda_.8} parent=5 // pred_fallthru
      _
  $region6: #{_lambda_.8} parent=0 // loop_footer
    %s13 = sadd.s32 1, %s9
  $region7: #{_lambda_.8} parent=0 // loop_footer_branch
    %8 = sbr.rel target = $region3
  $region8: #{_lambda_.8} parent=0 // loop_exit
    _

// kernel: _lambda_.9
$region0: #{_lambda_.9}
  #allocation0 [shape = 'u32[]', space=smem, size = 0x4, offset = 0x4, fixed_abs, tag = 'smem constant byte address 0x4 - core index']
  #allocation1 [shape = 'u32[144,128]{1,0:T(1,128)}', space=vmem, size = 0x12000, scoped, tag = 'internal scratch']
  #allocation2 [shape = 'f32[4,256]{1,0:T(4,128)}', space=vmem, size = 0x1000, scoped, tag = 'scratch operand']
  %s0 = inlined_call_operand.vmem [shape: bf16[2,4,1152], index: 0, kind: input, shape index: {}]
  %s1 = inlined_call_operand.vmem [shape: bf16[1152,256], index: 1, kind: input, shape index: {}]
  %s2 = inlined_call_operand.vmem [shape: f32[1,256], index: 2, kind: input, shape index: {}]
  %s3 = inlined_call_operand.hbm [shape: f32[2,1,256], index: 3, kind: output, shape index: {}]
  %s4 = sld [smem:[#allocation0]]
  $region53: #{_lambda_.9} parent=0
    _
  %s6 = ssub.s32 1, %s4
  %s7 = scalar_select 0, %s6, %s4
  $region1: #{_lambda_.9} parent=0
    #allocation3 [shape = 'u8[2048]{0}', space=vmem, size = 0x800, scoped, tag = 'output window, operand 0']
    #allocation4 [shape = 's32[2]{0}', space=sflag, size = 0x8, scoped, tag = 'scoped memory for _lambda_.9']
    %8 = vsyncpa [#allocation4], 0
    %s9 = scalar_lea.sflag [#allocation4], 1
    %10 = vsyncpa %s9, 0
    loop: start=0, step=1, limit=20
    $region2: #{_lambda_.9} parent=1 // loop_pre_header
      _
    $region3: #{_lambda_.9} parent=1 // loop_header
      %s12 = sphi 0, %s16
      %p13 = scmp.ge.s32.totalorder %s12, 20
      %s19 = sphi 0, %s38
      %s20 = sphi 0, %s34
      %s21 = sphi 0, %s30
      %s22 = sphi 0, %s19
      %s23 = sphi 0, %s20
      %s24 = sphi 0, %s21
      %s25 = sphi 0, %s22
      %s26 = sphi 0, %s23
      %s27 = sphi 0, %s24
      %s43 = sphi 0, %s45
      %s46 = sphi 0, %s43
      %s47 = sphi 0, %s46
      %s63 = sphi 0, %s47
      %s71 = sphi 0, %s73
      %s74 = sphi 0, %s71
      %s75 = sphi 0, %s74
      %s91 = sphi 0, %s75
      %s97 = sphi 0, %s99
      %s100 = sphi 0, %s97
      %s101 = sphi 0, %s100
      %s117 = sphi 0, %s101
      %s125 = sphi 0, %s127
      %s128 = sphi 0, %s125
      %s129 = sphi 0, %s128
      %s145 = sphi 0, %s129
    $region4: #{_lambda_.9} parent=1 // loop_header_branch
      %15 = sbr.rel (%p13) target = $region8
    $region5: #{_lambda_.9} parent=1 // loop_body
      %s17 = ssub.s32 %s12, 1
      %s18 = ssub.s32 %s12, 2
      %s28 = sadd.s32 1, %s21
      %p29 = scmp.ge.s32.totalorder %s28, 9
      %s30 = scalar_select %p29, 0, %s28
      %s31 = sadd.s32 1, %s20
      %s32 = scalar_select %p29, %s31, %s20
      %p33 = scmp.ge.s32.totalorder %s32, 1
      %s34 = scalar_select %p33, 0, %s32
      %s35 = sadd.s32 1, %s19
      %s36 = scalar_select %p33, %s35, %s19
      %p37 = scmp.ge.s32.totalorder %s36, 2
      %s38 = scalar_select %p37, 0, %s36
      %s39 = ssub.s32 %s19, %s38
      %s40 = ssub.s32 %s21, %s30
      %s41 = sor.u32 %s39, %s40
      %p42 = scmp.eq.s32.totalorder %s41, 0
      %s44 = sadd.s32 %s43, 1
      %s45 = scalar_select %p42, %s43, %s44
      %p48 = pneg %p42
      %p49 = scmp.eq.s32.totalorder %s12, 17
      %p50 = por %p48, %p49
      %p51 = scmp.ne.s32.totalorder %s43, %s46
      %p52 = scmp.eq.s32.totalorder %s12, 0
      %p53 = por %p51, %p52
      %p54 = scmp.ne.s32.totalorder %s43, %s46
      %p55 = scmp.eq.s32.totalorder %s17, 17
      %p56 = por %p54, %p55
      %p57 = scmp.ne.s32.totalorder %s46, %s47
      %p58 = scmp.eq.s32.totalorder %s17, 0
      %p59 = por %p57, %p58
      %p60 = scmp.ne.s32.totalorder %s46, %s47
      %p61 = scmp.eq.s32.totalorder %s18, 17
      %p62 = por %p60, %p61
      %p64 = scmp.ne.s32.totalorder %s47, %s63
      %p65 = scmp.eq.s32.totalorder %s18, 0
      %p66 = por %p64, %p65
      %s67 = ssub.s32 %s21, %s30
      %s68 = ssub.s32 %s20, %s34
      %s69 = sor.u32 %s67, %s68
      %p70 = scmp.eq.s32.totalorder %s69, 0
      %s72 = sadd.s32 %s71, 1
      %s73 = scalar_select %p70, %s71, %s72
      %p76 = pneg %p70
      %p77 = scmp.eq.s32.totalorder %s12, 17
      %p78 = por %p76, %p77
      %p79 = scmp.ne.s32.totalorder %s71, %s74
      %p80 = scmp.eq.s32.totalorder %s12, 0
      %p81 = por %p79, %p80
      %p82 = scmp.ne.s32.totalorder %s71, %s74
      %p83 = scmp.eq.s32.totalorder %s17, 17
      %p84 = por %p82, %p83
      %p85 = scmp.ne.s32.totalorder %s74, %s75
      %p86 = scmp.eq.s32.totalorder %s17, 0
      %p87 = por %p85, %p86
      %p88 = scmp.ne.s32.totalorder %s74, %s75
      %p89 = scmp.eq.s32.totalorder %s18, 17
      %p90 = por %p88, %p89
      %p92 = scmp.ne.s32.totalorder %s75, %s91
      %p93 = scmp.eq.s32.totalorder %s18, 0
      %p94 = por %p92, %p93
      %s95 = ssub.s32 %s20, %s34
      %p96 = scmp.eq.s32.totalorder %s95, 0
      %s98 = sadd.s32 %s97, 1
      %s99 = scalar_select %p96, %s97, %s98
      %p102 = pneg %p96
      %p103 = scmp.eq.s32.totalorder %s12, 17
      %p104 = por %p102, %p103
      %p105 = scmp.ne.s32.totalorder %s97, %s100
      %p106 = scmp.eq.s32.totalorder %s12, 0
      %p107 = por %p105, %p106
      %p108 = scmp.ne.s32.totalorder %s97, %s100
      %p109 = scmp.eq.s32.totalorder %s17, 17
      %p110 = por %p108, %p109
      %p111 = scmp.ne.s32.totalorder %s100, %s101
      %p112 = scmp.eq.s32.totalorder %s17, 0
      %p113 = por %p111, %p112
      %p114 = scmp.ne.s32.totalorder %s100, %s101
      %p115 = scmp.eq.s32.totalorder %s18, 17
      %p116 = por %p114, %p115
      %p118 = scmp.ne.s32.totalorder %s101, %s117
      %p119 = scmp.eq.s32.totalorder %s18, 0
      %p120 = por %p118, %p119
      %s121 = ssub.s32 %s19, %s38
      %s122 = ssub.s32 %s20, %s34
      %s123 = sor.u32 %s121, %s122
      %p124 = scmp.eq.s32.totalorder %s123, 0
      %s126 = sadd.s32 %s125, 1
      %s127 = scalar_select %p124, %s125, %s126
      %p130 = pneg %p124
      %p131 = scmp.eq.s32.totalorder %s12, 17
      %p132 = por %p130, %p131
      %p133 = scmp.ne.s32.totalorder %s125, %s128
      %p134 = scmp.eq.s32.totalorder %s12, 0
      %p135 = por %p133, %p134
      %p136 = scmp.ne.s32.totalorder %s125, %s128
      %p137 = scmp.eq.s32.totalorder %s17, 17
      %p138 = por %p136, %p137
      %p139 = scmp.ne.s32.totalorder %s128, %s129
      %p140 = scmp.eq.s32.totalorder %s17, 0
      %p141 = por %p139, %p140
      %p142 = scmp.ne.s32.totalorder %s128, %s129
      %p143 = scmp.eq.s32.totalorder %s18, 17
      %p144 = por %p142, %p143
      %p146 = scmp.ne.s32.totalorder %s129, %s145
      %p147 = scmp.eq.s32.totalorder %s18, 0
      %p148 = por %p146, %p147
      %p149 = scmp.le.s32.totalorder 1, %s12
      %p150 = scmp.lt.s32.totalorder %s12, 19
      %p151 = pnand %p149, %p150
      %p152 = pneg %p151
      // Predicated region
      $region9: #{_lambda_.9} parent=5 // pred_check
        _
      $region10: #{_lambda_.9} parent=5 // pred_check_branch
        %154 = sbr.rel (%p151) target = $region12
      $region11: #{_lambda_.9} parent=5 // pred_region
        %s155 = ssub.s32 %s12, 1
        // Predicated region
        $region13: #{_lambda_.9} parent=11 // pred_check
          %p156 = pneg %p113
        $region14: #{_lambda_.9} parent=11 // pred_check_branch
          %158 = sbr.rel (%p156) target = $region16
        $region15: #{_lambda_.9} parent=11 // pred_region
          %s159 = smul.u32 2, %s23
          %p160 = scmp.lt.s32.totalorder %s159, 1
          %s161 = scalar_select %p160, %s159, 1
          %s162 = scalar_lea.vmem %s2, %s161
          %s163 = smul.u32 2, %s23
        $region16: #{_lambda_.9} parent=11 // pred_fallthru
          _
      $region12: #{_lambda_.9} parent=5 // pred_fallthru
        _
      %p164 = scmp.lt.s32.totalorder %s12, 18
      // Predicated region
      $region17: #{_lambda_.9} parent=5 // pred_check
        %p165 = pneg %p164
      $region18: #{_lambda_.9} parent=5 // pred_check_branch
        %167 = sbr.rel (%p165) target = $region20
      $region19: #{_lambda_.9} parent=5 // pred_region
        // Predicated region
        $region21: #{_lambda_.9} parent=19 // pred_check
          %p168 = pneg %p53
        $region22: #{_lambda_.9} parent=19 // pred_check_branch
          %170 = sbr.rel (%p168) target = $region24
        $region23: #{_lambda_.9} parent=19 // pred_region
          %p171 = scmp.lt.s32.totalorder %s19, 1
          %s172 = scalar_select %p171, %s19, 1
          %p173 = scmp.lt.s32.totalorder %s21, 8
          %s174 = scalar_select %p173, %s21, 8
          %s175 = smul.addr %s172, 9
          %s176 = sadd.s32 %s174, %s175
          %s177 = smul.addr %s176, 2
          %s178 = scalar_lea.vmem %s0, %s177
        $region24: #{_lambda_.9} parent=19 // pred_fallthru
          _
        // Predicated region
        $region25: #{_lambda_.9} parent=19 // pred_check
          %p179 = pneg %p81
        $region26: #{_lambda_.9} parent=19 // pred_check_branch
          %181 = sbr.rel (%p179) target = $region28
        $region27: #{_lambda_.9} parent=19 // pred_region
          %s182 = smul.u32 16, %s21
          %s183 = smul.u32 2, %s20
          %p184 = scmp.lt.s32.totalorder %s182, 143
          %s185 = scalar_select %p184, %s182, 143
          %p186 = scmp.lt.s32.totalorder %s183, 1
          %s187 = scalar_select %p186, %s183, 1
          %s188 = smul.addr %s185, 2
          %s189 = sadd.s32 %s187, %s188
          %s190 = smul.addr %s189, 4
          %s191 = scalar_lea.vmem %s1, %s190
          %s192 = smul.u32 16, %s21
          %s193 = smul.u32 2, %s20
        $region28: #{_lambda_.9} parent=19 // pred_fallthru
          _
      $region20: #{_lambda_.9} parent=5 // pred_fallthru
        _
      %p194 = scmp.le.s32.totalorder 1, %s12
      %p195 = scmp.lt.s32.totalorder %s12, 19
      %p196 = pnand %p194, %p195
      %p197 = pneg %p196
      // Predicated region
      $region29: #{_lambda_.9} parent=5 // pred_check
        _
      $region30: #{_lambda_.9} parent=5 // pred_check_branch
        %199 = sbr.rel (%p196) target = $region32
      $region31: #{_lambda_.9} parent=5 // pred_region
        %s200 = ssub.s32 %s12, 1
        %p201 = scmp.lt.s32.totalorder %s22, 1
        %s202 = scalar_select %p201, %s22, 1
        %p203 = scmp.lt.s32.totalorder %s24, 8
        %s204 = scalar_select %p203, %s24, 8
        %s205 = smul.addr %s202, 9
        %s206 = sadd.s32 %s204, %s205
        %s207 = smul.addr %s206, 2
        %s208 = scalar_lea.vmem %s0, %s207
        %p209 = pneg %p59
        %p210 = pneg %p56
        %s211 = smul.u32 16, %s24
        %s212 = smul.u32 2, %s23
        %p213 = scmp.lt.s32.totalorder %s211, 143
        %s214 = scalar_select %p213, %s211, 143
        %p215 = scmp.lt.s32.totalorder %s212, 1
        %s216 = scalar_select %p215, %s212, 1
        %s217 = smul.addr %s214, 2
        %s218 = sadd.s32 %s216, %s217
        %s219 = smul.addr %s218, 4
        %s220 = scalar_lea.vmem %s1, %s219
        %p221 = pneg %p87
        %p222 = pneg %p84
        %s223 = smul.u32 2, %s23
        %p224 = scmp.lt.s32.totalorder %s223, 1
        %s225 = scalar_select %p224, %s223, 1
        %s226 = scalar_lea.vmem %s2, %s225
        %p227 = pneg %p113
        %p228 = pneg %p110
        %p229 = pneg %p141
        %p230 = pneg %p138
        %s231 = sand.u32 %s128, 1
        %s232 = scalar_lea.sflag [#allocation4], %s231
        %s233 = sand.u32 %s128, 1
        %s234 = smul.addr %s233, 2
        %s235 = scalar_lea.vmem [#allocation3], %s234
        %p236 = scmp.lt.s32.totalorder %s22, 1
        %s237 = scalar_select %p236, %s22, 1
        %p238 = scmp.lt.s32.totalorder %s24, 8
        %s239 = scalar_select %p238, %s24, 8
        %s240 = smul.addr %s237, 9
        %s241 = sadd.s32 %s239, %s240
        %s242 = smul.addr %s241, 2
        %s243 = scalar_lea.vmem %s0, %s242
        %s244 = smul.u32 16, %s24
        %s245 = smul.u32 2, %s23
        %p246 = scmp.lt.s32.totalorder %s244, 143
        %s247 = scalar_select %p246, %s244, 143
        %p248 = scmp.lt.s32.totalorder %s245, 1
        %s249 = scalar_select %p248, %s245, 1
        %s250 = smul.addr %s247, 2
        %s251 = sadd.s32 %s249, %s250
        %s252 = smul.addr %s251, 4
        %s253 = scalar_lea.vmem %s1, %s252
        %s254 = smul.u32 16, %s24
        %s255 = smul.u32 2, %s23
        %s256 = smul.u32 2, %s23
        %p257 = scmp.lt.s32.totalorder %s256, 1
        %s258 = scalar_select %p257, %s256, 1
        %s259 = scalar_lea.vmem %s2, %s258
        %s260 = smul.u32 2, %s23
        %s261 = smul.u32 2, %s23
        %p263 = scmp.eq.s32.totalorder %s24, 0
        // Predicated region
        $region33: #{_lambda_.9} parent=31 // pred_check
          %p264 = pneg %p263
        $region34: #{_lambda_.9} parent=31 // pred_check_branch
          %266 = sbr.rel (%p264) target = $region36
        $region35: #{_lambda_.9} parent=31 // pred_region
          %267 = vst [vmem:[#allocation2] sm:$0xff] 0.0
        $region36: #{_lambda_.9} parent=31 // pred_fallthru
          _
        %v268 = vld [vmem:[%s243] sm:$0x3]
        %v269 = vld [vmem:[#allocation2] sm:$0xff]
        %v270 = vld [vmem:[%s253] sm:$0xff]
        %v271 = vld [vmem:[%s253 + $0x8] sm:$0xff]
        %v272 = vld [vmem:[%s253 + $0x10] sm:$0xff]
        %v273 = vld [vmem:[%s253 + $0x18] sm:$0xff]
        %v274 = vld [vmem:[%s253 + $0x20] sm:$0xff]
        %v275 = vld [vmem:[%s253 + $0x28] sm:$0xff]
        %v276 = vld [vmem:[%s253 + $0x30] sm:$0xff]
        %v277 = vld [vmem:[%s253 + $0x38] sm:$0xff]
        %v278 = vld [vmem:[%s253 + $0x40] sm:$0xff]
        %v279 = vld [vmem:[%s253 + $0x48] sm:$0xff]
        %v280 = vld [vmem:[%s253 + $0x50] sm:$0xff]
        %v281 = vld [vmem:[%s253 + $0x58] sm:$0xff]
        %v282 = vld [vmem:[%s253 + $0x60] sm:$0xff]
        %v283 = vld [vmem:[%s253 + $0x68] sm:$0xff]
        %v284 = vld [vmem:[%s253 + $0x70] sm:$0xff]
        %v285 = vld [vmem:[%s253 + $0x78] sm:$0xff]
        %v302 = vunpack.c.l.b16 %v270
        %v303 = vunpack.c.h.b16 %v270
        %v304 = vunpack.c.l.b16 %v271
        %v305 = vunpack.c.h.b16 %v271
        %v306 = vunpack.c.l.b16 %v272
        %v307 = vunpack.c.h.b16 %v272
        %v308 = vunpack.c.l.b16 %v273
        %v309 = vunpack.c.h.b16 %v273
        %v310 = vunpack.c.l.b16 %v274
        %v311 = vunpack.c.h.b16 %v274
        %v312 = vunpack.c.l.b16 %v275
        %v313 = vunpack.c.h.b16 %v275
        %v314 = vunpack.c.l.b16 %v276
        %v315 = vunpack.c.h.b16 %v276
        %v316 = vunpack.c.l.b16 %v277
        %v317 = vunpack.c.h.b16 %v277
        %v318 = vunpack.c.l.b16 %v278
        %v319 = vunpack.c.h.b16 %v278
        %v320 = vunpack.c.l.b16 %v279
        %v321 = vunpack.c.h.b16 %v279
        %v322 = vunpack.c.l.b16 %v280
        %v323 = vunpack.c.h.b16 %v280
        %v324 = vunpack.c.l.b16 %v281
        %v325 = vunpack.c.h.b16 %v281
        %v326 = vunpack.c.l.b16 %v282
        %v327 = vunpack.c.h.b16 %v282
        %v328 = vunpack.c.l.b16 %v283
        %v329 = vunpack.c.h.b16 %v283
        %v330 = vunpack.c.l.b16 %v284
        %v331 = vunpack.c.h.b16 %v284
        %v332 = vunpack.c.l.b16 %v285
        %v333 = vunpack.c.h.b16 %v285
        %v334 = vpack.c.b16 %v304, %v302
        %v335 = vpack.c.b16 %v305, %v303
        %v336 = vpack.c.b16 %v308, %v306
        %v337 = vpack.c.b16 %v309, %v307
        %v338 = vpack.c.b16 %v312, %v310
        %v339 = vpack.c.b16 %v313, %v311
        %v340 = vpack.c.b16 %v316, %v314
        %v341 = vpack.c.b16 %v317, %v315
        %v342 = vpack.c.b16 %v320, %v318
        %v343 = vpack.c.b16 %v321, %v319
        %v344 = vpack.c.b16 %v324, %v322
        %v345 = vpack.c.b16 %v325, %v323
        %v346 = vpack.c.b16 %v328, %v326
        %v347 = vpack.c.b16 %v329, %v327
        %v348 = vpack.c.b16 %v332, %v330
        %v349 = vpack.c.b16 %v333, %v331
        %366 = vmatprep.subr.bf16.mxu0 %v335
        %367 = vmatpush1.bf16.msra.mxu0 %v334
        %368 = vmatprep.subr.bf16.mxu0 %v337
        %369 = vmatpush1.bf16.msra.mxu0 %v336
        %370 = vmatprep.subr.bf16.mxu0 %v339
        %371 = vmatpush1.bf16.msra.mxu0 %v338
        %372 = vmatprep.subr.bf16.mxu0 %v341
        %373 = vmatpush1.bf16.msra.mxu0 %v340
        %374 = vmatprep.subr.bf16.mxu0 %v343
        %375 = vmatpush1.bf16.msra.mxu0 %v342
        %376 = vmatprep.subr.bf16.mxu0 %v345
        %377 = vmatpush1.bf16.msra.mxu0 %v344
        %378 = vmatprep.subr.bf16.mxu0 %v347
        %379 = vmatpush1.bf16.msra.mxu0 %v346
        %380 = vmatprep.subr.bf16.mxu0 %v349
        %381 = vmatpush1.bf16.msra.mxu0 %v348
        %382 = vmatprep.subr.bf16.mxu0 0
        %383 = vmatpush1.bf16.msra.mxu0 0
        %384 = vmatprep.subr.bf16.mxu0 0
        %385 = vmatpush1.bf16.msra.mxu0 0
        %386 = vmatprep.subr.bf16.mxu0 0
        %387 = vmatpush1.bf16.msra.mxu0 0
        %388 = vmatprep.subr.bf16.mxu0 0
        %389 = vmatpush1.bf16.msra.mxu0 0
        %390 = vmatprep.subr.bf16.mxu0 0
        %391 = vmatpush1.bf16.msra.mxu0 0
        %392 = vmatprep.subr.bf16.mxu0 0
        %393 = vmatpush1.bf16.msra.mxu0 0
        %394 = vmatprep.subr.bf16.mxu0 0
        %395 = vmatpush1.bf16.msra.mxu0 0
        %396 = vmatprep.subr.bf16.mxu0 0
        %397 = vmatpush1.bf16.msra.mxu0 0
        %398 = vmatprep.mubr.bf16.mxu0 0
        %399 = vmatmul.mubr.bf16.gmra.mrb[0].mxu0 %v268
        %v400 = vpop.f32.mrb[0].mxu0
        %v401 = vadd.f32 0.0, %v400
        %v402 = vpop.f32.mrb[0].mxu0
        %v403 = vadd.f32 0.0, %v402
        %v404 = vpop.f32.mrb[0].mxu0
        %v405 = vpop.f32.mrb[0].mxu0
        %406 = vdwg.mxu0
        %v409 = vcombine.low %v401, %v403
        %v411 = vadd.f32 %v269, %v409
        %412 = vst [vmem:[#allocation2] sm:$0xff] %v411
        %p413 = scmp.eq.s32.totalorder %s24, 8
        // Predicated region
        $region37: #{_lambda_.9} parent=31 // pred_check
          %p414 = pneg %p413
        $region38: #{_lambda_.9} parent=31 // pred_check_branch
          %416 = sbr.rel (%p414) target = $region40
        $region39: #{_lambda_.9} parent=31 // pred_region
          %v417 = vld [vmem:[#allocation2] sm:$0xff]
          %v418 = vld [vmem:[%s259] sm:$0x3]
          %v420 = vlaneseq
          %v421 = vshrl.u32 %v420, 7
          %v422 = vsub.s32 0, %v421
          %v423 = vrot.slane %v418, %v422
          %v424 = vlaneseq
          %v425 = vshrl.u32 %v424, 7
          %v426 = vsub.s32 1, %v425
          %v427 = vrot.slane %v418, %v426
          %v428 = vcombine.low %v423, %v427
          %v430 = vadd.f32 %v417, %v428
          %v431 = vmax.f32 %v430, 0.0
          %v433 = vcombine.high %v431, %v431
          %vm435 = vcmask 1043456
          %v436 = vsel %vm435, %v431, 0.0
          %v437 = vrot.slane %v436, 4
          %v438 = vadd.f32 %v436, %v437
          %v439 = vrot.slane %v438, 2
          %v440 = vadd.f32 %v438, %v439
          %v441 = vrot.slane %v440, 1
          %v442 = vadd.f32 %v440, %v441
          %v443 = vsel %vm435, %v433, 0.0
          %v444 = vrot.slane %v443, 4
          %v445 = vadd.f32 %v443, %v444
          %v446 = vrot.slane %v445, 2
          %v447 = vadd.f32 %v445, %v446
          %v448 = vrot.slane %v447, 1
          %v449 = vadd.f32 %v447, %v448
          %v450 = vrcp.pop 4.0
          %v451 = vmul.f32 %v442, %v450
          %v452 = vmul.f32 %v449, %v450
          %v455 = vcombine.low %v451, %v452
          %v457 = vunpack.c.l.s4 1966171168
          %v458 = vunpack.c.0.s8 %v457
          %v459 = vlaneseq
          %v460 = vshrl.u32 %v459, 7
          %v461 = vsub.s32 %v458, %v460
          %v462 = vrot.slane %v455, %v461
          %v464 = vunpack.c.l.s4 1966171168
          %v465 = vunpack.c.0.s8 %v464
          %v466 = vlaneseq
          %v467 = vshrl.u32 %v466, 7
          %v468 = vsub.s32 %v465, %v467
          %v469 = vrot.slane %v462, %v468
          %v471 = vlaneseq
          %vm472 = vcmp.ge.s32.totalorder %v471, 0
          %vm473 = vcmp.lt.s32.totalorder %v471, 256
          %vm474 = vmand %vm472, %vm473
          %475 = vst.msk [vmem:[%s235] sm:$0x3] %vm474, %v469
        $region40: #{_lambda_.9} parent=31 // pred_fallthru
          _
        %s476 = sand.u32 %s128, 1
        %s477 = scalar_lea.sflag [#allocation4], %s476
        %s478 = sand.u32 %s128, 1
        %s479 = smul.addr %s478, 2
        %s480 = scalar_lea.vmem [#allocation3], %s479
        // Predicated region
        $region41: #{_lambda_.9} parent=31 // pred_check
          %p481 = pneg %p138
        $region42: #{_lambda_.9} parent=31 // pred_check_branch
          %483 = sbr.rel (%p481) target = $region44
        $region43: #{_lambda_.9} parent=31 // pred_region
          %s484 = smul.u32 2, %s23
          %s486 = ssub.s32 32, 32
          %487 = vsyncadd %s477, %s486
          %s488 = smul.addr %s22, 2
          %s489 = sadd.s32 %s484, %s488
          %s490 = smul.addr %s489, 16
          %s491 = scalar_lea.hbm %s3, %s490
          %s493 = sshll.u32 %s480, 4
          %s494 = int_to_ptr.vmem [resolvable:$true] %s493
          %496 = dma.vmem_to_hbm [thread:$0]  %s494, 32, %s491, %s477
        $region44: #{_lambda_.9} parent=31 // pred_fallthru
          _
      $region32: #{_lambda_.9} parent=5 // pred_fallthru
        _
      %p497 = scmp.le.s32.totalorder 2, %s12
      // Predicated region
      $region45: #{_lambda_.9} parent=5 // pred_check
        %p498 = pneg %p497
      $region46: #{_lambda_.9} parent=5 // pred_check_branch
        %500 = sbr.rel (%p498) target = $region48
      $region47: #{_lambda_.9} parent=5 // pred_region
        %s501 = ssub.s32 %s12, 2
        // Predicated region
        $region49: #{_lambda_.9} parent=47 // pred_check
          %p502 = pneg %p144
        $region50: #{_lambda_.9} parent=47 // pred_check_branch
          %504 = sbr.rel (%p502) target = $region52
        $region51: #{_lambda_.9} parent=47 // pred_region
          %s505 = sand.u32 %s129, 1
          %s506 = scalar_lea.sflag [#allocation4], %s505
          %s507 = sand.u32 %s129, 1
          %s508 = smul.addr %s507, 2
          %s509 = scalar_lea.vmem [#allocation3], %s508
          %510 = dma.done %s506, 32
        $region52: #{_lambda_.9} parent=47 // pred_fallthru
          _
      $region48: #{_lambda_.9} parent=5 // pred_fallthru
        _
    $region6: #{_lambda_.9} parent=1 // loop_footer
      %s16 = sadd.s32 1, %s12
    $region7: #{_lambda_.9} parent=1 // loop_footer_branch
      %11 = sbr.rel target = $region3
    $region8: #{_lambda_.9} parent=1 // loop_exit
      _
    %511 = vsyncpa [#allocation4], 1
    %s512 = scalar_lea.sflag [#allocation4], 1
    %513 = vsyncpa %s512, 1

</llo_original>
